<compile_context>
chip_gen: v7x
topology: tpu7x:2x2x1
jax: 0.10.0
libtpu: 0.0.40
codegen_flags: <defaults>
</compile_context>

<pallas_src>
import functools

import jax
import jax.numpy as jnp
from jax.experimental import pallas as pl
from jax.experimental.pallas import tpu as pltpu


# -----------------------------------------------------------------------------
# Small-model config (shapes consistent with the BertModel forward, scaled down)
# -----------------------------------------------------------------------------
VOCAB = 30
HIDDEN = 32
NUM_LAYERS = 2
NUM_HEADS = 4
HEAD_DIM = HIDDEN // NUM_HEADS
INTERMEDIATE = 64
MAX_POS = 16
N_CLASSES = 2
LN_EPS = 1e-12  # BERT LayerNorm eps

# ---- misc slab layout (width HIDDEN = 32, all offsets 8-row aligned) --------
WORD_OFF = 0            # [VOCAB, H]   word embeddings (padded to 32 rows)
POS_OFF = 32            # [MAX_POS, H] position embeddings
TYPE_OFF = 48           # [1, H]       token-type-0 embedding
EG_OFF = 56             # [1, H]       embedding LayerNorm gamma
EB_OFF = 64             # [1, H]       embedding LayerNorm beta
PW_OFF = 72             # [H, H]       pooler weight
PB_OFF = 104            # [1, H]       pooler bias
CW_OFF = 112            # [H, n_cls]   classifier weight (cols 0..n_cls)
CB_OFF = 144            # [1, n_cls]   classifier bias
M_ROWS = 152

# ---- per-layer slab layout (width 3*HIDDEN = 96) ----------------------------
QKVW_OFF = 0            # [H, 3H]  fused [Wq | Wk | Wv]
OW_OFF = 32             # [H, H]   attention output projection
IW_OFF = 64             # [H, I]   FFN intermediate weight
FOW_OFF = 96            # [I, H]   FFN output weight
QKVB_OFF = 160          # [1, 3H]
OB_OFF = 168            # [1, H]
LN1G_OFF = 176          # [1, H]
LN1B_OFF = 184          # [1, H]
IB_OFF = 192            # [1, I]
FOB_OFF = 200           # [1, H]
LN2G_OFF = 208          # [1, H]
LN2B_OFF = 216          # [1, H]
L_ROWS = 224
L_COLS = 3 * HIDDEN


# -----------------------------------------------------------------------------
# In-kernel helpers (pure functions of jnp values)
# -----------------------------------------------------------------------------
def _layernorm(x, g, b):
    mean = jnp.mean(x, axis=-1, keepdims=True)
    var = jnp.mean(jnp.square(x - mean), axis=-1, keepdims=True)
    return (x - mean) * jax.lax.rsqrt(var + jnp.float32(LN_EPS)) * g + b


def _gelu_exact(y):
    # erf-based GELU, matching HF BERT's default "gelu"
    return 0.5 * y * (1.0 + jax.lax.erf(y * jnp.float32(0.7071067811865476)))


# -----------------------------------------------------------------------------
# Fused whole-model kernel
# -----------------------------------------------------------------------------
def _bert_fused_kernel(ids_ref, mask_ref, misc_ref, layer_ref,
                       out_ref, ctx_ref, *, B, S):
    f32 = jnp.float32
    H, Hn, Dh = HIDDEN, NUM_HEADS, HEAD_DIM
    BS = B * S

    # ---------------- embeddings (gather via one-hot matmul on the MXU) ------
    # NOTE: ids are assumed to lie in [0, VOCAB); out-of-range ids would give a
    # zero embedding here whereas PyTorch raises an index error.
    ids = ids_ref[...]                                            # [BS, 1] int32
    vocab_iota = jax.lax.broadcasted_iota(jnp.int32, (BS, VOCAB), 1)
    onehot = (vocab_iota == ids).astype(f32)                      # [BS, VOCAB]
    word = jnp.dot(onehot, misc_ref[WORD_OFF:WORD_OFF + VOCAB, :],
                   preferred_element_type=f32)                    # [BS, H]

    pos = misc_ref[POS_OFF:POS_OFF + S, :]                        # [S, H] (S rows only)
    # token_type_ids are not a forward() input -> HF defaults them to zeros,
    # so only the type-0 embedding row is ever needed.
    ttype = misc_ref[TYPE_OFF:TYPE_OFF + 1, :]                    # [1, H]
    h = word.reshape(B, S, H) + pos[None, :, :] + ttype[None, :, :]
    h = h.reshape(BS, H)
    h = _layernorm(h, misc_ref[EG_OFF:EG_OFF + 1, :],
                   misc_ref[EB_OFF:EB_OFF + 1, :])

    # additive attention mask over keys: (1 - mask) * -10000
    addm = (1.0 - mask_ref[...]) * f32(-10000.0)                  # [B, S]
    scale = f32(1.0 / (Dh ** 0.5))

    # ---------------- encoder layers (static loop, all in VMEM/vregs) --------
    for l in range(NUM_LAYERS):
        # fused QKV projection: one [BS,H] @ [H,3H] matmul (single K=32 push)
        qkv = (jnp.dot(h, layer_ref[l, QKVW_OFF:QKVW_OFF + H, :],
                       preferred_element_type=f32)
               + layer_ref[l, QKVB_OFF:QKVB_OFF + 1, :])          # [BS, 3H]

        # per-head scores/context; contexts assembled into ctx_ref so the
        # output projection is a single [BS,H]@[H,H] matmul below.
        for hd in range(Hn):
            lo = hd * Dh
            qh = qkv[:, lo:lo + Dh].reshape(B, S, Dh)
            kh = qkv[:, H + lo:H + lo + Dh].reshape(B, S, Dh)
            vh = qkv[:, 2 * H + lo:2 * H + lo + Dh].reshape(B, S, Dh)

            s = jnp.einsum('bqd,bkd->bqk', qh, kh,
                           preferred_element_type=f32) * scale    # [B, S, S]
            s = s + addm[:, None, :]
            s = s - jnp.max(s, axis=-1, keepdims=True)
            p = jnp.exp(s)
            p = p / jnp.sum(p, axis=-1, keepdims=True)            # exact softmax
            ctxh = jnp.einsum('bqk,bkd->bqd', p, vh,
                              preferred_element_type=f32)         # [B, S, Dh]
            ctx_ref[:, lo:lo + Dh] = ctxh.reshape(BS, Dh)         # concat(heads)

        # single output projection for all heads + bias
        attn = (jnp.dot(ctx_ref[...], layer_ref[l, OW_OFF:OW_OFF + H, 0:H],
                        preferred_element_type=f32)
                + layer_ref[l, OB_OFF:OB_OFF + 1, 0:H])

        # residual + LN1 epilogue
        h1 = _layernorm(attn + h,
                        layer_ref[l, LN1G_OFF:LN1G_OFF + 1, 0:H],
                        layer_ref[l, LN1B_OFF:LN1B_OFF + 1, 0:H])

        # fused FFN: matmul + exact GELU + matmul, residual + LN2 epilogue
        ffn = (jnp.dot(h1, layer_ref[l, IW_OFF:IW_OFF + H, 0:INTERMEDIATE],
                       preferred_element_type=f32)
               + layer_ref[l, IB_OFF:IB_OFF + 1, 0:INTERMEDIATE])
        ffn = _gelu_exact(ffn)
        ffn = (jnp.dot(ffn, layer_ref[l, FOW_OFF:FOW_OFF + INTERMEDIATE, 0:H],
                       preferred_element_type=f32)
               + layer_ref[l, FOB_OFF:FOB_OFF + 1, 0:H])
        h = _layernorm(ffn + h1,
                       layer_ref[l, LN2G_OFF:LN2G_OFF + 1, 0:H],
                       layer_ref[l, LN2B_OFF:LN2B_OFF + 1, 0:H])

    # ---------------- pooler + classifier -------------------------------------
    # [CLS] rows (row b*S of the [BS,H] slab) selected via a tiny select-matmul
    col_iota = jax.lax.broadcasted_iota(jnp.int32, (B, BS), 1)
    row_iota = jax.lax.broadcasted_iota(jnp.int32, (B, BS), 0)
    sel = (col_iota == row_iota * S).astype(f32)                  # [B, BS]
    cls = jnp.dot(sel, h, preferred_element_type=f32)             # [B, H]

    pooled = jnp.tanh(jnp.dot(cls, misc_ref[PW_OFF:PW_OFF + H, :],
                              preferred_element_type=f32)
                      + misc_ref[PB_OFF:PB_OFF + 1, :])           # [B, H]
    logits = (jnp.dot(pooled, misc_ref[CW_OFF:CW_OFF + H, 0:N_CLASSES],
                      preferred_element_type=f32)
              + misc_ref[CB_OFF:CB_OFF + 1, 0:N_CLASSES])
    out_ref[...] = logits.astype(out_ref.dtype)                   # [B, n_classes]


@jax.jit
def custom_bert_forward(params, input_ids, attention_mask):
    B, S = input_ids.shape

    ids2 = input_ids.astype(jnp.int32).reshape(B * S, 1)
    maskf = attention_mask.astype(jnp.float32)                    # [B, S]

    kern = functools.partial(_bert_fused_kernel, B=B, S=S)
    vmem = pl.BlockSpec(memory_space=pltpu.MemorySpace.VMEM)

    return pl.pallas_call(
        kern,
        out_shape=jax.ShapeDtypeStruct((B, N_CLASSES), jnp.float32),
        in_specs=[vmem, vmem, vmem, vmem],
        out_specs=vmem,
        scratch_shapes=[pltpu.VMEM((B * S, HIDDEN), jnp.float32)],  # ctx assembly
    )(ids2, maskf, params["misc_slab"], params["layer_slab"])


# -----------------------------------------------------------------------------
# Deterministic parameter construction (BERT-style init: N(0, 0.02), zeros/ones)
# packed directly into the two kernel-ready slabs.
# -----------------------------------------------------------------------------
def init_params(key):
    def nrm(k, shape):
        return 0.02 * jax.random.normal(k, shape, dtype=jnp.float32)

    keys = jax.random.split(key, 8 + NUM_LAYERS)

    misc = jnp.zeros((M_ROWS, HIDDEN), jnp.float32)
    misc = misc.at[WORD_OFF:WORD_OFF + VOCAB, :].set(nrm(keys[0], (VOCAB, HIDDEN)))
    misc = misc.at[POS_OFF:POS_OFF + MAX_POS, :].set(nrm(keys[1], (MAX_POS, HIDDEN)))
    misc = misc.at[TYPE_OFF, :].set(nrm(keys[2], (2, HIDDEN))[0])   # type-id 0 row
    misc = misc.at[EG_OFF, :].set(1.0)                              # emb LN gamma
    # EB_OFF (beta), PB_OFF, CB_OFF stay zero.
    misc = misc.at[PW_OFF:PW_OFF + HIDDEN, :].set(nrm(keys[3], (HIDDEN, HIDDEN)))
    misc = misc.at[CW_OFF:CW_OFF + HIDDEN, 0:N_CLASSES].set(
        nrm(keys[4], (HIDDEN, N_CLASSES)))

    layers = jnp.zeros((NUM_LAYERS, L_ROWS, L_COLS), jnp.float32)
    for l in range(NUM_LAYERS):
        lk = jax.random.split(keys[8 + l], 6)
        q = nrm(lk[0], (HIDDEN, HIDDEN))
        k = nrm(lk[1], (HIDDEN, HIDDEN))
        v = nrm(lk[2], (HIDDEN, HIDDEN))
        layers = layers.at[l, QKVW_OFF:QKVW_OFF + HIDDEN, :].set(
            jnp.concatenate([q, k, v], axis=1))                     # [H, 3H]
        layers = layers.at[l, OW_OFF:OW_OFF + HIDDEN, 0:HIDDEN].set(
            nrm(lk[3], (HIDDEN, HIDDEN)))
        layers = layers.at[l, IW_OFF:IW_OFF + HIDDEN, 0:INTERMEDIATE].set(
            nrm(lk[4], (HIDDEN, INTERMEDIATE)))
        layers = layers.at[l, FOW_OFF:FOW_OFF + INTERMEDIATE, 0:HIDDEN].set(
            nrm(lk[5], (INTERMEDIATE, HIDDEN)))
        # all biases zero; LayerNorm gammas = 1
        layers = layers.at[l, LN1G_OFF, 0:HIDDEN].set(1.0)
        layers = layers.at[l, LN2G_OFF, 0:HIDDEN].set(1.0)

    return {"misc_slab": misc, "layer_slab": layers}


if __name__ == "__main__":
    key = jax.random.PRNGKey(0)
    pkey, ikey = jax.random.split(key)
    params = init_params(pkey)

    B, S = 2, 8
    input_ids = jax.random.randint(ikey, (B, S), 0, VOCAB, dtype=jnp.int32)
    attention_mask = jnp.array(
        [[1, 1, 1, 1, 1, 1, 1, 1],
         [1, 1, 1, 1, 1, 1, 0, 0]], dtype=jnp.int32)

    logits = custom_bert_forward(params, input_ids, attention_mask)
    jax.block_until_ready(logits)
    assert logits.shape == (B, N_CLASSES)
    print("KERNEL_OK")
</pallas_src>

<mosaic_0001>
module attributes {stable_mosaic.version = 11 : i64} {
  func.func @_bert_fused_kernel(%arg0: memref<16x1xi32, #tpu.memory_space<vmem>>, %arg1: memref<2x8xf32, #tpu.memory_space<vmem>>, %arg2: memref<152x32xf32, #tpu.memory_space<vmem>>, %arg3: memref<2x224x96xf32, #tpu.memory_space<vmem>>, %arg4: memref<2x2xf32, #tpu.memory_space<vmem>>, %arg5: memref<16x32xf32, #tpu.memory_space<vmem>>) attributes {dimension_semantics = [], scalar_prefetch = 0 : i64, scratch_operands = 1 : i64, tpu.core_type = #tpu.core_type<tc>} {
    %c0 = arith.constant 0 : index
    %c0_0 = arith.constant 0 : index
    %0 = vector.load %arg0[%c0, %c0_0] : memref<16x1xi32, #tpu.memory_space<vmem>>, vector<16x1xi32>
    %1 = tpu.iota {dimensions = array<i32: 1>} : vector<16x30xi32>
    %2 = vector.broadcast %0 : vector<16x1xi32> to vector<16x30xi32>
    %3 = arith.cmpi eq, %1, %2 : vector<16x30xi32>
    %4 = arith.extui %3 : vector<16x30xi1> to vector<16x30xi32>
    %5 = arith.sitofp %4 : vector<16x30xi32> to vector<16x30xf32>
    %c0_1 = arith.constant 0 : index
    %c0_2 = arith.constant 0 : index
    %6 = vector.load %arg2[%c0_1, %c0_2] : memref<152x32xf32, #tpu.memory_space<vmem>>, vector<30x32xf32>
    %cst = arith.constant dense<0.000000e+00> : vector<16x32xf32>
    %7 = tpu.matmul %5, %6, %cst {dimension_numbers = #tpu.dot_dimension_numbers<[1], [0], [0], [1], [0, 0, 1, 1], [], []>} : vector<16x30xf32>, vector<30x32xf32>, vector<16x32xf32> -> vector<16x32xf32>
    %c32 = arith.constant 32 : index
    %c0_3 = arith.constant 0 : index
    %8 = vector.load %arg2[%c32, %c0_3] : memref<152x32xf32, #tpu.memory_space<vmem>>, vector<8x32xf32>
    %c48 = arith.constant 48 : index
    %c0_4 = arith.constant 0 : index
    %9 = vector.load %arg2[%c48, %c0_4] : memref<152x32xf32, #tpu.memory_space<vmem>>, vector<1x32xf32>
    %10 = vector.shape_cast %7 : vector<16x32xf32> to vector<2x8x32xf32>
    %11 = vector.shape_cast %8 : vector<8x32xf32> to vector<1x8x32xf32>
    %12 = vector.broadcast %11 : vector<1x8x32xf32> to vector<2x8x32xf32>
    %13 = arith.addf %10, %12 : vector<2x8x32xf32>
    %14 = vector.shape_cast %9 : vector<1x32xf32> to vector<1x1x32xf32>
    %15 = vector.broadcast %14 : vector<1x1x32xf32> to vector<2x8x32xf32>
    %16 = arith.addf %13, %15 : vector<2x8x32xf32>
    %17 = vector.shape_cast %16 : vector<2x8x32xf32> to vector<16x32xf32>
    %c56 = arith.constant 56 : index
    %c0_5 = arith.constant 0 : index
    %18 = vector.load %arg2[%c56, %c0_5] : memref<152x32xf32, #tpu.memory_space<vmem>>, vector<1x32xf32>
    %c64 = arith.constant 64 : index
    %c0_6 = arith.constant 0 : index
    %19 = vector.load %arg2[%c64, %c0_6] : memref<152x32xf32, #tpu.memory_space<vmem>>, vector<1x32xf32>
    %cst_7 = arith.constant dense<0.000000e+00> : vector<16xf32>
    %20 = vector.multi_reduction <add>, %17, %cst_7 [1] : vector<16x32xf32> to vector<16xf32>
    %21 = vector.shape_cast %20 : vector<16xf32> to vector<16x1xf32>
    %cst_8 = arith.constant 3.200000e+01 : f32
    %22 = vector.broadcast %cst_8 : f32 to vector<16x1xf32>
    %23 = arith.divf %21, %22 : vector<16x1xf32>
    %24 = vector.broadcast %23 : vector<16x1xf32> to vector<16x32xf32>
    %25 = arith.subf %17, %24 : vector<16x32xf32>
    %26 = arith.mulf %25, %25 : vector<16x32xf32>
    %cst_9 = arith.constant dense<0.000000e+00> : vector<16xf32>
    %27 = vector.multi_reduction <add>, %26, %cst_9 [1] : vector<16x32xf32> to vector<16xf32>
    %28 = vector.shape_cast %27 : vector<16xf32> to vector<16x1xf32>
    %cst_10 = arith.constant 3.200000e+01 : f32
    %29 = vector.broadcast %cst_10 : f32 to vector<16x1xf32>
    %30 = arith.divf %28, %29 : vector<16x1xf32>
    %31 = vector.broadcast %23 : vector<16x1xf32> to vector<16x32xf32>
    %32 = arith.subf %17, %31 : vector<16x32xf32>
    %cst_11 = arith.constant 9.99999996E-13 : f32
    %33 = vector.broadcast %cst_11 : f32 to vector<16x1xf32>
    %34 = arith.addf %30, %33 : vector<16x1xf32>
    %35 = math.rsqrt %34 : vector<16x1xf32>
    %36 = vector.broadcast %35 : vector<16x1xf32> to vector<16x32xf32>
    %37 = arith.mulf %32, %36 : vector<16x32xf32>
    %38 = vector.broadcast %18 : vector<1x32xf32> to vector<16x32xf32>
    %39 = arith.mulf %37, %38 : vector<16x32xf32>
    %40 = vector.broadcast %19 : vector<1x32xf32> to vector<16x32xf32>
    %41 = arith.addf %39, %40 : vector<16x32xf32>
    %c0_12 = arith.constant 0 : index
    %c0_13 = arith.constant 0 : index
    %42 = vector.load %arg1[%c0_12, %c0_13] : memref<2x8xf32, #tpu.memory_space<vmem>>, vector<2x8xf32>
    %cst_14 = arith.constant 1.000000e+00 : f32
    %43 = vector.broadcast %cst_14 : f32 to vector<2x8xf32>
    %44 = arith.subf %43, %42 : vector<2x8xf32>
    %cst_15 = arith.constant -1.000000e+04 : f32
    %45 = vector.broadcast %cst_15 : f32 to vector<2x8xf32>
    %46 = arith.mulf %44, %45 : vector<2x8xf32>
    %c0_16 = arith.constant 0 : index
    %c0_17 = arith.constant 0 : index
    %c0_18 = arith.constant 0 : index
    %47 = vector.load %arg3[%c0_16, %c0_17, %c0_18] : memref<2x224x96xf32, #tpu.memory_space<vmem>>, vector<1x32x96xf32>
    %48 = vector.shape_cast %47 : vector<1x32x96xf32> to vector<32x96xf32>
    %cst_19 = arith.constant dense<0.000000e+00> : vector<16x96xf32>
    %49 = tpu.matmul %41, %48, %cst_19 {dimension_numbers = #tpu.dot_dimension_numbers<[1], [0], [0], [1], [0, 0, 1, 1], [], []>} : vector<16x32xf32>, vector<32x96xf32>, vector<16x96xf32> -> vector<16x96xf32>
    %c0_20 = arith.constant 0 : index
    %c160 = arith.constant 160 : index
    %c0_21 = arith.constant 0 : index
    %50 = vector.load %arg3[%c0_20, %c160, %c0_21] : memref<2x224x96xf32, #tpu.memory_space<vmem>>, vector<1x1x96xf32>
    %51 = vector.shape_cast %50 : vector<1x1x96xf32> to vector<1x96xf32>
    %52 = vector.broadcast %51 : vector<1x96xf32> to vector<16x96xf32>
    %53 = arith.addf %49, %52 : vector<16x96xf32>
    %54 = vector.extract_strided_slice %53 {offsets = [0, 0], sizes = [16, 8], strides = [1, 1]} : vector<16x96xf32> to vector<16x8xf32>
    %55 = vector.shape_cast %54 : vector<16x8xf32> to vector<2x8x8xf32>
    %56 = vector.extract_strided_slice %53 {offsets = [0, 32], sizes = [16, 8], strides = [1, 1]} : vector<16x96xf32> to vector<16x8xf32>
    %57 = vector.shape_cast %56 : vector<16x8xf32> to vector<2x8x8xf32>
    %58 = vector.extract_strided_slice %53 {offsets = [0, 64], sizes = [16, 8], strides = [1, 1]} : vector<16x96xf32> to vector<16x8xf32>
    %59 = vector.shape_cast %58 : vector<16x8xf32> to vector<2x8x8xf32>
    "tpu.trace_start"() <{level = 10 : i32, message = "bqd,bkd->bqk"}> : () -> ()
    %cst_22 = arith.constant dense<0.000000e+00> : vector<2x8x8xf32>
    %60 = tpu.matmul %55, %57, %cst_22 {dimension_numbers = #tpu.dot_dimension_numbers<[2], [2], [1], [1], [0, 0, 0, 1, 1, 1], [0], [0]>} : vector<2x8x8xf32>, vector<2x8x8xf32>, vector<2x8x8xf32> -> vector<2x8x8xf32>
    "tpu.trace_stop"() : () -> ()
    %cst_23 = arith.constant 0.353553385 : f32
    %61 = vector.broadcast %cst_23 : f32 to vector<2x8x8xf32>
    %62 = arith.mulf %60, %61 : vector<2x8x8xf32>
    %63 = vector.shape_cast %46 : vector<2x8xf32> to vector<2x1x8xf32>
    %64 = vector.broadcast %63 : vector<2x1x8xf32> to vector<2x8x8xf32>
    %65 = arith.addf %62, %64 : vector<2x8x8xf32>
    %cst_24 = arith.constant dense<0xFF800000> : vector<2x8xf32>
    %66 = vector.multi_reduction <maximumf>, %65, %cst_24 [2] : vector<2x8x8xf32> to vector<2x8xf32>
    %67 = vector.shape_cast %66 : vector<2x8xf32> to vector<2x8x1xf32>
    %68 = vector.broadcast %67 : vector<2x8x1xf32> to vector<2x8x8xf32>
    %69 = arith.subf %65, %68 : vector<2x8x8xf32>
    %70 = math.exp %69 : vector<2x8x8xf32>
    %cst_25 = arith.constant dense<0.000000e+00> : vector<2x8xf32>
    %71 = vector.multi_reduction <add>, %70, %cst_25 [2] : vector<2x8x8xf32> to vector<2x8xf32>
    %72 = vector.shape_cast %71 : vector<2x8xf32> to vector<2x8x1xf32>
    %73 = vector.broadcast %72 : vector<2x8x1xf32> to vector<2x8x8xf32>
    %74 = arith.divf %70, %73 : vector<2x8x8xf32>
    "tpu.trace_start"() <{level = 10 : i32, message = "bqk,bkd->bqd"}> : () -> ()
    %cst_26 = arith.constant dense<0.000000e+00> : vector<2x8x8xf32>
    %75 = tpu.matmul %74, %59, %cst_26 {dimension_numbers = #tpu.dot_dimension_numbers<[2], [1], [1], [2], [0, 0, 0, 1, 1, 2], [0], [0]>} : vector<2x8x8xf32>, vector<2x8x8xf32>, vector<2x8x8xf32> -> vector<2x8x8xf32>
    "tpu.trace_stop"() : () -> ()
    %76 = vector.shape_cast %75 : vector<2x8x8xf32> to vector<16x8xf32>
    %c0_27 = arith.constant 0 : index
    %c0_28 = arith.constant 0 : index
    %77 = vector.load %arg5[%c0_27, %c0_28] : memref<16x32xf32, #tpu.memory_space<vmem>>, vector<16x8xf32>
    tpu.vector_store %arg5[%c0_27, %c0_28], %76 {strides = array<i32>} : memref<16x32xf32, #tpu.memory_space<vmem>>, vector<16x8xf32>,
    %78 = vector.extract_strided_slice %53 {offsets = [0, 8], sizes = [16, 8], strides = [1, 1]} : vector<16x96xf32> to vector<16x8xf32>
    %79 = vector.shape_cast %78 : vector<16x8xf32> to vector<2x8x8xf32>
    %80 = vector.extract_strided_slice %53 {offsets = [0, 40], sizes = [16, 8], strides = [1, 1]} : vector<16x96xf32> to vector<16x8xf32>
    %81 = vector.shape_cast %80 : vector<16x8xf32> to vector<2x8x8xf32>
    %82 = vector.extract_strided_slice %53 {offsets = [0, 72], sizes = [16, 8], strides = [1, 1]} : vector<16x96xf32> to vector<16x8xf32>
    %83 = vector.shape_cast %82 : vector<16x8xf32> to vector<2x8x8xf32>
    "tpu.trace_start"() <{level = 10 : i32, message = "bqd,bkd->bqk"}> : () -> ()
    %cst_29 = arith.constant dense<0.000000e+00> : vector<2x8x8xf32>
    %84 = tpu.matmul %79, %81, %cst_29 {dimension_numbers = #tpu.dot_dimension_numbers<[2], [2], [1], [1], [0, 0, 0, 1, 1, 1], [0], [0]>} : vector<2x8x8xf32>, vector<2x8x8xf32>, vector<2x8x8xf32> -> vector<2x8x8xf32>
    "tpu.trace_stop"() : () -> ()
    %cst_30 = arith.constant 0.353553385 : f32
    %85 = vector.broadcast %cst_30 : f32 to vector<2x8x8xf32>
    %86 = arith.mulf %84, %85 : vector<2x8x8xf32>
    %87 = vector.shape_cast %46 : vector<2x8xf32> to vector<2x1x8xf32>
    %88 = vector.broadcast %87 : vector<2x1x8xf32> to vector<2x8x8xf32>
    %89 = arith.addf %86, %88 : vector<2x8x8xf32>
    %cst_31 = arith.constant dense<0xFF800000> : vector<2x8xf32>
    %90 = vector.multi_reduction <maximumf>, %89, %cst_31 [2] : vector<2x8x8xf32> to vector<2x8xf32>
    %91 = vector.shape_cast %90 : vector<2x8xf32> to vector<2x8x1xf32>
    %92 = vector.broadcast %91 : vector<2x8x1xf32> to vector<2x8x8xf32>
    %93 = arith.subf %89, %92 : vector<2x8x8xf32>
    %94 = math.exp %93 : vector<2x8x8xf32>
    %cst_32 = arith.constant dense<0.000000e+00> : vector<2x8xf32>
    %95 = vector.multi_reduction <add>, %94, %cst_32 [2] : vector<2x8x8xf32> to vector<2x8xf32>
    %96 = vector.shape_cast %95 : vector<2x8xf32> to vector<2x8x1xf32>
    %97 = vector.broadcast %96 : vector<2x8x1xf32> to vector<2x8x8xf32>
    %98 = arith.divf %94, %97 : vector<2x8x8xf32>
    "tpu.trace_start"() <{level = 10 : i32, message = "bqk,bkd->bqd"}> : () -> ()
    %cst_33 = arith.constant dense<0.000000e+00> : vector<2x8x8xf32>
    %99 = tpu.matmul %98, %83, %cst_33 {dimension_numbers = #tpu.dot_dimension_numbers<[2], [1], [1], [2], [0, 0, 0, 1, 1, 2], [0], [0]>} : vector<2x8x8xf32>, vector<2x8x8xf32>, vector<2x8x8xf32> -> vector<2x8x8xf32>
    "tpu.trace_stop"() : () -> ()
    %100 = vector.shape_cast %99 : vector<2x8x8xf32> to vector<16x8xf32>
    %c0_34 = arith.constant 0 : index
    %c8 = arith.constant 8 : index
    %101 = vector.load %arg5[%c0_34, %c8] : memref<16x32xf32, #tpu.memory_space<vmem>>, vector<16x8xf32>
    tpu.vector_store %arg5[%c0_34, %c8], %100 {strides = array<i32>} : memref<16x32xf32, #tpu.memory_space<vmem>>, vector<16x8xf32>,
    %102 = vector.extract_strided_slice %53 {offsets = [0, 16], sizes = [16, 8], strides = [1, 1]} : vector<16x96xf32> to vector<16x8xf32>
    %103 = vector.shape_cast %102 : vector<16x8xf32> to vector<2x8x8xf32>
    %104 = vector.extract_strided_slice %53 {offsets = [0, 48], sizes = [16, 8], strides = [1, 1]} : vector<16x96xf32> to vector<16x8xf32>
    %105 = vector.shape_cast %104 : vector<16x8xf32> to vector<2x8x8xf32>
    %106 = vector.extract_strided_slice %53 {offsets = [0, 80], sizes = [16, 8], strides = [1, 1]} : vector<16x96xf32> to vector<16x8xf32>
    %107 = vector.shape_cast %106 : vector<16x8xf32> to vector<2x8x8xf32>
    "tpu.trace_start"() <{level = 10 : i32, message = "bqd,bkd->bqk"}> : () -> ()
    %cst_35 = arith.constant dense<0.000000e+00> : vector<2x8x8xf32>
    %108 = tpu.matmul %103, %105, %cst_35 {dimension_numbers = #tpu.dot_dimension_numbers<[2], [2], [1], [1], [0, 0, 0, 1, 1, 1], [0], [0]>} : vector<2x8x8xf32>, vector<2x8x8xf32>, vector<2x8x8xf32> -> vector<2x8x8xf32>
    "tpu.trace_stop"() : () -> ()
    %cst_36 = arith.constant 0.353553385 : f32
    %109 = vector.broadcast %cst_36 : f32 to vector<2x8x8xf32>
    %110 = arith.mulf %108, %109 : vector<2x8x8xf32>
    %111 = vector.shape_cast %46 : vector<2x8xf32> to vector<2x1x8xf32>
    %112 = vector.broadcast %111 : vector<2x1x8xf32> to vector<2x8x8xf32>
    %113 = arith.addf %110, %112 : vector<2x8x8xf32>
    %cst_37 = arith.constant dense<0xFF800000> : vector<2x8xf32>
    %114 = vector.multi_reduction <maximumf>, %113, %cst_37 [2] : vector<2x8x8xf32> to vector<2x8xf32>
    %115 = vector.shape_cast %114 : vector<2x8xf32> to vector<2x8x1xf32>
    %116 = vector.broadcast %115 : vector<2x8x1xf32> to vector<2x8x8xf32>
    %117 = arith.subf %113, %116 : vector<2x8x8xf32>
    %118 = math.exp %117 : vector<2x8x8xf32>
    %cst_38 = arith.constant dense<0.000000e+00> : vector<2x8xf32>
    %119 = vector.multi_reduction <add>, %118, %cst_38 [2] : vector<2x8x8xf32> to vector<2x8xf32>
    %120 = vector.shape_cast %119 : vector<2x8xf32> to vector<2x8x1xf32>
    %121 = vector.broadcast %120 : vector<2x8x1xf32> to vector<2x8x8xf32>
    %122 = arith.divf %118, %121 : vector<2x8x8xf32>
    "tpu.trace_start"() <{level = 10 : i32, message = "bqk,bkd->bqd"}> : () -> ()
    %cst_39 = arith.constant dense<0.000000e+00> : vector<2x8x8xf32>
    %123 = tpu.matmul %122, %107, %cst_39 {dimension_numbers = #tpu.dot_dimension_numbers<[2], [1], [1], [2], [0, 0, 0, 1, 1, 2], [0], [0]>} : vector<2x8x8xf32>, vector<2x8x8xf32>, vector<2x8x8xf32> -> vector<2x8x8xf32>
    "tpu.trace_stop"() : () -> ()
    %124 = vector.shape_cast %123 : vector<2x8x8xf32> to vector<16x8xf32>
    %c0_40 = arith.constant 0 : index
    %c16 = arith.constant 16 : index
    %125 = vector.load %arg5[%c0_40, %c16] : memref<16x32xf32, #tpu.memory_space<vmem>>, vector<16x8xf32>
    tpu.vector_store %arg5[%c0_40, %c16], %124 {strides = array<i32>} : memref<16x32xf32, #tpu.memory_space<vmem>>, vector<16x8xf32>,
    %126 = vector.extract_strided_slice %53 {offsets = [0, 24], sizes = [16, 8], strides = [1, 1]} : vector<16x96xf32> to vector<16x8xf32>
    %127 = vector.shape_cast %126 : vector<16x8xf32> to vector<2x8x8xf32>
    %128 = vector.extract_strided_slice %53 {offsets = [0, 56], sizes = [16, 8], strides = [1, 1]} : vector<16x96xf32> to vector<16x8xf32>
    %129 = vector.shape_cast %128 : vector<16x8xf32> to vector<2x8x8xf32>
    %130 = vector.extract_strided_slice %53 {offsets = [0, 88], sizes = [16, 8], strides = [1, 1]} : vector<16x96xf32> to vector<16x8xf32>
    %131 = vector.shape_cast %130 : vector<16x8xf32> to vector<2x8x8xf32>
    "tpu.trace_start"() <{level = 10 : i32, message = "bqd,bkd->bqk"}> : () -> ()
    %cst_41 = arith.constant dense<0.000000e+00> : vector<2x8x8xf32>
    %132 = tpu.matmul %127, %129, %cst_41 {dimension_numbers = #tpu.dot_dimension_numbers<[2], [2], [1], [1], [0, 0, 0, 1, 1, 1], [0], [0]>} : vector<2x8x8xf32>, vector<2x8x8xf32>, vector<2x8x8xf32> -> vector<2x8x8xf32>
    "tpu.trace_stop"() : () -> ()
    %cst_42 = arith.constant 0.353553385 : f32
    %133 = vector.broadcast %cst_42 : f32 to vector<2x8x8xf32>
    %134 = arith.mulf %132, %133 : vector<2x8x8xf32>
    %135 = vector.shape_cast %46 : vector<2x8xf32> to vector<2x1x8xf32>
    %136 = vector.broadcast %135 : vector<2x1x8xf32> to vector<2x8x8xf32>
    %137 = arith.addf %134, %136 : vector<2x8x8xf32>
    %cst_43 = arith.constant dense<0xFF800000> : vector<2x8xf32>
    %138 = vector.multi_reduction <maximumf>, %137, %cst_43 [2] : vector<2x8x8xf32> to vector<2x8xf32>
    %139 = vector.shape_cast %138 : vector<2x8xf32> to vector<2x8x1xf32>
    %140 = vector.broadcast %139 : vector<2x8x1xf32> to vector<2x8x8xf32>
    %141 = arith.subf %137, %140 : vector<2x8x8xf32>
    %142 = math.exp %141 : vector<2x8x8xf32>
    %cst_44 = arith.constant dense<0.000000e+00> : vector<2x8xf32>
    %143 = vector.multi_reduction <add>, %142, %cst_44 [2] : vector<2x8x8xf32> to vector<2x8xf32>
    %144 = vector.shape_cast %143 : vector<2x8xf32> to vector<2x8x1xf32>
    %145 = vector.broadcast %144 : vector<2x8x1xf32> to vector<2x8x8xf32>
    %146 = arith.divf %142, %145 : vector<2x8x8xf32>
    "tpu.trace_start"() <{level = 10 : i32, message = "bqk,bkd->bqd"}> : () -> ()
    %cst_45 = arith.constant dense<0.000000e+00> : vector<2x8x8xf32>
    %147 = tpu.matmul %146, %131, %cst_45 {dimension_numbers = #tpu.dot_dimension_numbers<[2], [1], [1], [2], [0, 0, 0, 1, 1, 2], [0], [0]>} : vector<2x8x8xf32>, vector<2x8x8xf32>, vector<2x8x8xf32> -> vector<2x8x8xf32>
    "tpu.trace_stop"() : () -> ()
    %148 = vector.shape_cast %147 : vector<2x8x8xf32> to vector<16x8xf32>
    %c0_46 = arith.constant 0 : index
    %c24 = arith.constant 24 : index
    %149 = vector.load %arg5[%c0_46, %c24] : memref<16x32xf32, #tpu.memory_space<vmem>>, vector<16x8xf32>
    tpu.vector_store %arg5[%c0_46, %c24], %148 {strides = array<i32>} : memref<16x32xf32, #tpu.memory_space<vmem>>, vector<16x8xf32>,
    %c0_47 = arith.constant 0 : index
    %c0_48 = arith.constant 0 : index
    %150 = vector.load %arg5[%c0_47, %c0_48] : memref<16x32xf32, #tpu.memory_space<vmem>>, vector<16x32xf32>
    %c0_49 = arith.constant 0 : index
    %c32_50 = arith.constant 32 : index
    %c0_51 = arith.constant 0 : index
    %151 = vector.load %arg3[%c0_49, %c32_50, %c0_51] : memref<2x224x96xf32, #tpu.memory_space<vmem>>, vector<1x32x32xf32>
    %152 = vector.shape_cast %151 : vector<1x32x32xf32> to vector<32x32xf32>
    %cst_52 = arith.constant dense<0.000000e+00> : vector<16x32xf32>
    %153 = tpu.matmul %150, %152, %cst_52 {dimension_numbers = #tpu.dot_dimension_numbers<[1], [0], [0], [1], [0, 0, 1, 1], [], []>} : vector<16x32xf32>, vector<32x32xf32>, vector<16x32xf32> -> vector<16x32xf32>
    %c0_53 = arith.constant 0 : index
    %c168 = arith.constant 168 : index
    %c0_54 = arith.constant 0 : index
    %154 = vector.load %arg3[%c0_53, %c168, %c0_54] : memref<2x224x96xf32, #tpu.memory_space<vmem>>, vector<1x1x32xf32>
    %155 = vector.shape_cast %154 : vector<1x1x32xf32> to vector<1x32xf32>
    %156 = vector.broadcast %155 : vector<1x32xf32> to vector<16x32xf32>
    %157 = arith.addf %153, %156 : vector<16x32xf32>
    %158 = arith.addf %157, %41 : vector<16x32xf32>
    %c0_55 = arith.constant 0 : index
    %c176 = arith.constant 176 : index
    %c0_56 = arith.constant 0 : index
    %159 = vector.load %arg3[%c0_55, %c176, %c0_56] : memref<2x224x96xf32, #tpu.memory_space<vmem>>, vector<1x1x32xf32>
    %160 = vector.shape_cast %159 : vector<1x1x32xf32> to vector<1x32xf32>
    %c0_57 = arith.constant 0 : index
    %c184 = arith.constant 184 : index
    %c0_58 = arith.constant 0 : index
    %161 = vector.load %arg3[%c0_57, %c184, %c0_58] : memref<2x224x96xf32, #tpu.memory_space<vmem>>, vector<1x1x32xf32>
    %162 = vector.shape_cast %161 : vector<1x1x32xf32> to vector<1x32xf32>
    %cst_59 = arith.constant dense<0.000000e+00> : vector<16xf32>
    %163 = vector.multi_reduction <add>, %158, %cst_59 [1] : vector<16x32xf32> to vector<16xf32>
    %164 = vector.shape_cast %163 : vector<16xf32> to vector<16x1xf32>
    %cst_60 = arith.constant 3.200000e+01 : f32
    %165 = vector.broadcast %cst_60 : f32 to vector<16x1xf32>
    %166 = arith.divf %164, %165 : vector<16x1xf32>
    %167 = vector.broadcast %166 : vector<16x1xf32> to vector<16x32xf32>
    %168 = arith.subf %158, %167 : vector<16x32xf32>
    %169 = arith.mulf %168, %168 : vector<16x32xf32>
    %cst_61 = arith.constant dense<0.000000e+00> : vector<16xf32>
    %170 = vector.multi_reduction <add>, %169, %cst_61 [1] : vector<16x32xf32> to vector<16xf32>
    %171 = vector.shape_cast %170 : vector<16xf32> to vector<16x1xf32>
    %cst_62 = arith.constant 3.200000e+01 : f32
    %172 = vector.broadcast %cst_62 : f32 to vector<16x1xf32>
    %173 = arith.divf %171, %172 : vector<16x1xf32>
    %174 = vector.broadcast %166 : vector<16x1xf32> to vector<16x32xf32>
    %175 = arith.subf %158, %174 : vector<16x32xf32>
    %cst_63 = arith.constant 9.99999996E-13 : f32
    %176 = vector.broadcast %cst_63 : f32 to vector<16x1xf32>
    %177 = arith.addf %173, %176 : vector<16x1xf32>
    %178 = math.rsqrt %177 : vector<16x1xf32>
    %179 = vector.broadcast %178 : vector<16x1xf32> to vector<16x32xf32>
    %180 = arith.mulf %175, %179 : vector<16x32xf32>
    %181 = vector.broadcast %160 : vector<1x32xf32> to vector<16x32xf32>
    %182 = arith.mulf %180, %181 : vector<16x32xf32>
    %183 = vector.broadcast %162 : vector<1x32xf32> to vector<16x32xf32>
    %184 = arith.addf %182, %183 : vector<16x32xf32>
    %c0_64 = arith.constant 0 : index
    %c64_65 = arith.constant 64 : index
    %c0_66 = arith.constant 0 : index
    %185 = vector.load %arg3[%c0_64, %c64_65, %c0_66] : memref<2x224x96xf32, #tpu.memory_space<vmem>>, vector<1x32x64xf32>
    %186 = vector.shape_cast %185 : vector<1x32x64xf32> to vector<32x64xf32>
    %cst_67 = arith.constant dense<0.000000e+00> : vector<16x64xf32>
    %187 = tpu.matmul %184, %186, %cst_67 {dimension_numbers = #tpu.dot_dimension_numbers<[1], [0], [0], [1], [0, 0, 1, 1], [], []>} : vector<16x32xf32>, vector<32x64xf32>, vector<16x64xf32> -> vector<16x64xf32>
    %c0_68 = arith.constant 0 : index
    %c192 = arith.constant 192 : index
    %c0_69 = arith.constant 0 : index
    %188 = vector.load %arg3[%c0_68, %c192, %c0_69] : memref<2x224x96xf32, #tpu.memory_space<vmem>>, vector<1x1x64xf32>
    %189 = vector.shape_cast %188 : vector<1x1x64xf32> to vector<1x64xf32>
    %190 = vector.broadcast %189 : vector<1x64xf32> to vector<16x64xf32>
    %191 = arith.addf %187, %190 : vector<16x64xf32>
    %cst_70 = arith.constant 5.000000e-01 : f32
    %192 = vector.broadcast %cst_70 : f32 to vector<16x64xf32>
    %193 = arith.mulf %192, %191 : vector<16x64xf32>
    %cst_71 = arith.constant 0.707106769 : f32
    %194 = vector.broadcast %cst_71 : f32 to vector<16x64xf32>
    %195 = arith.mulf %191, %194 : vector<16x64xf32>
    %196 = math.erf %195 : vector<16x64xf32>
    %cst_72 = arith.constant 1.000000e+00 : f32
    %197 = vector.broadcast %cst_72 : f32 to vector<16x64xf32>
    %198 = arith.addf %197, %196 : vector<16x64xf32>
    %199 = arith.mulf %193, %198 : vector<16x64xf32>
    %c0_73 = arith.constant 0 : index
    %c96 = arith.constant 96 : index
    %c0_74 = arith.constant 0 : index
    %200 = vector.load %arg3[%c0_73, %c96, %c0_74] : memref<2x224x96xf32, #tpu.memory_space<vmem>>, vector<1x64x32xf32>
    %201 = vector.shape_cast %200 : vector<1x64x32xf32> to vector<64x32xf32>
    %cst_75 = arith.constant dense<0.000000e+00> : vector<16x32xf32>
    %202 = tpu.matmul %199, %201, %cst_75 {dimension_numbers = #tpu.dot_dimension_numbers<[1], [0], [0], [1], [0, 0, 1, 1], [], []>} : vector<16x64xf32>, vector<64x32xf32>, vector<16x32xf32> -> vector<16x32xf32>
    %c0_76 = arith.constant 0 : index
    %c200 = arith.constant 200 : index
    %c0_77 = arith.constant 0 : index
    %203 = vector.load %arg3[%c0_76, %c200, %c0_77] : memref<2x224x96xf32, #tpu.memory_space<vmem>>, vector<1x1x32xf32>
    %204 = vector.shape_cast %203 : vector<1x1x32xf32> to vector<1x32xf32>
    %205 = vector.broadcast %204 : vector<1x32xf32> to vector<16x32xf32>
    %206 = arith.addf %202, %205 : vector<16x32xf32>
    %207 = arith.addf %206, %184 : vector<16x32xf32>
    %c0_78 = arith.constant 0 : index
    %c208 = arith.constant 208 : index
    %c0_79 = arith.constant 0 : index
    %208 = vector.load %arg3[%c0_78, %c208, %c0_79] : memref<2x224x96xf32, #tpu.memory_space<vmem>>, vector<1x1x32xf32>
    %209 = vector.shape_cast %208 : vector<1x1x32xf32> to vector<1x32xf32>
    %c0_80 = arith.constant 0 : index
    %c216 = arith.constant 216 : index
    %c0_81 = arith.constant 0 : index
    %210 = vector.load %arg3[%c0_80, %c216, %c0_81] : memref<2x224x96xf32, #tpu.memory_space<vmem>>, vector<1x1x32xf32>
    %211 = vector.shape_cast %210 : vector<1x1x32xf32> to vector<1x32xf32>
    %cst_82 = arith.constant dense<0.000000e+00> : vector<16xf32>
    %212 = vector.multi_reduction <add>, %207, %cst_82 [1] : vector<16x32xf32> to vector<16xf32>
    %213 = vector.shape_cast %212 : vector<16xf32> to vector<16x1xf32>
    %cst_83 = arith.constant 3.200000e+01 : f32
    %214 = vector.broadcast %cst_83 : f32 to vector<16x1xf32>
    %215 = arith.divf %213, %214 : vector<16x1xf32>
    %216 = vector.broadcast %215 : vector<16x1xf32> to vector<16x32xf32>
    %217 = arith.subf %207, %216 : vector<16x32xf32>
    %218 = arith.mulf %217, %217 : vector<16x32xf32>
    %cst_84 = arith.constant dense<0.000000e+00> : vector<16xf32>
    %219 = vector.multi_reduction <add>, %218, %cst_84 [1] : vector<16x32xf32> to vector<16xf32>
    %220 = vector.shape_cast %219 : vector<16xf32> to vector<16x1xf32>
    %cst_85 = arith.constant 3.200000e+01 : f32
    %221 = vector.broadcast %cst_85 : f32 to vector<16x1xf32>
    %222 = arith.divf %220, %221 : vector<16x1xf32>
    %223 = vector.broadcast %215 : vector<16x1xf32> to vector<16x32xf32>
    %224 = arith.subf %207, %223 : vector<16x32xf32>
    %cst_86 = arith.constant 9.99999996E-13 : f32
    %225 = vector.broadcast %cst_86 : f32 to vector<16x1xf32>
    %226 = arith.addf %222, %225 : vector<16x1xf32>
    %227 = math.rsqrt %226 : vector<16x1xf32>
    %228 = vector.broadcast %227 : vector<16x1xf32> to vector<16x32xf32>
    %229 = arith.mulf %224, %228 : vector<16x32xf32>
    %230 = vector.broadcast %209 : vector<1x32xf32> to vector<16x32xf32>
    %231 = arith.mulf %229, %230 : vector<16x32xf32>
    %232 = vector.broadcast %211 : vector<1x32xf32> to vector<16x32xf32>
    %233 = arith.addf %231, %232 : vector<16x32xf32>
    %c1 = arith.constant 1 : index
    %c0_87 = arith.constant 0 : index
    %c0_88 = arith.constant 0 : index
    %234 = vector.load %arg3[%c1, %c0_87, %c0_88] : memref<2x224x96xf32, #tpu.memory_space<vmem>>, vector<1x32x96xf32>
    %235 = vector.shape_cast %234 : vector<1x32x96xf32> to vector<32x96xf32>
    %cst_89 = arith.constant dense<0.000000e+00> : vector<16x96xf32>
    %236 = tpu.matmul %233, %235, %cst_89 {dimension_numbers = #tpu.dot_dimension_numbers<[1], [0], [0], [1], [0, 0, 1, 1], [], []>} : vector<16x32xf32>, vector<32x96xf32>, vector<16x96xf32> -> vector<16x96xf32>
    %c1_90 = arith.constant 1 : index
    %c160_91 = arith.constant 160 : index
    %c0_92 = arith.constant 0 : index
    %237 = vector.load %arg3[%c1_90, %c160_91, %c0_92] : memref<2x224x96xf32, #tpu.memory_space<vmem>>, vector<1x1x96xf32>
    %238 = vector.shape_cast %237 : vector<1x1x96xf32> to vector<1x96xf32>
    %239 = vector.broadcast %238 : vector<1x96xf32> to vector<16x96xf32>
    %240 = arith.addf %236, %239 : vector<16x96xf32>
    %241 = vector.extract_strided_slice %240 {offsets = [0, 0], sizes = [16, 8], strides = [1, 1]} : vector<16x96xf32> to vector<16x8xf32>
    %242 = vector.shape_cast %241 : vector<16x8xf32> to vector<2x8x8xf32>
    %243 = vector.extract_strided_slice %240 {offsets = [0, 32], sizes = [16, 8], strides = [1, 1]} : vector<16x96xf32> to vector<16x8xf32>
    %244 = vector.shape_cast %243 : vector<16x8xf32> to vector<2x8x8xf32>
    %245 = vector.extract_strided_slice %240 {offsets = [0, 64], sizes = [16, 8], strides = [1, 1]} : vector<16x96xf32> to vector<16x8xf32>
    %246 = vector.shape_cast %245 : vector<16x8xf32> to vector<2x8x8xf32>
    "tpu.trace_start"() <{level = 10 : i32, message = "bqd,bkd->bqk"}> : () -> ()
    %cst_93 = arith.constant dense<0.000000e+00> : vector<2x8x8xf32>
    %247 = tpu.matmul %242, %244, %cst_93 {dimension_numbers = #tpu.dot_dimension_numbers<[2], [2], [1], [1], [0, 0, 0, 1, 1, 1], [0], [0]>} : vector<2x8x8xf32>, vector<2x8x8xf32>, vector<2x8x8xf32> -> vector<2x8x8xf32>
    "tpu.trace_stop"() : () -> ()
    %cst_94 = arith.constant 0.353553385 : f32
    %248 = vector.broadcast %cst_94 : f32 to vector<2x8x8xf32>
    %249 = arith.mulf %247, %248 : vector<2x8x8xf32>
    %250 = vector.shape_cast %46 : vector<2x8xf32> to vector<2x1x8xf32>
    %251 = vector.broadcast %250 : vector<2x1x8xf32> to vector<2x8x8xf32>
    %252 = arith.addf %249, %251 : vector<2x8x8xf32>
    %cst_95 = arith.constant dense<0xFF800000> : vector<2x8xf32>
    %253 = vector.multi_reduction <maximumf>, %252, %cst_95 [2] : vector<2x8x8xf32> to vector<2x8xf32>
    %254 = vector.shape_cast %253 : vector<2x8xf32> to vector<2x8x1xf32>
    %255 = vector.broadcast %254 : vector<2x8x1xf32> to vector<2x8x8xf32>
    %256 = arith.subf %252, %255 : vector<2x8x8xf32>
    %257 = math.exp %256 : vector<2x8x8xf32>
    %cst_96 = arith.constant dense<0.000000e+00> : vector<2x8xf32>
    %258 = vector.multi_reduction <add>, %257, %cst_96 [2] : vector<2x8x8xf32> to vector<2x8xf32>
    %259 = vector.shape_cast %258 : vector<2x8xf32> to vector<2x8x1xf32>
    %260 = vector.broadcast %259 : vector<2x8x1xf32> to vector<2x8x8xf32>
    %261 = arith.divf %257, %260 : vector<2x8x8xf32>
    "tpu.trace_start"() <{level = 10 : i32, message = "bqk,bkd->bqd"}> : () -> ()
    %cst_97 = arith.constant dense<0.000000e+00> : vector<2x8x8xf32>
    %262 = tpu.matmul %261, %246, %cst_97 {dimension_numbers = #tpu.dot_dimension_numbers<[2], [1], [1], [2], [0, 0, 0, 1, 1, 2], [0], [0]>} : vector<2x8x8xf32>, vector<2x8x8xf32>, vector<2x8x8xf32> -> vector<2x8x8xf32>
    "tpu.trace_stop"() : () -> ()
    %263 = vector.shape_cast %262 : vector<2x8x8xf32> to vector<16x8xf32>
    %c0_98 = arith.constant 0 : index
    %c0_99 = arith.constant 0 : index
    %264 = vector.load %arg5[%c0_98, %c0_99] : memref<16x32xf32, #tpu.memory_space<vmem>>, vector<16x8xf32>
    tpu.vector_store %arg5[%c0_98, %c0_99], %263 {strides = array<i32>} : memref<16x32xf32, #tpu.memory_space<vmem>>, vector<16x8xf32>,
    %265 = vector.extract_strided_slice %240 {offsets = [0, 8], sizes = [16, 8], strides = [1, 1]} : vector<16x96xf32> to vector<16x8xf32>
    %266 = vector.shape_cast %265 : vector<16x8xf32> to vector<2x8x8xf32>
    %267 = vector.extract_strided_slice %240 {offsets = [0, 40], sizes = [16, 8], strides = [1, 1]} : vector<16x96xf32> to vector<16x8xf32>
    %268 = vector.shape_cast %267 : vector<16x8xf32> to vector<2x8x8xf32>
    %269 = vector.extract_strided_slice %240 {offsets = [0, 72], sizes = [16, 8], strides = [1, 1]} : vector<16x96xf32> to vector<16x8xf32>
    %270 = vector.shape_cast %269 : vector<16x8xf32> to vector<2x8x8xf32>
    "tpu.trace_start"() <{level = 10 : i32, message = "bqd,bkd->bqk"}> : () -> ()
    %cst_100 = arith.constant dense<0.000000e+00> : vector<2x8x8xf32>
    %271 = tpu.matmul %266, %268, %cst_100 {dimension_numbers = #tpu.dot_dimension_numbers<[2], [2], [1], [1], [0, 0, 0, 1, 1, 1], [0], [0]>} : vector<2x8x8xf32>, vector<2x8x8xf32>, vector<2x8x8xf32> -> vector<2x8x8xf32>
    "tpu.trace_stop"() : () -> ()
    %cst_101 = arith.constant 0.353553385 : f32
    %272 = vector.broadcast %cst_101 : f32 to vector<2x8x8xf32>
    %273 = arith.mulf %271, %272 : vector<2x8x8xf32>
    %274 = vector.shape_cast %46 : vector<2x8xf32> to vector<2x1x8xf32>
    %275 = vector.broadcast %274 : vector<2x1x8xf32> to vector<2x8x8xf32>
    %276 = arith.addf %273, %275 : vector<2x8x8xf32>
    %cst_102 = arith.constant dense<0xFF800000> : vector<2x8xf32>
    %277 = vector.multi_reduction <maximumf>, %276, %cst_102 [2] : vector<2x8x8xf32> to vector<2x8xf32>
    %278 = vector.shape_cast %277 : vector<2x8xf32> to vector<2x8x1xf32>
    %279 = vector.broadcast %278 : vector<2x8x1xf32> to vector<2x8x8xf32>
    %280 = arith.subf %276, %279 : vector<2x8x8xf32>
    %281 = math.exp %280 : vector<2x8x8xf32>
    %cst_103 = arith.constant dense<0.000000e+00> : vector<2x8xf32>
    %282 = vector.multi_reduction <add>, %281, %cst_103 [2] : vector<2x8x8xf32> to vector<2x8xf32>
    %283 = vector.shape_cast %282 : vector<2x8xf32> to vector<2x8x1xf32>
    %284 = vector.broadcast %283 : vector<2x8x1xf32> to vector<2x8x8xf32>
    %285 = arith.divf %281, %284 : vector<2x8x8xf32>
    "tpu.trace_start"() <{level = 10 : i32, message = "bqk,bkd->bqd"}> : () -> ()
    %cst_104 = arith.constant dense<0.000000e+00> : vector<2x8x8xf32>
    %286 = tpu.matmul %285, %270, %cst_104 {dimension_numbers = #tpu.dot_dimension_numbers<[2], [1], [1], [2], [0, 0, 0, 1, 1, 2], [0], [0]>} : vector<2x8x8xf32>, vector<2x8x8xf32>, vector<2x8x8xf32> -> vector<2x8x8xf32>
    "tpu.trace_stop"() : () -> ()
    %287 = vector.shape_cast %286 : vector<2x8x8xf32> to vector<16x8xf32>
    %c0_105 = arith.constant 0 : index
    %c8_106 = arith.constant 8 : index
    %288 = vector.load %arg5[%c0_105, %c8_106] : memref<16x32xf32, #tpu.memory_space<vmem>>, vector<16x8xf32>
    tpu.vector_store %arg5[%c0_105, %c8_106], %287 {strides = array<i32>} : memref<16x32xf32, #tpu.memory_space<vmem>>, vector<16x8xf32>,
    %289 = vector.extract_strided_slice %240 {offsets = [0, 16], sizes = [16, 8], strides = [1, 1]} : vector<16x96xf32> to vector<16x8xf32>
    %290 = vector.shape_cast %289 : vector<16x8xf32> to vector<2x8x8xf32>
    %291 = vector.extract_strided_slice %240 {offsets = [0, 48], sizes = [16, 8], strides = [1, 1]} : vector<16x96xf32> to vector<16x8xf32>
    %292 = vector.shape_cast %291 : vector<16x8xf32> to vector<2x8x8xf32>
    %293 = vector.extract_strided_slice %240 {offsets = [0, 80], sizes = [16, 8], strides = [1, 1]} : vector<16x96xf32> to vector<16x8xf32>
    %294 = vector.shape_cast %293 : vector<16x8xf32> to vector<2x8x8xf32>
    "tpu.trace_start"() <{level = 10 : i32, message = "bqd,bkd->bqk"}> : () -> ()
    %cst_107 = arith.constant dense<0.000000e+00> : vector<2x8x8xf32>
    %295 = tpu.matmul %290, %292, %cst_107 {dimension_numbers = #tpu.dot_dimension_numbers<[2], [2], [1], [1], [0, 0, 0, 1, 1, 1], [0], [0]>} : vector<2x8x8xf32>, vector<2x8x8xf32>, vector<2x8x8xf32> -> vector<2x8x8xf32>
    "tpu.trace_stop"() : () -> ()
    %cst_108 = arith.constant 0.353553385 : f32
    %296 = vector.broadcast %cst_108 : f32 to vector<2x8x8xf32>
    %297 = arith.mulf %295, %296 : vector<2x8x8xf32>
    %298 = vector.shape_cast %46 : vector<2x8xf32> to vector<2x1x8xf32>
    %299 = vector.broadcast %298 : vector<2x1x8xf32> to vector<2x8x8xf32>
    %300 = arith.addf %297, %299 : vector<2x8x8xf32>
    %cst_109 = arith.constant dense<0xFF800000> : vector<2x8xf32>
    %301 = vector.multi_reduction <maximumf>, %300, %cst_109 [2] : vector<2x8x8xf32> to vector<2x8xf32>
    %302 = vector.shape_cast %301 : vector<2x8xf32> to vector<2x8x1xf32>
    %303 = vector.broadcast %302 : vector<2x8x1xf32> to vector<2x8x8xf32>
    %304 = arith.subf %300, %303 : vector<2x8x8xf32>
    %305 = math.exp %304 : vector<2x8x8xf32>
    %cst_110 = arith.constant dense<0.000000e+00> : vector<2x8xf32>
    %306 = vector.multi_reduction <add>, %305, %cst_110 [2] : vector<2x8x8xf32> to vector<2x8xf32>
    %307 = vector.shape_cast %306 : vector<2x8xf32> to vector<2x8x1xf32>
    %308 = vector.broadcast %307 : vector<2x8x1xf32> to vector<2x8x8xf32>
    %309 = arith.divf %305, %308 : vector<2x8x8xf32>
    "tpu.trace_start"() <{level = 10 : i32, message = "bqk,bkd->bqd"}> : () -> ()
    %cst_111 = arith.constant dense<0.000000e+00> : vector<2x8x8xf32>
    %310 = tpu.matmul %309, %294, %cst_111 {dimension_numbers = #tpu.dot_dimension_numbers<[2], [1], [1], [2], [0, 0, 0, 1, 1, 2], [0], [0]>} : vector<2x8x8xf32>, vector<2x8x8xf32>, vector<2x8x8xf32> -> vector<2x8x8xf32>
    "tpu.trace_stop"() : () -> ()
    %311 = vector.shape_cast %310 : vector<2x8x8xf32> to vector<16x8xf32>
    %c0_112 = arith.constant 0 : index
    %c16_113 = arith.constant 16 : index
    %312 = vector.load %arg5[%c0_112, %c16_113] : memref<16x32xf32, #tpu.memory_space<vmem>>, vector<16x8xf32>
    tpu.vector_store %arg5[%c0_112, %c16_113], %311 {strides = array<i32>} : memref<16x32xf32, #tpu.memory_space<vmem>>, vector<16x8xf32>,
    %313 = vector.extract_strided_slice %240 {offsets = [0, 24], sizes = [16, 8], strides = [1, 1]} : vector<16x96xf32> to vector<16x8xf32>
    %314 = vector.shape_cast %313 : vector<16x8xf32> to vector<2x8x8xf32>
    %315 = vector.extract_strided_slice %240 {offsets = [0, 56], sizes = [16, 8], strides = [1, 1]} : vector<16x96xf32> to vector<16x8xf32>
    %316 = vector.shape_cast %315 : vector<16x8xf32> to vector<2x8x8xf32>
    %317 = vector.extract_strided_slice %240 {offsets = [0, 88], sizes = [16, 8], strides = [1, 1]} : vector<16x96xf32> to vector<16x8xf32>
    %318 = vector.shape_cast %317 : vector<16x8xf32> to vector<2x8x8xf32>
    "tpu.trace_start"() <{level = 10 : i32, message = "bqd,bkd->bqk"}> : () -> ()
    %cst_114 = arith.constant dense<0.000000e+00> : vector<2x8x8xf32>
    %319 = tpu.matmul %314, %316, %cst_114 {dimension_numbers = #tpu.dot_dimension_numbers<[2], [2], [1], [1], [0, 0, 0, 1, 1, 1], [0], [0]>} : vector<2x8x8xf32>, vector<2x8x8xf32>, vector<2x8x8xf32> -> vector<2x8x8xf32>
    "tpu.trace_stop"() : () -> ()
    %cst_115 = arith.constant 0.353553385 : f32
    %320 = vector.broadcast %cst_115 : f32 to vector<2x8x8xf32>
    %321 = arith.mulf %319, %320 : vector<2x8x8xf32>
    %322 = vector.shape_cast %46 : vector<2x8xf32> to vector<2x1x8xf32>
    %323 = vector.broadcast %322 : vector<2x1x8xf32> to vector<2x8x8xf32>
    %324 = arith.addf %321, %323 : vector<2x8x8xf32>
    %cst_116 = arith.constant dense<0xFF800000> : vector<2x8xf32>
    %325 = vector.multi_reduction <maximumf>, %324, %cst_116 [2] : vector<2x8x8xf32> to vector<2x8xf32>
    %326 = vector.shape_cast %325 : vector<2x8xf32> to vector<2x8x1xf32>
    %327 = vector.broadcast %326 : vector<2x8x1xf32> to vector<2x8x8xf32>
    %328 = arith.subf %324, %327 : vector<2x8x8xf32>
    %329 = math.exp %328 : vector<2x8x8xf32>
    %cst_117 = arith.constant dense<0.000000e+00> : vector<2x8xf32>
    %330 = vector.multi_reduction <add>, %329, %cst_117 [2] : vector<2x8x8xf32> to vector<2x8xf32>
    %331 = vector.shape_cast %330 : vector<2x8xf32> to vector<2x8x1xf32>
    %332 = vector.broadcast %331 : vector<2x8x1xf32> to vector<2x8x8xf32>
    %333 = arith.divf %329, %332 : vector<2x8x8xf32>
    "tpu.trace_start"() <{level = 10 : i32, message = "bqk,bkd->bqd"}> : () -> ()
    %cst_118 = arith.constant dense<0.000000e+00> : vector<2x8x8xf32>
    %334 = tpu.matmul %333, %318, %cst_118 {dimension_numbers = #tpu.dot_dimension_numbers<[2], [1], [1], [2], [0, 0, 0, 1, 1, 2], [0], [0]>} : vector<2x8x8xf32>, vector<2x8x8xf32>, vector<2x8x8xf32> -> vector<2x8x8xf32>
    "tpu.trace_stop"() : () -> ()
    %335 = vector.shape_cast %334 : vector<2x8x8xf32> to vector<16x8xf32>
    %c0_119 = arith.constant 0 : index
    %c24_120 = arith.constant 24 : index
    %336 = vector.load %arg5[%c0_119, %c24_120] : memref<16x32xf32, #tpu.memory_space<vmem>>, vector<16x8xf32>
    tpu.vector_store %arg5[%c0_119, %c24_120], %335 {strides = array<i32>} : memref<16x32xf32, #tpu.memory_space<vmem>>, vector<16x8xf32>,
    %c0_121 = arith.constant 0 : index
    %c0_122 = arith.constant 0 : index
    %337 = vector.load %arg5[%c0_121, %c0_122] : memref<16x32xf32, #tpu.memory_space<vmem>>, vector<16x32xf32>
    %c1_123 = arith.constant 1 : index
    %c32_124 = arith.constant 32 : index
    %c0_125 = arith.constant 0 : index
    %338 = vector.load %arg3[%c1_123, %c32_124, %c0_125] : memref<2x224x96xf32, #tpu.memory_space<vmem>>, vector<1x32x32xf32>
    %339 = vector.shape_cast %338 : vector<1x32x32xf32> to vector<32x32xf32>
    %cst_126 = arith.constant dense<0.000000e+00> : vector<16x32xf32>
    %340 = tpu.matmul %337, %339, %cst_126 {dimension_numbers = #tpu.dot_dimension_numbers<[1], [0], [0], [1], [0, 0, 1, 1], [], []>} : vector<16x32xf32>, vector<32x32xf32>, vector<16x32xf32> -> vector<16x32xf32>
    %c1_127 = arith.constant 1 : index
    %c168_128 = arith.constant 168 : index
    %c0_129 = arith.constant 0 : index
    %341 = vector.load %arg3[%c1_127, %c168_128, %c0_129] : memref<2x224x96xf32, #tpu.memory_space<vmem>>, vector<1x1x32xf32>
    %342 = vector.shape_cast %341 : vector<1x1x32xf32> to vector<1x32xf32>
    %343 = vector.broadcast %342 : vector<1x32xf32> to vector<16x32xf32>
    %344 = arith.addf %340, %343 : vector<16x32xf32>
    %345 = arith.addf %344, %233 : vector<16x32xf32>
    %c1_130 = arith.constant 1 : index
    %c176_131 = arith.constant 176 : index
    %c0_132 = arith.constant 0 : index
    %346 = vector.load %arg3[%c1_130, %c176_131, %c0_132] : memref<2x224x96xf32, #tpu.memory_space<vmem>>, vector<1x1x32xf32>
    %347 = vector.shape_cast %346 : vector<1x1x32xf32> to vector<1x32xf32>
    %c1_133 = arith.constant 1 : index
    %c184_134 = arith.constant 184 : index
    %c0_135 = arith.constant 0 : index
    %348 = vector.load %arg3[%c1_133, %c184_134, %c0_135] : memref<2x224x96xf32, #tpu.memory_space<vmem>>, vector<1x1x32xf32>
    %349 = vector.shape_cast %348 : vector<1x1x32xf32> to vector<1x32xf32>
    %cst_136 = arith.constant dense<0.000000e+00> : vector<16xf32>
    %350 = vector.multi_reduction <add>, %345, %cst_136 [1] : vector<16x32xf32> to vector<16xf32>
    %351 = vector.shape_cast %350 : vector<16xf32> to vector<16x1xf32>
    %cst_137 = arith.constant 3.200000e+01 : f32
    %352 = vector.broadcast %cst_137 : f32 to vector<16x1xf32>
    %353 = arith.divf %351, %352 : vector<16x1xf32>
    %354 = vector.broadcast %353 : vector<16x1xf32> to vector<16x32xf32>
    %355 = arith.subf %345, %354 : vector<16x32xf32>
    %356 = arith.mulf %355, %355 : vector<16x32xf32>
    %cst_138 = arith.constant dense<0.000000e+00> : vector<16xf32>
    %357 = vector.multi_reduction <add>, %356, %cst_138 [1] : vector<16x32xf32> to vector<16xf32>
    %358 = vector.shape_cast %357 : vector<16xf32> to vector<16x1xf32>
    %cst_139 = arith.constant 3.200000e+01 : f32
    %359 = vector.broadcast %cst_139 : f32 to vector<16x1xf32>
    %360 = arith.divf %358, %359 : vector<16x1xf32>
    %361 = vector.broadcast %353 : vector<16x1xf32> to vector<16x32xf32>
    %362 = arith.subf %345, %361 : vector<16x32xf32>
    %cst_140 = arith.constant 9.99999996E-13 : f32
    %363 = vector.broadcast %cst_140 : f32 to vector<16x1xf32>
    %364 = arith.addf %360, %363 : vector<16x1xf32>
    %365 = math.rsqrt %364 : vector<16x1xf32>
    %366 = vector.broadcast %365 : vector<16x1xf32> to vector<16x32xf32>
    %367 = arith.mulf %362, %366 : vector<16x32xf32>
    %368 = vector.broadcast %347 : vector<1x32xf32> to vector<16x32xf32>
    %369 = arith.mulf %367, %368 : vector<16x32xf32>
    %370 = vector.broadcast %349 : vector<1x32xf32> to vector<16x32xf32>
    %371 = arith.addf %369, %370 : vector<16x32xf32>
    %c1_141 = arith.constant 1 : index
    %c64_142 = arith.constant 64 : index
    %c0_143 = arith.constant 0 : index
    %372 = vector.load %arg3[%c1_141, %c64_142, %c0_143] : memref<2x224x96xf32, #tpu.memory_space<vmem>>, vector<1x32x64xf32>
    %373 = vector.shape_cast %372 : vector<1x32x64xf32> to vector<32x64xf32>
    %cst_144 = arith.constant dense<0.000000e+00> : vector<16x64xf32>
    %374 = tpu.matmul %371, %373, %cst_144 {dimension_numbers = #tpu.dot_dimension_numbers<[1], [0], [0], [1], [0, 0, 1, 1], [], []>} : vector<16x32xf32>, vector<32x64xf32>, vector<16x64xf32> -> vector<16x64xf32>
    %c1_145 = arith.constant 1 : index
    %c192_146 = arith.constant 192 : index
    %c0_147 = arith.constant 0 : index
    %375 = vector.load %arg3[%c1_145, %c192_146, %c0_147] : memref<2x224x96xf32, #tpu.memory_space<vmem>>, vector<1x1x64xf32>
    %376 = vector.shape_cast %375 : vector<1x1x64xf32> to vector<1x64xf32>
    %377 = vector.broadcast %376 : vector<1x64xf32> to vector<16x64xf32>
    %378 = arith.addf %374, %377 : vector<16x64xf32>
    %cst_148 = arith.constant 5.000000e-01 : f32
    %379 = vector.broadcast %cst_148 : f32 to vector<16x64xf32>
    %380 = arith.mulf %379, %378 : vector<16x64xf32>
    %cst_149 = arith.constant 0.707106769 : f32
    %381 = vector.broadcast %cst_149 : f32 to vector<16x64xf32>
    %382 = arith.mulf %378, %381 : vector<16x64xf32>
    %383 = math.erf %382 : vector<16x64xf32>
    %cst_150 = arith.constant 1.000000e+00 : f32
    %384 = vector.broadcast %cst_150 : f32 to vector<16x64xf32>
    %385 = arith.addf %384, %383 : vector<16x64xf32>
    %386 = arith.mulf %380, %385 : vector<16x64xf32>
    %c1_151 = arith.constant 1 : index
    %c96_152 = arith.constant 96 : index
    %c0_153 = arith.constant 0 : index
    %387 = vector.load %arg3[%c1_151, %c96_152, %c0_153] : memref<2x224x96xf32, #tpu.memory_space<vmem>>, vector<1x64x32xf32>
    %388 = vector.shape_cast %387 : vector<1x64x32xf32> to vector<64x32xf32>
    %cst_154 = arith.constant dense<0.000000e+00> : vector<16x32xf32>
    %389 = tpu.matmul %386, %388, %cst_154 {dimension_numbers = #tpu.dot_dimension_numbers<[1], [0], [0], [1], [0, 0, 1, 1], [], []>} : vector<16x64xf32>, vector<64x32xf32>, vector<16x32xf32> -> vector<16x32xf32>
    %c1_155 = arith.constant 1 : index
    %c200_156 = arith.constant 200 : index
    %c0_157 = arith.constant 0 : index
    %390 = vector.load %arg3[%c1_155, %c200_156, %c0_157] : memref<2x224x96xf32, #tpu.memory_space<vmem>>, vector<1x1x32xf32>
    %391 = vector.shape_cast %390 : vector<1x1x32xf32> to vector<1x32xf32>
    %392 = vector.broadcast %391 : vector<1x32xf32> to vector<16x32xf32>
    %393 = arith.addf %389, %392 : vector<16x32xf32>
    %394 = arith.addf %393, %371 : vector<16x32xf32>
    %c1_158 = arith.constant 1 : index
    %c208_159 = arith.constant 208 : index
    %c0_160 = arith.constant 0 : index
    %395 = vector.load %arg3[%c1_158, %c208_159, %c0_160] : memref<2x224x96xf32, #tpu.memory_space<vmem>>, vector<1x1x32xf32>
    %396 = vector.shape_cast %395 : vector<1x1x32xf32> to vector<1x32xf32>
    %c1_161 = arith.constant 1 : index
    %c216_162 = arith.constant 216 : index
    %c0_163 = arith.constant 0 : index
    %397 = vector.load %arg3[%c1_161, %c216_162, %c0_163] : memref<2x224x96xf32, #tpu.memory_space<vmem>>, vector<1x1x32xf32>
    %398 = vector.shape_cast %397 : vector<1x1x32xf32> to vector<1x32xf32>
    %cst_164 = arith.constant dense<0.000000e+00> : vector<16xf32>
    %399 = vector.multi_reduction <add>, %394, %cst_164 [1] : vector<16x32xf32> to vector<16xf32>
    %400 = vector.shape_cast %399 : vector<16xf32> to vector<16x1xf32>
    %cst_165 = arith.constant 3.200000e+01 : f32
    %401 = vector.broadcast %cst_165 : f32 to vector<16x1xf32>
    %402 = arith.divf %400, %401 : vector<16x1xf32>
    %403 = vector.broadcast %402 : vector<16x1xf32> to vector<16x32xf32>
    %404 = arith.subf %394, %403 : vector<16x32xf32>
    %405 = arith.mulf %404, %404 : vector<16x32xf32>
    %cst_166 = arith.constant dense<0.000000e+00> : vector<16xf32>
    %406 = vector.multi_reduction <add>, %405, %cst_166 [1] : vector<16x32xf32> to vector<16xf32>
    %407 = vector.shape_cast %406 : vector<16xf32> to vector<16x1xf32>
    %cst_167 = arith.constant 3.200000e+01 : f32
    %408 = vector.broadcast %cst_167 : f32 to vector<16x1xf32>
    %409 = arith.divf %407, %408 : vector<16x1xf32>
    %410 = vector.broadcast %402 : vector<16x1xf32> to vector<16x32xf32>
    %411 = arith.subf %394, %410 : vector<16x32xf32>
    %cst_168 = arith.constant 9.99999996E-13 : f32
    %412 = vector.broadcast %cst_168 : f32 to vector<16x1xf32>
    %413 = arith.addf %409, %412 : vector<16x1xf32>
    %414 = math.rsqrt %413 : vector<16x1xf32>
    %415 = vector.broadcast %414 : vector<16x1xf32> to vector<16x32xf32>
    %416 = arith.mulf %411, %415 : vector<16x32xf32>
    %417 = vector.broadcast %396 : vector<1x32xf32> to vector<16x32xf32>
    %418 = arith.mulf %416, %417 : vector<16x32xf32>
    %419 = vector.broadcast %398 : vector<1x32xf32> to vector<16x32xf32>
    %420 = arith.addf %418, %419 : vector<16x32xf32>
    %421 = tpu.iota {dimensions = array<i32: 1>} : vector<2x16xi32>
    %422 = tpu.iota {dimensions = array<i32: 0>} : vector<2x16xi32>
    %c8_i32 = arith.constant 8 : i32
    %423 = vector.broadcast %c8_i32 : i32 to vector<2x16xi32>
    %424 = arith.muli %422, %423 : vector<2x16xi32>
    %425 = arith.cmpi eq, %421, %424 : vector<2x16xi32>
    %426 = arith.extui %425 : vector<2x16xi1> to vector<2x16xi32>
    %427 = arith.sitofp %426 : vector<2x16xi32> to vector<2x16xf32>
    %cst_169 = arith.constant dense<0.000000e+00> : vector<2x32xf32>
    %428 = tpu.matmul %427, %420, %cst_169 {dimension_numbers = #tpu.dot_dimension_numbers<[1], [0], [0], [1], [0, 0, 1, 1], [], []>} : vector<2x16xf32>, vector<16x32xf32>, vector<2x32xf32> -> vector<2x32xf32>
    %c72 = arith.constant 72 : index
    %c0_170 = arith.constant 0 : index
    %429 = vector.load %arg2[%c72, %c0_170] : memref<152x32xf32, #tpu.memory_space<vmem>>, vector<32x32xf32>
    %cst_171 = arith.constant dense<0.000000e+00> : vector<2x32xf32>
    %430 = tpu.matmul %428, %429, %cst_171 {dimension_numbers = #tpu.dot_dimension_numbers<[1], [0], [0], [1], [0, 0, 1, 1], [], []>} : vector<2x32xf32>, vector<32x32xf32>, vector<2x32xf32> -> vector<2x32xf32>
    %c104 = arith.constant 104 : index
    %c0_172 = arith.constant 0 : index
    %431 = vector.load %arg2[%c104, %c0_172] : memref<152x32xf32, #tpu.memory_space<vmem>>, vector<1x32xf32>
    %432 = vector.broadcast %431 : vector<1x32xf32> to vector<2x32xf32>
    %433 = arith.addf %430, %432 : vector<2x32xf32>
    %434 = math.tanh %433 : vector<2x32xf32>
    %c112 = arith.constant 112 : index
    %c0_173 = arith.constant 0 : index
    %435 = vector.load %arg2[%c112, %c0_173] : memref<152x32xf32, #tpu.memory_space<vmem>>, vector<32x2xf32>
    %cst_174 = arith.constant dense<0.000000e+00> : vector<2x2xf32>
    %436 = tpu.matmul %434, %435, %cst_174 {dimension_numbers = #tpu.dot_dimension_numbers<[1], [0], [0], [1], [0, 0, 1, 1], [], []>} : vector<2x32xf32>, vector<32x2xf32>, vector<2x2xf32> -> vector<2x2xf32>
    %c144 = arith.constant 144 : index
    %c0_175 = arith.constant 0 : index
    %437 = vector.load %arg2[%c144, %c0_175] : memref<152x32xf32, #tpu.memory_space<vmem>>, vector<1x2xf32>
    %438 = vector.broadcast %437 : vector<1x2xf32> to vector<2x2xf32>
    %439 = arith.addf %436, %438 : vector<2x2xf32>
    %c0_176 = arith.constant 0 : index
    %c0_177 = arith.constant 0 : index
    %440 = vector.load %arg4[%c0_176, %c0_177] : memref<2x2xf32, #tpu.memory_space<vmem>>, vector<2x2xf32>
    tpu.vector_store %arg4[%c0_176, %c0_177], %439 {strides = array<i32>} : memref<2x2xf32, #tpu.memory_space<vmem>>, vector<2x2xf32>,
    return
  }
}

</mosaic_0001>

<llo_original>
// kernel: custom_bert_forward.1
$region0: #{custom_bert_forward.1}
  #allocation0 [shape = 'u32[]', space=smem, size = 0x4, offset = 0x4, fixed_abs, tag = 'smem constant byte address 0x4 - core index']
  #allocation1 [shape = 'u32[144,128]{1,0:T(1,128)}', space=vmem, size = 0x12000, scoped, tag = 'internal scratch']
  #allocation2 [shape = 'f32[16,32]{1,0:T(8,128)}', space=vmem, size = 0x2000, scoped, tag = 'scratch operand']
  %s0 = inlined_call_operand.vmem [shape: s32[16,1], index: 0, kind: input, shape index: {}]
  %s1 = inlined_call_operand.vmem [shape: f32[2,8], index: 1, kind: input, shape index: {}]
  %s2 = inlined_call_operand.vmem [shape: f32[152,32], index: 2, kind: input, shape index: {}]
  %s3 = inlined_call_operand.vmem [shape: f32[2,224,96], index: 3, kind: input, shape index: {}]
  %s4 = inlined_call_operand.hbm [shape: f32[2,2], index: 4, kind: output, shape index: {}]
  %s5 = sld [smem:[#allocation0]]
  $region26: #{custom_bert_forward.1} parent=0
    _
  %s7 = ssub.s32 1, %s5
  %s8 = scalar_select 0, %s7, %s5
  $region1: #{custom_bert_forward.1} parent=0
    #allocation3 [shape = 'u8[1024]{0}', space=vmem, size = 0x400, scoped, tag = 'output window, operand 0, single buffered']
    #allocation4 [shape = 's32[1]{0}', space=sflag, size = 0x4, scoped, tag = 'scoped memory for custom_bert_forward.1']
    %9 = vsyncpa [#allocation4], 0
    // Predicated region
    $region2: #{custom_bert_forward.1} parent=1 // pred_check
      _
    $region3: #{custom_bert_forward.1} parent=1 // pred_check_branch
      %11 = sbr.rel (0) target = $region5
    $region4: #{custom_bert_forward.1} parent=1 // pred_region
      _
    $region5: #{custom_bert_forward.1} parent=1 // pred_fallthru
      _
    // Predicated region
    $region6: #{custom_bert_forward.1} parent=1 // pred_check
      _
    $region7: #{custom_bert_forward.1} parent=1 // pred_check_branch
      %13 = sbr.rel (0) target = $region9
    $region8: #{custom_bert_forward.1} parent=1 // pred_region
      _
    $region9: #{custom_bert_forward.1} parent=1 // pred_fallthru
      _
    // Predicated region
    $region10: #{custom_bert_forward.1} parent=1 // pred_check
      _
    $region11: #{custom_bert_forward.1} parent=1 // pred_check_branch
      %15 = sbr.rel (0) target = $region13
    $region12: #{custom_bert_forward.1} parent=1 // pred_region
      _
    $region13: #{custom_bert_forward.1} parent=1 // pred_fallthru
      _
    // Predicated region
    $region14: #{custom_bert_forward.1} parent=1 // pred_check
      _
    $region15: #{custom_bert_forward.1} parent=1 // pred_check_branch
      %17 = sbr.rel (0) target = $region17
    $region16: #{custom_bert_forward.1} parent=1 // pred_region
      _
    $region17: #{custom_bert_forward.1} parent=1 // pred_fallthru
      _
    %v18 = vld [vmem:[%s0] sm:$0xff]
    %v19 = vld [vmem:[%s0 + $0x8] sm:$0xff]
    %v20 = vlaneseq
    %v21 = vand.u32 %v20, 127
    %22 = vset.pattern.permute.xlu0 0
    %23 = vperm.xlu0 %22, %v18
    %v24 = vpop.permute.xlu0 %23
    %25 = vset.pattern.permute.xlu0 0
    %26 = vperm.xlu0 %25, %v19
    %v27 = vpop.permute.xlu0 %26
    %vm28 = vcmp.eq.s32.totalorder %v21, %v24
    %vm29 = vcmp.eq.s32.totalorder %v21, %v27
    %v30 = vsel %vm28, 1, 0
    %v31 = vsel %vm29, 1, 0
    %v32 = vcvt.s32.f32 %v30
    %v33 = vcvt.s32.f32 %v31
    %v34 = vld [vmem:[%s2] sm:$0xff]
    %v35 = vld [vmem:[%s2 + $0x8] sm:$0xff]
    %v36 = vld [vmem:[%s2 + $0x10] sm:$0xff]
    %v37 = vld [vmem:[%s2 + $0x18] sm:$0x3f]
    %vm38 = vcmask 244736
    %v40 = vsel %vm38, %v32, 0
    %v43 = vsel %vm38, %v33, 0
    %vm45 = vcmask 1045504
    %v47 = vsel %vm45, %v37, 0
    %49 = vmatprep.subr.mxu0 0.0
    %50 = vmatpush1.msra.mxu0 %v34
    %51 = vmatprep.subr.mxu0 0.0
    %52 = vmatpush1.msra.mxu0 %v35
    %53 = vmatprep.subr.mxu0 0.0
    %54 = vmatpush1.msra.mxu0 %v36
    %55 = vmatprep.subr.mxu0 0.0
    %56 = vmatpush1.msra.mxu0 %v47
    %57 = vmatprep.subr.mxu0 0.0
    %58 = vmatpush1.msra.mxu0 0.0
    %59 = vmatprep.subr.mxu0 0.0
    %60 = vmatpush1.msra.mxu0 0.0
    %61 = vmatprep.subr.mxu0 0.0
    %62 = vmatpush1.msra.mxu0 0.0
    %63 = vmatprep.subr.mxu0 0.0
    %64 = vmatpush1.msra.mxu0 0.0
    %65 = vmatprep.subr.mxu0 0.0
    %66 = vmatpush1.msra.mxu0 0.0
    %67 = vmatprep.subr.mxu0 0.0
    %68 = vmatpush1.msra.mxu0 0.0
    %69 = vmatprep.subr.mxu0 0.0
    %70 = vmatpush1.msra.mxu0 0.0
    %71 = vmatprep.subr.mxu0 0.0
    %72 = vmatpush1.msra.mxu0 0.0
    %73 = vmatprep.subr.mxu0 0.0
    %74 = vmatpush1.msra.mxu0 0.0
    %75 = vmatprep.subr.mxu0 0.0
    %76 = vmatpush1.msra.mxu0 0.0
    %77 = vmatprep.subr.mxu0 0.0
    %78 = vmatpush1.msra.mxu0 0.0
    %79 = vmatprep.subr.mxu0 0.0
    %80 = vmatpush1.msra.mxu0 0.0
    %81 = vmatprep.subr.mxu0 0.0
    %82 = vmatpush1.msra.mxu0 0.0
    %83 = vmatprep.subr.mxu0 0.0
    %84 = vmatpush1.msra.mxu0 0.0
    %85 = vmatprep.subr.mxu0 0.0
    %86 = vmatpush1.msra.mxu0 0.0
    %87 = vmatprep.subr.mxu0 0.0
    %88 = vmatpush1.msra.mxu0 0.0
    %89 = vmatprep.subr.mxu0 0.0
    %90 = vmatpush1.msra.mxu0 0.0
    %91 = vmatprep.subr.mxu0 0.0
    %92 = vmatpush1.msra.mxu0 0.0
    %93 = vmatprep.subr.mxu0 0.0
    %94 = vmatpush1.msra.mxu0 0.0
    %95 = vmatprep.subr.mxu0 0.0
    %96 = vmatpush1.msra.mxu0 0.0
    %97 = vmatprep.subr.mxu0 0.0
    %98 = vmatpush1.msra.mxu0 0.0
    %99 = vmatprep.subr.mxu0 0.0
    %100 = vmatpush1.msra.mxu0 0.0
    %101 = vmatprep.subr.mxu0 0.0
    %102 = vmatpush1.msra.mxu0 0.0
    %103 = vmatprep.subr.mxu0 0.0
    %104 = vmatpush1.msra.mxu0 0.0
    %105 = vmatprep.subr.mxu0 0.0
    %106 = vmatpush1.msra.mxu0 0.0
    %107 = vmatprep.subr.mxu0 0.0
    %108 = vmatpush1.msra.mxu0 0.0
    %109 = vmatprep.subr.mxu0 0.0
    %110 = vmatpush1.msra.mxu0 0.0
    %111 = vmatprep.subr.mxu0 0.0
    %112 = vmatpush1.msra.mxu0 0.0
    %113 = vmatprep.mubr.f32.mxu0 0.0
    %114 = vmatmul.mubr.f32.gmra.mrb[0].mxu0 %v40
    %v115 = vpop.f32.mrb[0].mxu0
    %v116 = vadd.f32 0.0, %v115
    %v117 = vpop.f32.mrb[0].mxu0
    %118 = vmatprep.mubr.f32.mxu0 0.0
    %119 = vmatmul.mubr.f32.gmra.mrb[0].mxu0 %v43
    %v120 = vpop.f32.mrb[0].mxu0
    %v121 = vadd.f32 0.0, %v120
    %v122 = vpop.f32.mrb[0].mxu0
    %123 = vdwg.mxu0
    %v124 = vld [vmem:[%s2 + $0x20] sm:$0xff]
    %v125 = vld [vmem:[%s2 + $0x30] sm:$0x1]
    %v126 = vadd.f32 %v116, %v124
    %v127 = vadd.f32 %v121, %v124
    %v128 = vlaneseq
    %v129 = vshrl.u32 %v128, 7
    %v130 = vsub.s32 0, %v129
    %v131 = vrot.slane %v125, %v130
    %v132 = vadd.f32 %v126, %v131
    %v133 = vadd.f32 %v127, %v131
    %v134 = vld [vmem:[%s2 + $0x38] sm:$0x1]
    %v135 = vld [vmem:[%s2 + $0x40] sm:$0x1]
    %vm136 = vcmask 261120
    %v137 = vsel %vm136, %v132, 0.0
    %138 = vadd.xlane.f32.xlu0 %v137
    %v139 = vpop.xlane.xlu0 %138
    %v140 = vsel %vm136, %v133, 0.0
    %141 = vadd.xlane.f32.xlu0 %v140
    %v142 = vpop.xlane.xlu0 %141
    %v143 = vrcp.pop 32.0
    %v144 = vmul.f32 %v139, %v143
    %v145 = vmul.f32 %v142, %v143
    %v146 = vsub.f32 %v132, %v144
    %v147 = vsub.f32 %v133, %v145
    %v148 = vmul.f32 %v146, %v146
    %v149 = vmul.f32 %v147, %v147
    %v150 = vsel %vm136, %v148, 0.0
    %151 = vadd.xlane.f32.xlu0 %v150
    %v152 = vpop.xlane.xlu0 %151
    %v153 = vsel %vm136, %v149, 0.0
    %154 = vadd.xlane.f32.xlu0 %v153
    %v155 = vpop.xlane.xlu0 %154
    %v156 = vmul.f32 %v152, %v143
    %v157 = vmul.f32 %v155, %v143
    %v158 = vadd.f32 %v156, 1e-12
    %v159 = vadd.f32 %v157, 1e-12
    %v160 = vrsqrt.pop %v158
    %v161 = vrsqrt.pop %v159
    %v162 = vmul.f32 %v146, %v160
    %v163 = vmul.f32 %v147, %v161
    %v164 = vlaneseq
    %v165 = vshrl.u32 %v164, 7
    %v166 = vsub.s32 0, %v165
    %v167 = vrot.slane %v134, %v166
    %v168 = vmul.f32 %v162, %v167
    %v169 = vmul.f32 %v163, %v167
    %v170 = vlaneseq
    %v171 = vshrl.u32 %v170, 7
    %v172 = vsub.s32 0, %v171
    %v173 = vrot.slane %v135, %v172
    %v174 = vadd.f32 %v168, %v173
    %v175 = vadd.f32 %v169, %v173
    %v176 = vld [vmem:[%s1] sm:$0x3]
    %v177 = vsub.f32 1.0, %v176
    %v178 = vmul.f32 %v177, -10000.0
    %v179 = vld [vmem:[%s3] sm:$0xff]
    %v180 = vld [vmem:[%s3 + $0x8] sm:$0xff]
    %v181 = vld [vmem:[%s3 + $0x10] sm:$0xff]
    %v182 = vld [vmem:[%s3 + $0x18] sm:$0xff]
    %v183 = vld [vmem:[%s3 + $0xa0] sm:$0x1]
    %v184 = vlaneseq
    %v185 = vshrl.u32 %v184, 7
    %v186 = vsub.s32 0, %v185
    %v187 = vrot.slane %v183, %v186
    %v189 = vsel %vm136, %v174, 0
    %v192 = vsel %vm136, %v175, 0
    %194 = vmatprep.subr.mxu0 0.0
    %195 = vmatpush1.msra.mxu0 %v179
    %196 = vmatprep.subr.mxu0 0.0
    %197 = vmatpush1.msra.mxu0 %v180
    %198 = vmatprep.subr.mxu0 0.0
    %199 = vmatpush1.msra.mxu0 %v181
    %200 = vmatprep.subr.mxu0 0.0
    %201 = vmatpush1.msra.mxu0 %v182
    %202 = vmatprep.subr.mxu0 0.0
    %203 = vmatpush1.msra.mxu0 0.0
    %204 = vmatprep.subr.mxu0 0.0
    %205 = vmatpush1.msra.mxu0 0.0
    %206 = vmatprep.subr.mxu0 0.0
    %207 = vmatpush1.msra.mxu0 0.0
    %208 = vmatprep.subr.mxu0 0.0
    %209 = vmatpush1.msra.mxu0 0.0
    %210 = vmatprep.subr.mxu0 0.0
    %211 = vmatpush1.msra.mxu0 0.0
    %212 = vmatprep.subr.mxu0 0.0
    %213 = vmatpush1.msra.mxu0 0.0
    %214 = vmatprep.subr.mxu0 0.0
    %215 = vmatpush1.msra.mxu0 0.0
    %216 = vmatprep.subr.mxu0 0.0
    %217 = vmatpush1.msra.mxu0 0.0
    %218 = vmatprep.subr.mxu0 0.0
    %219 = vmatpush1.msra.mxu0 0.0
    %220 = vmatprep.subr.mxu0 0.0
    %221 = vmatpush1.msra.mxu0 0.0
    %222 = vmatprep.subr.mxu0 0.0
    %223 = vmatpush1.msra.mxu0 0.0
    %224 = vmatprep.subr.mxu0 0.0
    %225 = vmatpush1.msra.mxu0 0.0
    %226 = vmatprep.subr.mxu0 0.0
    %227 = vmatpush1.msra.mxu0 0.0
    %228 = vmatprep.subr.mxu0 0.0
    %229 = vmatpush1.msra.mxu0 0.0
    %230 = vmatprep.subr.mxu0 0.0
    %231 = vmatpush1.msra.mxu0 0.0
    %232 = vmatprep.subr.mxu0 0.0
    %233 = vmatpush1.msra.mxu0 0.0
    %234 = vmatprep.subr.mxu0 0.0
    %235 = vmatpush1.msra.mxu0 0.0
    %236 = vmatprep.subr.mxu0 0.0
    %237 = vmatpush1.msra.mxu0 0.0
    %238 = vmatprep.subr.mxu0 0.0
    %239 = vmatpush1.msra.mxu0 0.0
    %240 = vmatprep.subr.mxu0 0.0
    %241 = vmatpush1.msra.mxu0 0.0
    %242 = vmatprep.subr.mxu0 0.0
    %243 = vmatpush1.msra.mxu0 0.0
    %244 = vmatprep.subr.mxu0 0.0
    %245 = vmatpush1.msra.mxu0 0.0
    %246 = vmatprep.subr.mxu0 0.0
    %247 = vmatpush1.msra.mxu0 0.0
    %248 = vmatprep.subr.mxu0 0.0
    %249 = vmatpush1.msra.mxu0 0.0
    %250 = vmatprep.subr.mxu0 0.0
    %251 = vmatpush1.msra.mxu0 0.0
    %252 = vmatprep.subr.mxu0 0.0
    %253 = vmatpush1.msra.mxu0 0.0
    %254 = vmatprep.subr.mxu0 0.0
    %255 = vmatpush1.msra.mxu0 0.0
    %256 = vmatprep.subr.mxu0 0.0
    %257 = vmatpush1.msra.mxu0 0.0
    %258 = vmatprep.mubr.f32.mxu0 0.0
    %259 = vmatmul.mubr.f32.gmra.mrb[0].mxu0 %v189
    %v260 = vpop.f32.mrb[0].mxu0
    %v261 = vadd.f32 %v187, %v260
    %v262 = vpop.f32.mrb[0].mxu0
    %263 = vmatprep.mubr.f32.mxu0 0.0
    %264 = vmatmul.mubr.f32.gmra.mrb[0].mxu0 %v192
    %v265 = vpop.f32.mrb[0].mxu0
    %v266 = vadd.f32 %v187, %v265
    %v267 = vpop.f32.mrb[0].mxu0
    %268 = vdwg.mxu0
    %270 = vrot.lane.b32.xlu0 %v261, 96
    %v271 = vpop.permute.xlu0 %270
    %vm272 = vcmask 64512
    %v273 = vsel %vm272, %v261, 0
    %v275 = vsel %vm272, %v271, 0
    %277 = vmatprep.subr.mxu0 0.0
    %278 = vmatpush1.xpose.msra.mxu0 %v275
    %279 = vmatprep.subr.mxu0 0.0
    %280 = vmatpush1.xpose.msra.mxu0 0.0
    %281 = vmatprep.subr.mxu0 0.0
    %282 = vmatpush1.xpose.msra.mxu0 0.0
    %283 = vmatprep.subr.mxu0 0.0
    %284 = vmatpush1.xpose.msra.mxu0 0.0
    %285 = vmatprep.subr.mxu0 0.0
    %286 = vmatpush1.xpose.msra.mxu0 0.0
    %287 = vmatprep.subr.mxu0 0.0
    %288 = vmatpush1.xpose.msra.mxu0 0.0
    %289 = vmatprep.subr.mxu0 0.0
    %290 = vmatpush1.xpose.msra.mxu0 0.0
    %291 = vmatprep.subr.mxu0 0.0
    %292 = vmatpush1.xpose.msra.mxu0 0.0
    %293 = vmatprep.subr.mxu0 0.0
    %294 = vmatpush1.xpose.msra.mxu0 0.0
    %295 = vmatprep.subr.mxu0 0.0
    %296 = vmatpush1.xpose.msra.mxu0 0.0
    %297 = vmatprep.subr.mxu0 0.0
    %298 = vmatpush1.xpose.msra.mxu0 0.0
    %299 = vmatprep.subr.mxu0 0.0
    %300 = vmatpush1.xpose.msra.mxu0 0.0
    %301 = vmatprep.subr.mxu0 0.0
    %302 = vmatpush1.xpose.msra.mxu0 0.0
    %303 = vmatprep.subr.mxu0 0.0
    %304 = vmatpush1.xpose.msra.mxu0 0.0
    %305 = vmatprep.subr.mxu0 0.0
    %306 = vmatpush1.xpose.msra.mxu0 0.0
    %307 = vmatprep.subr.mxu0 0.0
    %308 = vmatpush1.xpose.msra.mxu0 0.0
    %309 = vmatprep.subr.mxu0 0.0
    %310 = vmatpush1.xpose.msra.mxu0 0.0
    %311 = vmatprep.subr.mxu0 0.0
    %312 = vmatpush1.xpose.msra.mxu0 0.0
    %313 = vmatprep.subr.mxu0 0.0
    %314 = vmatpush1.xpose.msra.mxu0 0.0
    %315 = vmatprep.subr.mxu0 0.0
    %316 = vmatpush1.xpose.msra.mxu0 0.0
    %317 = vmatprep.subr.mxu0 0.0
    %318 = vmatpush1.xpose.msra.mxu0 0.0
    %319 = vmatprep.subr.mxu0 0.0
    %320 = vmatpush1.xpose.msra.mxu0 0.0
    %321 = vmatprep.subr.mxu0 0.0
    %322 = vmatpush1.xpose.msra.mxu0 0.0
    %323 = vmatprep.subr.mxu0 0.0
    %324 = vmatpush1.xpose.msra.mxu0 0.0
    %325 = vmatprep.subr.mxu0 0.0
    %326 = vmatpush1.xpose.msra.mxu0 0.0
    %327 = vmatprep.subr.mxu0 0.0
    %328 = vmatpush1.xpose.msra.mxu0 0.0
    %329 = vmatprep.subr.mxu0 0.0
    %330 = vmatpush1.xpose.msra.mxu0 0.0
    %331 = vmatprep.subr.mxu0 0.0
    %332 = vmatpush1.xpose.msra.mxu0 0.0
    %333 = vmatprep.subr.mxu0 0.0
    %334 = vmatpush1.xpose.msra.mxu0 0.0
    %335 = vmatprep.subr.mxu0 0.0
    %336 = vmatpush1.xpose.msra.mxu0 0.0
    %337 = vmatprep.subr.mxu0 0.0
    %338 = vmatpush1.xpose.msra.mxu0 0.0
    %339 = vmatprep.subr.mxu0 0.0
    %340 = vmatpush1.xpose.msra.mxu0 0.0
    %341 = vmatprep.mubr.f32.mxu0 0.0
    %342 = vmatmul.mubr.f32.gmra.mrb[0].mxu0 %v273
    %v343 = vpop.f32.mrb[0].mxu0
    %v344 = vadd.f32 0.0, %v343
    %v345 = vpop.f32.mrb[0].mxu0
    %346 = vdwg.mxu0
    %348 = vrot.lane.b32.xlu0 %v266, 96
    %v349 = vpop.permute.xlu0 %348
    %v350 = vsel %vm272, %v266, 0
    %v352 = vsel %vm272, %v349, 0
    %354 = vmatprep.subr.mxu0 0.0
    %355 = vmatpush1.xpose.msra.mxu0 %v352
    %356 = vmatprep.subr.mxu0 0.0
    %357 = vmatpush1.xpose.msra.mxu0 0.0
    %358 = vmatprep.subr.mxu0 0.0
    %359 = vmatpush1.xpose.msra.mxu0 0.0
    %360 = vmatprep.subr.mxu0 0.0
    %361 = vmatpush1.xpose.msra.mxu0 0.0
    %362 = vmatprep.subr.mxu0 0.0
    %363 = vmatpush1.xpose.msra.mxu0 0.0
    %364 = vmatprep.subr.mxu0 0.0
    %365 = vmatpush1.xpose.msra.mxu0 0.0
    %366 = vmatprep.subr.mxu0 0.0
    %367 = vmatpush1.xpose.msra.mxu0 0.0
    %368 = vmatprep.subr.mxu0 0.0
    %369 = vmatpush1.xpose.msra.mxu0 0.0
    %370 = vmatprep.subr.mxu0 0.0
    %371 = vmatpush1.xpose.msra.mxu0 0.0
    %372 = vmatprep.subr.mxu0 0.0
    %373 = vmatpush1.xpose.msra.mxu0 0.0
    %374 = vmatprep.subr.mxu0 0.0
    %375 = vmatpush1.xpose.msra.mxu0 0.0
    %376 = vmatprep.subr.mxu0 0.0
    %377 = vmatpush1.xpose.msra.mxu0 0.0
    %378 = vmatprep.subr.mxu0 0.0
    %379 = vmatpush1.xpose.msra.mxu0 0.0
    %380 = vmatprep.subr.mxu0 0.0
    %381 = vmatpush1.xpose.msra.mxu0 0.0
    %382 = vmatprep.subr.mxu0 0.0
    %383 = vmatpush1.xpose.msra.mxu0 0.0
    %384 = vmatprep.subr.mxu0 0.0
    %385 = vmatpush1.xpose.msra.mxu0 0.0
    %386 = vmatprep.subr.mxu0 0.0
    %387 = vmatpush1.xpose.msra.mxu0 0.0
    %388 = vmatprep.subr.mxu0 0.0
    %389 = vmatpush1.xpose.msra.mxu0 0.0
    %390 = vmatprep.subr.mxu0 0.0
    %391 = vmatpush1.xpose.msra.mxu0 0.0
    %392 = vmatprep.subr.mxu0 0.0
    %393 = vmatpush1.xpose.msra.mxu0 0.0
    %394 = vmatprep.subr.mxu0 0.0
    %395 = vmatpush1.xpose.msra.mxu0 0.0
    %396 = vmatprep.subr.mxu0 0.0
    %397 = vmatpush1.xpose.msra.mxu0 0.0
    %398 = vmatprep.subr.mxu0 0.0
    %399 = vmatpush1.xpose.msra.mxu0 0.0
    %400 = vmatprep.subr.mxu0 0.0
    %401 = vmatpush1.xpose.msra.mxu0 0.0
    %402 = vmatprep.subr.mxu0 0.0
    %403 = vmatpush1.xpose.msra.mxu0 0.0
    %404 = vmatprep.subr.mxu0 0.0
    %405 = vmatpush1.xpose.msra.mxu0 0.0
    %406 = vmatprep.subr.mxu0 0.0
    %407 = vmatpush1.xpose.msra.mxu0 0.0
    %408 = vmatprep.subr.mxu0 0.0
    %409 = vmatpush1.xpose.msra.mxu0 0.0
    %410 = vmatprep.subr.mxu0 0.0
    %411 = vmatpush1.xpose.msra.mxu0 0.0
    %412 = vmatprep.subr.mxu0 0.0
    %413 = vmatpush1.xpose.msra.mxu0 0.0
    %414 = vmatprep.subr.mxu0 0.0
    %415 = vmatpush1.xpose.msra.mxu0 0.0
    %416 = vmatprep.subr.mxu0 0.0
    %417 = vmatpush1.xpose.msra.mxu0 0.0
    %418 = vmatprep.mubr.f32.mxu0 0.0
    %419 = vmatmul.mubr.f32.gmra.mrb[0].mxu0 %v350
    %v420 = vpop.f32.mrb[0].mxu0
    %v421 = vadd.f32 0.0, %v420
    %v422 = vpop.f32.mrb[0].mxu0
    %423 = vdwg.mxu0
    %v424 = vmul.f32 %v344, 0.35355338
    %v425 = vmul.f32 %v421, 0.35355338
    %v428 = vunpack.c.l.s4 1966171168
    %v429 = vunpack.c.0.s8 %v428
    %v430 = vlaneseq
    %v431 = vshrl.u32 %v430, 7
    %v432 = vsub.s32 %v429, %v431
    %v433 = vrot.slane %v178, %v432
    %v434 = vcombine.high %v433, %v433
    %v436 = vunpack.c.l.s4 1966171168
    %v437 = vunpack.c.0.s8 %v436
    %v438 = vlaneseq
    %v439 = vshrl.u32 %v438, 7
    %v440 = vsub.s32 %v437, %v439
    %v441 = vrot.slane %v433, %v440
    %v443 = vunpack.c.l.s4 1966171168
    %v444 = vunpack.c.0.s8 %v443
    %v445 = vlaneseq
    %v446 = vshrl.u32 %v445, 7
    %v447 = vsub.s32 %v444, %v446
    %v448 = vrot.slane %v434, %v447
    %v449 = vlaneseq
    %v450 = vshrl.u32 %v449, 7
    %v451 = vsub.s32 0, %v450
    %v452 = vrot.slane %v441, %v451
    %v453 = vlaneseq
    %v454 = vshrl.u32 %v453, 7
    %v455 = vsub.s32 0, %v454
    %v456 = vrot.slane %v448, %v455
    %v459 = vadd.f32 %v424, %v452
    %v460 = vadd.f32 %v425, %v456
    %v461 = vsel %vm272, %v459, -inf
    %462 = vmax.xlane.f32.xlu0 %v461
    %v463 = vpop.xlane.xlu0 %462
    %v464 = vsel %vm272, %v460, -inf
    %465 = vmax.xlane.f32.xlu0 %v464
    %v466 = vpop.xlane.xlu0 %465
    %v467 = vsub.f32 %v459, %v463
    %v468 = vsub.f32 %v460, %v466
    %v469 = vmul.f32 %v467, 1.442695
    %v470 = vpow.pop %v469
    %v471 = vmul.f32 %v468, 1.442695
    %v472 = vpow.pop %v471
    %v473 = vsel %vm272, %v470, 0.0
    %474 = vadd.xlane.f32.xlu0 %v473
    %v475 = vpop.xlane.xlu0 %474
    %v476 = vsel %vm272, %v472, 0.0
    %477 = vadd.xlane.f32.xlu0 %v476
    %v478 = vpop.xlane.xlu0 %477
    %v479 = vrcp.pop %v475
    %v480 = vmul.f32 %v470, %v479
    %v481 = vrcp.pop %v478
    %v482 = vmul.f32 %v472, %v481
    %483 = vrot.lane.b32.xlu0 %v261, 64
    %v484 = vpop.permute.xlu0 %483
    %v487 = vsel %vm272, %v480, 0
    %489 = vmatprep.subr.mxu0 0.0
    %490 = vmatpush1.msra.mxu0 %v484
    %491 = vmatprep.subr.mxu0 0.0
    %492 = vmatpush1.msra.mxu0 0.0
    %493 = vmatprep.subr.mxu0 0.0
    %494 = vmatpush1.msra.mxu0 0.0
    %495 = vmatprep.subr.mxu0 0.0
    %496 = vmatpush1.msra.mxu0 0.0
    %497 = vmatprep.subr.mxu0 0.0
    %498 = vmatpush1.msra.mxu0 0.0
    %499 = vmatprep.subr.mxu0 0.0
    %500 = vmatpush1.msra.mxu0 0.0
    %501 = vmatprep.subr.mxu0 0.0
    %502 = vmatpush1.msra.mxu0 0.0
    %503 = vmatprep.subr.mxu0 0.0
    %504 = vmatpush1.msra.mxu0 0.0
    %505 = vmatprep.subr.mxu0 0.0
    %506 = vmatpush1.msra.mxu0 0.0
    %507 = vmatprep.subr.mxu0 0.0
    %508 = vmatpush1.msra.mxu0 0.0
    %509 = vmatprep.subr.mxu0 0.0
    %510 = vmatpush1.msra.mxu0 0.0
    %511 = vmatprep.subr.mxu0 0.0
    %512 = vmatpush1.msra.mxu0 0.0
    %513 = vmatprep.subr.mxu0 0.0
    %514 = vmatpush1.msra.mxu0 0.0
    %515 = vmatprep.subr.mxu0 0.0
    %516 = vmatpush1.msra.mxu0 0.0
    %517 = vmatprep.subr.mxu0 0.0
    %518 = vmatpush1.msra.mxu0 0.0
    %519 = vmatprep.subr.mxu0 0.0
    %520 = vmatpush1.msra.mxu0 0.0
    %521 = vmatprep.subr.mxu0 0.0
    %522 = vmatpush1.msra.mxu0 0.0
    %523 = vmatprep.subr.mxu0 0.0
    %524 = vmatpush1.msra.mxu0 0.0
    %525 = vmatprep.subr.mxu0 0.0
    %526 = vmatpush1.msra.mxu0 0.0
    %527 = vmatprep.subr.mxu0 0.0
    %528 = vmatpush1.msra.mxu0 0.0
    %529 = vmatprep.subr.mxu0 0.0
    %530 = vmatpush1.msra.mxu0 0.0
    %531 = vmatprep.subr.mxu0 0.0
    %532 = vmatpush1.msra.mxu0 0.0
    %533 = vmatprep.subr.mxu0 0.0
    %534 = vmatpush1.msra.mxu0 0.0
    %535 = vmatprep.subr.mxu0 0.0
    %536 = vmatpush1.msra.mxu0 0.0
    %537 = vmatprep.subr.mxu0 0.0
    %538 = vmatpush1.msra.mxu0 0.0
    %539 = vmatprep.subr.mxu0 0.0
    %540 = vmatpush1.msra.mxu0 0.0
    %541 = vmatprep.subr.mxu0 0.0
    %542 = vmatpush1.msra.mxu0 0.0
    %543 = vmatprep.subr.mxu0 0.0
    %544 = vmatpush1.msra.mxu0 0.0
    %545 = vmatprep.subr.mxu0 0.0
    %546 = vmatpush1.msra.mxu0 0.0
    %547 = vmatprep.subr.mxu0 0.0
    %548 = vmatpush1.msra.mxu0 0.0
    %549 = vmatprep.subr.mxu0 0.0
    %550 = vmatpush1.msra.mxu0 0.0
    %551 = vmatprep.subr.mxu0 0.0
    %552 = vmatpush1.msra.mxu0 0.0
    %553 = vmatprep.mubr.f32.mxu0 0.0
    %554 = vmatmul.mubr.f32.gmra.mrb[0].mxu0 %v487
    %v555 = vpop.f32.mrb[0].mxu0
    %v556 = vadd.f32 0.0, %v555
    %v557 = vpop.f32.mrb[0].mxu0
    %558 = vdwg.mxu0
    %559 = vrot.lane.b32.xlu0 %v266, 64
    %v560 = vpop.permute.xlu0 %559
    %v563 = vsel %vm272, %v482, 0
    %565 = vmatprep.subr.mxu0 0.0
    %566 = vmatpush1.msra.mxu0 %v560
    %567 = vmatprep.subr.mxu0 0.0
    %568 = vmatpush1.msra.mxu0 0.0
    %569 = vmatprep.subr.mxu0 0.0
    %570 = vmatpush1.msra.mxu0 0.0
    %571 = vmatprep.subr.mxu0 0.0
    %572 = vmatpush1.msra.mxu0 0.0
    %573 = vmatprep.subr.mxu0 0.0
    %574 = vmatpush1.msra.mxu0 0.0
    %575 = vmatprep.subr.mxu0 0.0
    %576 = vmatpush1.msra.mxu0 0.0
    %577 = vmatprep.subr.mxu0 0.0
    %578 = vmatpush1.msra.mxu0 0.0
    %579 = vmatprep.subr.mxu0 0.0
    %580 = vmatpush1.msra.mxu0 0.0
    %581 = vmatprep.subr.mxu0 0.0
    %582 = vmatpush1.msra.mxu0 0.0
    %583 = vmatprep.subr.mxu0 0.0
    %584 = vmatpush1.msra.mxu0 0.0
    %585 = vmatprep.subr.mxu0 0.0
    %586 = vmatpush1.msra.mxu0 0.0
    %587 = vmatprep.subr.mxu0 0.0
    %588 = vmatpush1.msra.mxu0 0.0
    %589 = vmatprep.subr.mxu0 0.0
    %590 = vmatpush1.msra.mxu0 0.0
    %591 = vmatprep.subr.mxu0 0.0
    %592 = vmatpush1.msra.mxu0 0.0
    %593 = vmatprep.subr.mxu0 0.0
    %594 = vmatpush1.msra.mxu0 0.0
    %595 = vmatprep.subr.mxu0 0.0
    %596 = vmatpush1.msra.mxu0 0.0
    %597 = vmatprep.subr.mxu0 0.0
    %598 = vmatpush1.msra.mxu0 0.0
    %599 = vmatprep.subr.mxu0 0.0
    %600 = vmatpush1.msra.mxu0 0.0
    %601 = vmatprep.subr.mxu0 0.0
    %602 = vmatpush1.msra.mxu0 0.0
    %603 = vmatprep.subr.mxu0 0.0
    %604 = vmatpush1.msra.mxu0 0.0
    %605 = vmatprep.subr.mxu0 0.0
    %606 = vmatpush1.msra.mxu0 0.0
    %607 = vmatprep.subr.mxu0 0.0
    %608 = vmatpush1.msra.mxu0 0.0
    %609 = vmatprep.subr.mxu0 0.0
    %610 = vmatpush1.msra.mxu0 0.0
    %611 = vmatprep.subr.mxu0 0.0
    %612 = vmatpush1.msra.mxu0 0.0
    %613 = vmatprep.subr.mxu0 0.0
    %614 = vmatpush1.msra.mxu0 0.0
    %615 = vmatprep.subr.mxu0 0.0
    %616 = vmatpush1.msra.mxu0 0.0
    %617 = vmatprep.subr.mxu0 0.0
    %618 = vmatpush1.msra.mxu0 0.0
    %619 = vmatprep.subr.mxu0 0.0
    %620 = vmatpush1.msra.mxu0 0.0
    %621 = vmatprep.subr.mxu0 0.0
    %622 = vmatpush1.msra.mxu0 0.0
    %623 = vmatprep.subr.mxu0 0.0
    %624 = vmatpush1.msra.mxu0 0.0
    %625 = vmatprep.subr.mxu0 0.0
    %626 = vmatpush1.msra.mxu0 0.0
    %627 = vmatprep.subr.mxu0 0.0
    %628 = vmatpush1.msra.mxu0 0.0
    %629 = vmatprep.mubr.f32.mxu0 0.0
    %630 = vmatmul.mubr.f32.gmra.mrb[0].mxu0 %v563
    %v631 = vpop.f32.mrb[0].mxu0
    %v632 = vadd.f32 0.0, %v631
    %v633 = vpop.f32.mrb[0].mxu0
    %634 = vdwg.mxu0
    %635 = vst.msk [vmem:[#allocation2] sm:$0xff] %vm272, %v556
    %636 = vst.msk [vmem:[#allocation2 + $0x8] sm:$0xff] %vm272, %v632
    %637 = vrot.lane.b32.xlu0 %v261, 120
    %v638 = vpop.permute.xlu0 %637
    %639 = vrot.lane.b32.xlu0 %v261, 88
    %v640 = vpop.permute.xlu0 %639
    %v641 = vsel %vm272, %v638, 0
    %v643 = vsel %vm272, %v640, 0
    %645 = vmatprep.subr.mxu0 0.0
    %646 = vmatpush1.xpose.msra.mxu0 %v643
    %647 = vmatprep.subr.mxu0 0.0
    %648 = vmatpush1.xpose.msra.mxu0 0.0
    %649 = vmatprep.subr.mxu0 0.0
    %650 = vmatpush1.xpose.msra.mxu0 0.0
    %651 = vmatprep.subr.mxu0 0.0
    %652 = vmatpush1.xpose.msra.mxu0 0.0
    %653 = vmatprep.subr.mxu0 0.0
    %654 = vmatpush1.xpose.msra.mxu0 0.0
    %655 = vmatprep.subr.mxu0 0.0
    %656 = vmatpush1.xpose.msra.mxu0 0.0
    %657 = vmatprep.subr.mxu0 0.0
    %658 = vmatpush1.xpose.msra.mxu0 0.0
    %659 = vmatprep.subr.mxu0 0.0
    %660 = vmatpush1.xpose.msra.mxu0 0.0
    %661 = vmatprep.subr.mxu0 0.0
    %662 = vmatpush1.xpose.msra.mxu0 0.0
    %663 = vmatprep.subr.mxu0 0.0
    %664 = vmatpush1.xpose.msra.mxu0 0.0
    %665 = vmatprep.subr.mxu0 0.0
    %666 = vmatpush1.xpose.msra.mxu0 0.0
    %667 = vmatprep.subr.mxu0 0.0
    %668 = vmatpush1.xpose.msra.mxu0 0.0
    %669 = vmatprep.subr.mxu0 0.0
    %670 = vmatpush1.xpose.msra.mxu0 0.0
    %671 = vmatprep.subr.mxu0 0.0
    %672 = vmatpush1.xpose.msra.mxu0 0.0
    %673 = vmatprep.subr.mxu0 0.0
    %674 = vmatpush1.xpose.msra.mxu0 0.0
    %675 = vmatprep.subr.mxu0 0.0
    %676 = vmatpush1.xpose.msra.mxu0 0.0
    %677 = vmatprep.subr.mxu0 0.0
    %678 = vmatpush1.xpose.msra.mxu0 0.0
    %679 = vmatprep.subr.mxu0 0.0
    %680 = vmatpush1.xpose.msra.mxu0 0.0
    %681 = vmatprep.subr.mxu0 0.0
    %682 = vmatpush1.xpose.msra.mxu0 0.0
    %683 = vmatprep.subr.mxu0 0.0
    %684 = vmatpush1.xpose.msra.mxu0 0.0
    %685 = vmatprep.subr.mxu0 0.0
    %686 = vmatpush1.xpose.msra.mxu0 0.0
    %687 = vmatprep.subr.mxu0 0.0
    %688 = vmatpush1.xpose.msra.mxu0 0.0
    %689 = vmatprep.subr.mxu0 0.0
    %690 = vmatpush1.xpose.msra.mxu0 0.0
    %691 = vmatprep.subr.mxu0 0.0
    %692 = vmatpush1.xpose.msra.mxu0 0.0
    %693 = vmatprep.subr.mxu0 0.0
    %694 = vmatpush1.xpose.msra.mxu0 0.0
    %695 = vmatprep.subr.mxu0 0.0
    %696 = vmatpush1.xpose.msra.mxu0 0.0
    %697 = vmatprep.subr.mxu0 0.0
    %698 = vmatpush1.xpose.msra.mxu0 0.0
    %699 = vmatprep.subr.mxu0 0.0
    %700 = vmatpush1.xpose.msra.mxu0 0.0
    %701 = vmatprep.subr.mxu0 0.0
    %702 = vmatpush1.xpose.msra.mxu0 0.0
    %703 = vmatprep.subr.mxu0 0.0
    %704 = vmatpush1.xpose.msra.mxu0 0.0
    %705 = vmatprep.subr.mxu0 0.0
    %706 = vmatpush1.xpose.msra.mxu0 0.0
    %707 = vmatprep.subr.mxu0 0.0
    %708 = vmatpush1.xpose.msra.mxu0 0.0
    %709 = vmatprep.mubr.f32.mxu0 0.0
    %710 = vmatmul.mubr.f32.gmra.mrb[0].mxu0 %v641
    %v711 = vpop.f32.mrb[0].mxu0
    %v712 = vadd.f32 0.0, %v711
    %v713 = vpop.f32.mrb[0].mxu0
    %714 = vdwg.mxu0
    %715 = vrot.lane.b32.xlu0 %v266, 120
    %v716 = vpop.permute.xlu0 %715
    %717 = vrot.lane.b32.xlu0 %v266, 88
    %v718 = vpop.permute.xlu0 %717
    %v719 = vsel %vm272, %v716, 0
    %v721 = vsel %vm272, %v718, 0
    %723 = vmatprep.subr.mxu0 0.0
    %724 = vmatpush1.xpose.msra.mxu0 %v721
    %725 = vmatprep.subr.mxu0 0.0
    %726 = vmatpush1.xpose.msra.mxu0 0.0
    %727 = vmatprep.subr.mxu0 0.0
    %728 = vmatpush1.xpose.msra.mxu0 0.0
    %729 = vmatprep.subr.mxu0 0.0
    %730 = vmatpush1.xpose.msra.mxu0 0.0
    %731 = vmatprep.subr.mxu0 0.0
    %732 = vmatpush1.xpose.msra.mxu0 0.0
    %733 = vmatprep.subr.mxu0 0.0
    %734 = vmatpush1.xpose.msra.mxu0 0.0
    %735 = vmatprep.subr.mxu0 0.0
    %736 = vmatpush1.xpose.msra.mxu0 0.0
    %737 = vmatprep.subr.mxu0 0.0
    %738 = vmatpush1.xpose.msra.mxu0 0.0
    %739 = vmatprep.subr.mxu0 0.0
    %740 = vmatpush1.xpose.msra.mxu0 0.0
    %741 = vmatprep.subr.mxu0 0.0
    %742 = vmatpush1.xpose.msra.mxu0 0.0
    %743 = vmatprep.subr.mxu0 0.0
    %744 = vmatpush1.xpose.msra.mxu0 0.0
    %745 = vmatprep.subr.mxu0 0.0
    %746 = vmatpush1.xpose.msra.mxu0 0.0
    %747 = vmatprep.subr.mxu0 0.0
    %748 = vmatpush1.xpose.msra.mxu0 0.0
    %749 = vmatprep.subr.mxu0 0.0
    %750 = vmatpush1.xpose.msra.mxu0 0.0
    %751 = vmatprep.subr.mxu0 0.0
    %752 = vmatpush1.xpose.msra.mxu0 0.0
    %753 = vmatprep.subr.mxu0 0.0
    %754 = vmatpush1.xpose.msra.mxu0 0.0
    %755 = vmatprep.subr.mxu0 0.0
    %756 = vmatpush1.xpose.msra.mxu0 0.0
    %757 = vmatprep.subr.mxu0 0.0
    %758 = vmatpush1.xpose.msra.mxu0 0.0
    %759 = vmatprep.subr.mxu0 0.0
    %760 = vmatpush1.xpose.msra.mxu0 0.0
    %761 = vmatprep.subr.mxu0 0.0
    %762 = vmatpush1.xpose.msra.mxu0 0.0
    %763 = vmatprep.subr.mxu0 0.0
    %764 = vmatpush1.xpose.msra.mxu0 0.0
    %765 = vmatprep.subr.mxu0 0.0
    %766 = vmatpush1.xpose.msra.mxu0 0.0
    %767 = vmatprep.subr.mxu0 0.0
    %768 = vmatpush1.xpose.msra.mxu0 0.0
    %769 = vmatprep.subr.mxu0 0.0
    %770 = vmatpush1.xpose.msra.mxu0 0.0
    %771 = vmatprep.subr.mxu0 0.0
    %772 = vmatpush1.xpose.msra.mxu0 0.0
    %773 = vmatprep.subr.mxu0 0.0
    %774 = vmatpush1.xpose.msra.mxu0 0.0
    %775 = vmatprep.subr.mxu0 0.0
    %776 = vmatpush1.xpose.msra.mxu0 0.0
    %777 = vmatprep.subr.mxu0 0.0
    %778 = vmatpush1.xpose.msra.mxu0 0.0
    %779 = vmatprep.subr.mxu0 0.0
    %780 = vmatpush1.xpose.msra.mxu0 0.0
    %781 = vmatprep.subr.mxu0 0.0
    %782 = vmatpush1.xpose.msra.mxu0 0.0
    %783 = vmatprep.subr.mxu0 0.0
    %784 = vmatpush1.xpose.msra.mxu0 0.0
    %785 = vmatprep.subr.mxu0 0.0
    %786 = vmatpush1.xpose.msra.mxu0 0.0
    %787 = vmatprep.mubr.f32.mxu0 0.0
    %788 = vmatmul.mubr.f32.gmra.mrb[0].mxu0 %v719
    %v789 = vpop.f32.mrb[0].mxu0
    %v790 = vadd.f32 0.0, %v789
    %v791 = vpop.f32.mrb[0].mxu0
    %792 = vdwg.mxu0
    %v793 = vmul.f32 %v712, 0.35355338
    %v794 = vmul.f32 %v790, 0.35355338
    %v795 = vadd.f32 %v793, %v452
    %v796 = vadd.f32 %v794, %v456
    %v797 = vsel %vm272, %v795, -inf
    %798 = vmax.xlane.f32.xlu0 %v797
    %v799 = vpop.xlane.xlu0 %798
    %v800 = vsel %vm272, %v796, -inf
    %801 = vmax.xlane.f32.xlu0 %v800
    %v802 = vpop.xlane.xlu0 %801
    %v803 = vsub.f32 %v795, %v799
    %v804 = vsub.f32 %v796, %v802
    %v805 = vmul.f32 %v803, 1.442695
    %v806 = vpow.pop %v805
    %v807 = vmul.f32 %v804, 1.442695
    %v808 = vpow.pop %v807
    %v809 = vsel %vm272, %v806, 0.0
    %810 = vadd.xlane.f32.xlu0 %v809
    %v811 = vpop.xlane.xlu0 %810
    %v812 = vsel %vm272, %v808, 0.0
    %813 = vadd.xlane.f32.xlu0 %v812
    %v814 = vpop.xlane.xlu0 %813
    %v815 = vrcp.pop %v811
    %v816 = vmul.f32 %v806, %v815
    %v817 = vrcp.pop %v814
    %v818 = vmul.f32 %v808, %v817
    %819 = vrot.lane.b32.xlu0 %v261, 56
    %v820 = vpop.permute.xlu0 %819
    %v823 = vsel %vm272, %v816, 0
    %825 = vmatprep.subr.mxu0 0.0
    %826 = vmatpush1.msra.mxu0 %v820
    %827 = vmatprep.subr.mxu0 0.0
    %828 = vmatpush1.msra.mxu0 0.0
    %829 = vmatprep.subr.mxu0 0.0
    %830 = vmatpush1.msra.mxu0 0.0
    %831 = vmatprep.subr.mxu0 0.0
    %832 = vmatpush1.msra.mxu0 0.0
    %833 = vmatprep.subr.mxu0 0.0
    %834 = vmatpush1.msra.mxu0 0.0
    %835 = vmatprep.subr.mxu0 0.0
    %836 = vmatpush1.msra.mxu0 0.0
    %837 = vmatprep.subr.mxu0 0.0
    %838 = vmatpush1.msra.mxu0 0.0
    %839 = vmatprep.subr.mxu0 0.0
    %840 = vmatpush1.msra.mxu0 0.0
    %841 = vmatprep.subr.mxu0 0.0
    %842 = vmatpush1.msra.mxu0 0.0
    %843 = vmatprep.subr.mxu0 0.0
    %844 = vmatpush1.msra.mxu0 0.0
    %845 = vmatprep.subr.mxu0 0.0
    %846 = vmatpush1.msra.mxu0 0.0
    %847 = vmatprep.subr.mxu0 0.0
    %848 = vmatpush1.msra.mxu0 0.0
    %849 = vmatprep.subr.mxu0 0.0
    %850 = vmatpush1.msra.mxu0 0.0
    %851 = vmatprep.subr.mxu0 0.0
    %852 = vmatpush1.msra.mxu0 0.0
    %853 = vmatprep.subr.mxu0 0.0
    %854 = vmatpush1.msra.mxu0 0.0
    %855 = vmatprep.subr.mxu0 0.0
    %856 = vmatpush1.msra.mxu0 0.0
    %857 = vmatprep.subr.mxu0 0.0
    %858 = vmatpush1.msra.mxu0 0.0
    %859 = vmatprep.subr.mxu0 0.0
    %860 = vmatpush1.msra.mxu0 0.0
    %861 = vmatprep.subr.mxu0 0.0
    %862 = vmatpush1.msra.mxu0 0.0
    %863 = vmatprep.subr.mxu0 0.0
    %864 = vmatpush1.msra.mxu0 0.0
    %865 = vmatprep.subr.mxu0 0.0
    %866 = vmatpush1.msra.mxu0 0.0
    %867 = vmatprep.subr.mxu0 0.0
    %868 = vmatpush1.msra.mxu0 0.0
    %869 = vmatprep.subr.mxu0 0.0
    %870 = vmatpush1.msra.mxu0 0.0
    %871 = vmatprep.subr.mxu0 0.0
    %872 = vmatpush1.msra.mxu0 0.0
    %873 = vmatprep.subr.mxu0 0.0
    %874 = vmatpush1.msra.mxu0 0.0
    %875 = vmatprep.subr.mxu0 0.0
    %876 = vmatpush1.msra.mxu0 0.0
    %877 = vmatprep.subr.mxu0 0.0
    %878 = vmatpush1.msra.mxu0 0.0
    %879 = vmatprep.subr.mxu0 0.0
    %880 = vmatpush1.msra.mxu0 0.0
    %881 = vmatprep.subr.mxu0 0.0
    %882 = vmatpush1.msra.mxu0 0.0
    %883 = vmatprep.subr.mxu0 0.0
    %884 = vmatpush1.msra.mxu0 0.0
    %885 = vmatprep.subr.mxu0 0.0
    %886 = vmatpush1.msra.mxu0 0.0
    %887 = vmatprep.subr.mxu0 0.0
    %888 = vmatpush1.msra.mxu0 0.0
    %889 = vmatprep.mubr.f32.mxu0 0.0
    %890 = vmatmul.mubr.f32.gmra.mrb[0].mxu0 %v823
    %v891 = vpop.f32.mrb[0].mxu0
    %v892 = vadd.f32 0.0, %v891
    %v893 = vpop.f32.mrb[0].mxu0
    %894 = vdwg.mxu0
    %895 = vrot.lane.b32.xlu0 %v266, 56
    %v896 = vpop.permute.xlu0 %895
    %v899 = vsel %vm272, %v818, 0
    %901 = vmatprep.subr.mxu0 0.0
    %902 = vmatpush1.msra.mxu0 %v896
    %903 = vmatprep.subr.mxu0 0.0
    %904 = vmatpush1.msra.mxu0 0.0
    %905 = vmatprep.subr.mxu0 0.0
    %906 = vmatpush1.msra.mxu0 0.0
    %907 = vmatprep.subr.mxu0 0.0
    %908 = vmatpush1.msra.mxu0 0.0
    %909 = vmatprep.subr.mxu0 0.0
    %910 = vmatpush1.msra.mxu0 0.0
    %911 = vmatprep.subr.mxu0 0.0
    %912 = vmatpush1.msra.mxu0 0.0
    %913 = vmatprep.subr.mxu0 0.0
    %914 = vmatpush1.msra.mxu0 0.0
    %915 = vmatprep.subr.mxu0 0.0
    %916 = vmatpush1.msra.mxu0 0.0
    %917 = vmatprep.subr.mxu0 0.0
    %918 = vmatpush1.msra.mxu0 0.0
    %919 = vmatprep.subr.mxu0 0.0
    %920 = vmatpush1.msra.mxu0 0.0
    %921 = vmatprep.subr.mxu0 0.0
    %922 = vmatpush1.msra.mxu0 0.0
    %923 = vmatprep.subr.mxu0 0.0
    %924 = vmatpush1.msra.mxu0 0.0
    %925 = vmatprep.subr.mxu0 0.0
    %926 = vmatpush1.msra.mxu0 0.0
    %927 = vmatprep.subr.mxu0 0.0
    %928 = vmatpush1.msra.mxu0 0.0
    %929 = vmatprep.subr.mxu0 0.0
    %930 = vmatpush1.msra.mxu0 0.0
    %931 = vmatprep.subr.mxu0 0.0
    %932 = vmatpush1.msra.mxu0 0.0
    %933 = vmatprep.subr.mxu0 0.0
    %934 = vmatpush1.msra.mxu0 0.0
    %935 = vmatprep.subr.mxu0 0.0
    %936 = vmatpush1.msra.mxu0 0.0
    %937 = vmatprep.subr.mxu0 0.0
    %938 = vmatpush1.msra.mxu0 0.0
    %939 = vmatprep.subr.mxu0 0.0
    %940 = vmatpush1.msra.mxu0 0.0
    %941 = vmatprep.subr.mxu0 0.0
    %942 = vmatpush1.msra.mxu0 0.0
    %943 = vmatprep.subr.mxu0 0.0
    %944 = vmatpush1.msra.mxu0 0.0
    %945 = vmatprep.subr.mxu0 0.0
    %946 = vmatpush1.msra.mxu0 0.0
    %947 = vmatprep.subr.mxu0 0.0
    %948 = vmatpush1.msra.mxu0 0.0
    %949 = vmatprep.subr.mxu0 0.0
    %950 = vmatpush1.msra.mxu0 0.0
    %951 = vmatprep.subr.mxu0 0.0
    %952 = vmatpush1.msra.mxu0 0.0
    %953 = vmatprep.subr.mxu0 0.0
    %954 = vmatpush1.msra.mxu0 0.0
    %955 = vmatprep.subr.mxu0 0.0
    %956 = vmatpush1.msra.mxu0 0.0
    %957 = vmatprep.subr.mxu0 0.0
    %958 = vmatpush1.msra.mxu0 0.0
    %959 = vmatprep.subr.mxu0 0.0
    %960 = vmatpush1.msra.mxu0 0.0
    %961 = vmatprep.subr.mxu0 0.0
    %962 = vmatpush1.msra.mxu0 0.0
    %963 = vmatprep.subr.mxu0 0.0
    %964 = vmatpush1.msra.mxu0 0.0
    %965 = vmatprep.mubr.f32.mxu0 0.0
    %966 = vmatmul.mubr.f32.gmra.mrb[0].mxu0 %v899
    %v967 = vpop.f32.mrb[0].mxu0
    %v968 = vadd.f32 0.0, %v967
    %v969 = vpop.f32.mrb[0].mxu0
    %970 = vdwg.mxu0
    %973 = vrot.lane.b32.xlu0 %v892, 8
    %v974 = vpop.permute.xlu0 %973
    %975 = vrot.lane.b32.xlu0 %v968, 8
    %v976 = vpop.permute.xlu0 %975
    %vm979 = vcmask 130112
    %980 = vst.msk [vmem:[#allocation2] sm:$0xff] %vm979, %v974
    %981 = vst.msk [vmem:[#allocation2 + $0x8] sm:$0xff] %vm979, %v976
    %982 = vrot.lane.b32.xlu0 %v261, 112
    %v983 = vpop.permute.xlu0 %982
    %984 = vrot.lane.b32.xlu0 %v261, 80
    %v985 = vpop.permute.xlu0 %984
    %v986 = vsel %vm272, %v983, 0
    %v988 = vsel %vm272, %v985, 0
    %990 = vmatprep.subr.mxu0 0.0
    %991 = vmatpush1.xpose.msra.mxu0 %v988
    %992 = vmatprep.subr.mxu0 0.0
    %993 = vmatpush1.xpose.msra.mxu0 0.0
    %994 = vmatprep.subr.mxu0 0.0
    %995 = vmatpush1.xpose.msra.mxu0 0.0
    %996 = vmatprep.subr.mxu0 0.0
    %997 = vmatpush1.xpose.msra.mxu0 0.0
    %998 = vmatprep.subr.mxu0 0.0
    %999 = vmatpush1.xpose.msra.mxu0 0.0
    %1000 = vmatprep.subr.mxu0 0.0
    %1001 = vmatpush1.xpose.msra.mxu0 0.0
    %1002 = vmatprep.subr.mxu0 0.0
    %1003 = vmatpush1.xpose.msra.mxu0 0.0
    %1004 = vmatprep.subr.mxu0 0.0
    %1005 = vmatpush1.xpose.msra.mxu0 0.0
    %1006 = vmatprep.subr.mxu0 0.0
    %1007 = vmatpush1.xpose.msra.mxu0 0.0
    %1008 = vmatprep.subr.mxu0 0.0
    %1009 = vmatpush1.xpose.msra.mxu0 0.0
    %1010 = vmatprep.subr.mxu0 0.0
    %1011 = vmatpush1.xpose.msra.mxu0 0.0
    %1012 = vmatprep.subr.mxu0 0.0
    %1013 = vmatpush1.xpose.msra.mxu0 0.0
    %1014 = vmatprep.subr.mxu0 0.0
    %1015 = vmatpush1.xpose.msra.mxu0 0.0
    %1016 = vmatprep.subr.mxu0 0.0
    %1017 = vmatpush1.xpose.msra.mxu0 0.0
    %1018 = vmatprep.subr.mxu0 0.0
    %1019 = vmatpush1.xpose.msra.mxu0 0.0
    %1020 = vmatprep.subr.mxu0 0.0
    %1021 = vmatpush1.xpose.msra.mxu0 0.0
    %1022 = vmatprep.subr.mxu0 0.0
    %1023 = vmatpush1.xpose.msra.mxu0 0.0
    %1024 = vmatprep.subr.mxu0 0.0
    %1025 = vmatpush1.xpose.msra.mxu0 0.0
    %1026 = vmatprep.subr.mxu0 0.0
    %1027 = vmatpush1.xpose.msra.mxu0 0.0
    %1028 = vmatprep.subr.mxu0 0.0
    %1029 = vmatpush1.xpose.msra.mxu0 0.0
    %1030 = vmatprep.subr.mxu0 0.0
    %1031 = vmatpush1.xpose.msra.mxu0 0.0
    %1032 = vmatprep.subr.mxu0 0.0
    %1033 = vmatpush1.xpose.msra.mxu0 0.0
    %1034 = vmatprep.subr.mxu0 0.0
    %1035 = vmatpush1.xpose.msra.mxu0 0.0
    %1036 = vmatprep.subr.mxu0 0.0
    %1037 = vmatpush1.xpose.msra.mxu0 0.0
    %1038 = vmatprep.subr.mxu0 0.0
    %1039 = vmatpush1.xpose.msra.mxu0 0.0
    %1040 = vmatprep.subr.mxu0 0.0
    %1041 = vmatpush1.xpose.msra.mxu0 0.0
    %1042 = vmatprep.subr.mxu0 0.0
    %1043 = vmatpush1.xpose.msra.mxu0 0.0
    %1044 = vmatprep.subr.mxu0 0.0
    %1045 = vmatpush1.xpose.msra.mxu0 0.0
    %1046 = vmatprep.subr.mxu0 0.0
    %1047 = vmatpush1.xpose.msra.mxu0 0.0
    %1048 = vmatprep.subr.mxu0 0.0
    %1049 = vmatpush1.xpose.msra.mxu0 0.0
    %1050 = vmatprep.subr.mxu0 0.0
    %1051 = vmatpush1.xpose.msra.mxu0 0.0
    %1052 = vmatprep.subr.mxu0 0.0
    %1053 = vmatpush1.xpose.msra.mxu0 0.0
    %1054 = vmatprep.mubr.f32.mxu0 0.0
    %1055 = vmatmul.mubr.f32.gmra.mrb[0].mxu0 %v986
    %v1056 = vpop.f32.mrb[0].mxu0
    %v1057 = vadd.f32 0.0, %v1056
    %v1058 = vpop.f32.mrb[0].mxu0
    %1059 = vdwg.mxu0
    %1060 = vrot.lane.b32.xlu0 %v266, 112
    %v1061 = vpop.permute.xlu0 %1060
    %1062 = vrot.lane.b32.xlu0 %v266, 80
    %v1063 = vpop.permute.xlu0 %1062
    %v1064 = vsel %vm272, %v1061, 0
    %v1066 = vsel %vm272, %v1063, 0
    %1068 = vmatprep.subr.mxu0 0.0
    %1069 = vmatpush1.xpose.msra.mxu0 %v1066
    %1070 = vmatprep.subr.mxu0 0.0
    %1071 = vmatpush1.xpose.msra.mxu0 0.0
    %1072 = vmatprep.subr.mxu0 0.0
    %1073 = vmatpush1.xpose.msra.mxu0 0.0
    %1074 = vmatprep.subr.mxu0 0.0
    %1075 = vmatpush1.xpose.msra.mxu0 0.0
    %1076 = vmatprep.subr.mxu0 0.0
    %1077 = vmatpush1.xpose.msra.mxu0 0.0
    %1078 = vmatprep.subr.mxu0 0.0
    %1079 = vmatpush1.xpose.msra.mxu0 0.0
    %1080 = vmatprep.subr.mxu0 0.0
    %1081 = vmatpush1.xpose.msra.mxu0 0.0
    %1082 = vmatprep.subr.mxu0 0.0
    %1083 = vmatpush1.xpose.msra.mxu0 0.0
    %1084 = vmatprep.subr.mxu0 0.0
    %1085 = vmatpush1.xpose.msra.mxu0 0.0
    %1086 = vmatprep.subr.mxu0 0.0
    %1087 = vmatpush1.xpose.msra.mxu0 0.0
    %1088 = vmatprep.subr.mxu0 0.0
    %1089 = vmatpush1.xpose.msra.mxu0 0.0
    %1090 = vmatprep.subr.mxu0 0.0
    %1091 = vmatpush1.xpose.msra.mxu0 0.0
    %1092 = vmatprep.subr.mxu0 0.0
    %1093 = vmatpush1.xpose.msra.mxu0 0.0
    %1094 = vmatprep.subr.mxu0 0.0
    %1095 = vmatpush1.xpose.msra.mxu0 0.0
    %1096 = vmatprep.subr.mxu0 0.0
    %1097 = vmatpush1.xpose.msra.mxu0 0.0
    %1098 = vmatprep.subr.mxu0 0.0
    %1099 = vmatpush1.xpose.msra.mxu0 0.0
    %1100 = vmatprep.subr.mxu0 0.0
    %1101 = vmatpush1.xpose.msra.mxu0 0.0
    %1102 = vmatprep.subr.mxu0 0.0
    %1103 = vmatpush1.xpose.msra.mxu0 0.0
    %1104 = vmatprep.subr.mxu0 0.0
    %1105 = vmatpush1.xpose.msra.mxu0 0.0
    %1106 = vmatprep.subr.mxu0 0.0
    %1107 = vmatpush1.xpose.msra.mxu0 0.0
    %1108 = vmatprep.subr.mxu0 0.0
    %1109 = vmatpush1.xpose.msra.mxu0 0.0
    %1110 = vmatprep.subr.mxu0 0.0
    %1111 = vmatpush1.xpose.msra.mxu0 0.0
    %1112 = vmatprep.subr.mxu0 0.0
    %1113 = vmatpush1.xpose.msra.mxu0 0.0
    %1114 = vmatprep.subr.mxu0 0.0
    %1115 = vmatpush1.xpose.msra.mxu0 0.0
    %1116 = vmatprep.subr.mxu0 0.0
    %1117 = vmatpush1.xpose.msra.mxu0 0.0
    %1118 = vmatprep.subr.mxu0 0.0
    %1119 = vmatpush1.xpose.msra.mxu0 0.0
    %1120 = vmatprep.subr.mxu0 0.0
    %1121 = vmatpush1.xpose.msra.mxu0 0.0
    %1122 = vmatprep.subr.mxu0 0.0
    %1123 = vmatpush1.xpose.msra.mxu0 0.0
    %1124 = vmatprep.subr.mxu0 0.0
    %1125 = vmatpush1.xpose.msra.mxu0 0.0
    %1126 = vmatprep.subr.mxu0 0.0
    %1127 = vmatpush1.xpose.msra.mxu0 0.0
    %1128 = vmatprep.subr.mxu0 0.0
    %1129 = vmatpush1.xpose.msra.mxu0 0.0
    %1130 = vmatprep.subr.mxu0 0.0
    %1131 = vmatpush1.xpose.msra.mxu0 0.0
    %1132 = vmatprep.mubr.f32.mxu0 0.0
    %1133 = vmatmul.mubr.f32.gmra.mrb[0].mxu0 %v1064
    %v1134 = vpop.f32.mrb[0].mxu0
    %v1135 = vadd.f32 0.0, %v1134
    %v1136 = vpop.f32.mrb[0].mxu0
    %1137 = vdwg.mxu0
    %v1138 = vmul.f32 %v1057, 0.35355338
    %v1139 = vmul.f32 %v1135, 0.35355338
    %v1140 = vadd.f32 %v1138, %v452
    %v1141 = vadd.f32 %v1139, %v456
    %v1142 = vsel %vm272, %v1140, -inf
    %1143 = vmax.xlane.f32.xlu0 %v1142
    %v1144 = vpop.xlane.xlu0 %1143
    %v1145 = vsel %vm272, %v1141, -inf
    %1146 = vmax.xlane.f32.xlu0 %v1145
    %v1147 = vpop.xlane.xlu0 %1146
    %v1148 = vsub.f32 %v1140, %v1144
    %v1149 = vsub.f32 %v1141, %v1147
    %v1150 = vmul.f32 %v1148, 1.442695
    %v1151 = vpow.pop %v1150
    %v1152 = vmul.f32 %v1149, 1.442695
    %v1153 = vpow.pop %v1152
    %v1154 = vsel %vm272, %v1151, 0.0
    %1155 = vadd.xlane.f32.xlu0 %v1154
    %v1156 = vpop.xlane.xlu0 %1155
    %v1157 = vsel %vm272, %v1153, 0.0
    %1158 = vadd.xlane.f32.xlu0 %v1157
    %v1159 = vpop.xlane.xlu0 %1158
    %v1160 = vrcp.pop %v1156
    %v1161 = vmul.f32 %v1151, %v1160
    %v1162 = vrcp.pop %v1159
    %v1163 = vmul.f32 %v1153, %v1162
    %1164 = vrot.lane.b32.xlu0 %v261, 48
    %v1165 = vpop.permute.xlu0 %1164
    %v1168 = vsel %vm272, %v1161, 0
    %1170 = vmatprep.subr.mxu0 0.0
    %1171 = vmatpush1.msra.mxu0 %v1165
    %1172 = vmatprep.subr.mxu0 0.0
    %1173 = vmatpush1.msra.mxu0 0.0
    %1174 = vmatprep.subr.mxu0 0.0
    %1175 = vmatpush1.msra.mxu0 0.0
    %1176 = vmatprep.subr.mxu0 0.0
    %1177 = vmatpush1.msra.mxu0 0.0
    %1178 = vmatprep.subr.mxu0 0.0
    %1179 = vmatpush1.msra.mxu0 0.0
    %1180 = vmatprep.subr.mxu0 0.0
    %1181 = vmatpush1.msra.mxu0 0.0
    %1182 = vmatprep.subr.mxu0 0.0
    %1183 = vmatpush1.msra.mxu0 0.0
    %1184 = vmatprep.subr.mxu0 0.0
    %1185 = vmatpush1.msra.mxu0 0.0
    %1186 = vmatprep.subr.mxu0 0.0
    %1187 = vmatpush1.msra.mxu0 0.0
    %1188 = vmatprep.subr.mxu0 0.0
    %1189 = vmatpush1.msra.mxu0 0.0
    %1190 = vmatprep.subr.mxu0 0.0
    %1191 = vmatpush1.msra.mxu0 0.0
    %1192 = vmatprep.subr.mxu0 0.0
    %1193 = vmatpush1.msra.mxu0 0.0
    %1194 = vmatprep.subr.mxu0 0.0
    %1195 = vmatpush1.msra.mxu0 0.0
    %1196 = vmatprep.subr.mxu0 0.0
    %1197 = vmatpush1.msra.mxu0 0.0
    %1198 = vmatprep.subr.mxu0 0.0
    %1199 = vmatpush1.msra.mxu0 0.0
    %1200 = vmatprep.subr.mxu0 0.0
    %1201 = vmatpush1.msra.mxu0 0.0
    %1202 = vmatprep.subr.mxu0 0.0
    %1203 = vmatpush1.msra.mxu0 0.0
    %1204 = vmatprep.subr.mxu0 0.0
    %1205 = vmatpush1.msra.mxu0 0.0
    %1206 = vmatprep.subr.mxu0 0.0
    %1207 = vmatpush1.msra.mxu0 0.0
    %1208 = vmatprep.subr.mxu0 0.0
    %1209 = vmatpush1.msra.mxu0 0.0
    %1210 = vmatprep.subr.mxu0 0.0
    %1211 = vmatpush1.msra.mxu0 0.0
    %1212 = vmatprep.subr.mxu0 0.0
    %1213 = vmatpush1.msra.mxu0 0.0
    %1214 = vmatprep.subr.mxu0 0.0
    %1215 = vmatpush1.msra.mxu0 0.0
    %1216 = vmatprep.subr.mxu0 0.0
    %1217 = vmatpush1.msra.mxu0 0.0
    %1218 = vmatprep.subr.mxu0 0.0
    %1219 = vmatpush1.msra.mxu0 0.0
    %1220 = vmatprep.subr.mxu0 0.0
    %1221 = vmatpush1.msra.mxu0 0.0
    %1222 = vmatprep.subr.mxu0 0.0
    %1223 = vmatpush1.msra.mxu0 0.0
    %1224 = vmatprep.subr.mxu0 0.0
    %1225 = vmatpush1.msra.mxu0 0.0
    %1226 = vmatprep.subr.mxu0 0.0
    %1227 = vmatpush1.msra.mxu0 0.0
    %1228 = vmatprep.subr.mxu0 0.0
    %1229 = vmatpush1.msra.mxu0 0.0
    %1230 = vmatprep.subr.mxu0 0.0
    %1231 = vmatpush1.msra.mxu0 0.0
    %1232 = vmatprep.subr.mxu0 0.0
    %1233 = vmatpush1.msra.mxu0 0.0
    %1234 = vmatprep.mubr.f32.mxu0 0.0
    %1235 = vmatmul.mubr.f32.gmra.mrb[0].mxu0 %v1168
    %v1236 = vpop.f32.mrb[0].mxu0
    %v1237 = vadd.f32 0.0, %v1236
    %v1238 = vpop.f32.mrb[0].mxu0
    %1239 = vdwg.mxu0
    %1240 = vrot.lane.b32.xlu0 %v266, 48
    %v1241 = vpop.permute.xlu0 %1240
    %v1244 = vsel %vm272, %v1163, 0
    %1246 = vmatprep.subr.mxu0 0.0
    %1247 = vmatpush1.msra.mxu0 %v1241
    %1248 = vmatprep.subr.mxu0 0.0
    %1249 = vmatpush1.msra.mxu0 0.0
    %1250 = vmatprep.subr.mxu0 0.0
    %1251 = vmatpush1.msra.mxu0 0.0
    %1252 = vmatprep.subr.mxu0 0.0
    %1253 = vmatpush1.msra.mxu0 0.0
    %1254 = vmatprep.subr.mxu0 0.0
    %1255 = vmatpush1.msra.mxu0 0.0
    %1256 = vmatprep.subr.mxu0 0.0
    %1257 = vmatpush1.msra.mxu0 0.0
    %1258 = vmatprep.subr.mxu0 0.0
    %1259 = vmatpush1.msra.mxu0 0.0
    %1260 = vmatprep.subr.mxu0 0.0
    %1261 = vmatpush1.msra.mxu0 0.0
    %1262 = vmatprep.subr.mxu0 0.0
    %1263 = vmatpush1.msra.mxu0 0.0
    %1264 = vmatprep.subr.mxu0 0.0
    %1265 = vmatpush1.msra.mxu0 0.0
    %1266 = vmatprep.subr.mxu0 0.0
    %1267 = vmatpush1.msra.mxu0 0.0
    %1268 = vmatprep.subr.mxu0 0.0
    %1269 = vmatpush1.msra.mxu0 0.0
    %1270 = vmatprep.subr.mxu0 0.0
    %1271 = vmatpush1.msra.mxu0 0.0
    %1272 = vmatprep.subr.mxu0 0.0
    %1273 = vmatpush1.msra.mxu0 0.0
    %1274 = vmatprep.subr.mxu0 0.0
    %1275 = vmatpush1.msra.mxu0 0.0
    %1276 = vmatprep.subr.mxu0 0.0
    %1277 = vmatpush1.msra.mxu0 0.0
    %1278 = vmatprep.subr.mxu0 0.0
    %1279 = vmatpush1.msra.mxu0 0.0
    %1280 = vmatprep.subr.mxu0 0.0
    %1281 = vmatpush1.msra.mxu0 0.0
    %1282 = vmatprep.subr.mxu0 0.0
    %1283 = vmatpush1.msra.mxu0 0.0
    %1284 = vmatprep.subr.mxu0 0.0
    %1285 = vmatpush1.msra.mxu0 0.0
    %1286 = vmatprep.subr.mxu0 0.0
    %1287 = vmatpush1.msra.mxu0 0.0
    %1288 = vmatprep.subr.mxu0 0.0
    %1289 = vmatpush1.msra.mxu0 0.0
    %1290 = vmatprep.subr.mxu0 0.0
    %1291 = vmatpush1.msra.mxu0 0.0
    %1292 = vmatprep.subr.mxu0 0.0
    %1293 = vmatpush1.msra.mxu0 0.0
    %1294 = vmatprep.subr.mxu0 0.0
    %1295 = vmatpush1.msra.mxu0 0.0
    %1296 = vmatprep.subr.mxu0 0.0
    %1297 = vmatpush1.msra.mxu0 0.0
    %1298 = vmatprep.subr.mxu0 0.0
    %1299 = vmatpush1.msra.mxu0 0.0
    %1300 = vmatprep.subr.mxu0 0.0
    %1301 = vmatpush1.msra.mxu0 0.0
    %1302 = vmatprep.subr.mxu0 0.0
    %1303 = vmatpush1.msra.mxu0 0.0
    %1304 = vmatprep.subr.mxu0 0.0
    %1305 = vmatpush1.msra.mxu0 0.0
    %1306 = vmatprep.subr.mxu0 0.0
    %1307 = vmatpush1.msra.mxu0 0.0
    %1308 = vmatprep.subr.mxu0 0.0
    %1309 = vmatpush1.msra.mxu0 0.0
    %1310 = vmatprep.mubr.f32.mxu0 0.0
    %1311 = vmatmul.mubr.f32.gmra.mrb[0].mxu0 %v1244
    %v1312 = vpop.f32.mrb[0].mxu0
    %v1313 = vadd.f32 0.0, %v1312
    %v1314 = vpop.f32.mrb[0].mxu0
    %1315 = vdwg.mxu0
    %1318 = vrot.lane.b32.xlu0 %v1237, 16
    %v1319 = vpop.permute.xlu0 %1318
    %1320 = vrot.lane.b32.xlu0 %v1313, 16
    %v1321 = vpop.permute.xlu0 %1320
    %vm1324 = vcmask 195712
    %1325 = vst.msk [vmem:[#allocation2] sm:$0xff] %vm1324, %v1319
    %1326 = vst.msk [vmem:[#allocation2 + $0x8] sm:$0xff] %vm1324, %v1321
    %1327 = vrot.lane.b32.xlu0 %v261, 104
    %v1328 = vpop.permute.xlu0 %1327
    %1329 = vrot.lane.b32.xlu0 %v261, 72
    %v1330 = vpop.permute.xlu0 %1329
    %v1331 = vsel %vm272, %v1328, 0
    %v1333 = vsel %vm272, %v1330, 0
    %1335 = vmatprep.subr.mxu0 0.0
    %1336 = vmatpush1.xpose.msra.mxu0 %v1333
    %1337 = vmatprep.subr.mxu0 0.0
    %1338 = vmatpush1.xpose.msra.mxu0 0.0
    %1339 = vmatprep.subr.mxu0 0.0
    %1340 = vmatpush1.xpose.msra.mxu0 0.0
    %1341 = vmatprep.subr.mxu0 0.0
    %1342 = vmatpush1.xpose.msra.mxu0 0.0
    %1343 = vmatprep.subr.mxu0 0.0
    %1344 = vmatpush1.xpose.msra.mxu0 0.0
    %1345 = vmatprep.subr.mxu0 0.0
    %1346 = vmatpush1.xpose.msra.mxu0 0.0
    %1347 = vmatprep.subr.mxu0 0.0
    %1348 = vmatpush1.xpose.msra.mxu0 0.0
    %1349 = vmatprep.subr.mxu0 0.0
    %1350 = vmatpush1.xpose.msra.mxu0 0.0
    %1351 = vmatprep.subr.mxu0 0.0
    %1352 = vmatpush1.xpose.msra.mxu0 0.0
    %1353 = vmatprep.subr.mxu0 0.0
    %1354 = vmatpush1.xpose.msra.mxu0 0.0
    %1355 = vmatprep.subr.mxu0 0.0
    %1356 = vmatpush1.xpose.msra.mxu0 0.0
    %1357 = vmatprep.subr.mxu0 0.0
    %1358 = vmatpush1.xpose.msra.mxu0 0.0
    %1359 = vmatprep.subr.mxu0 0.0
    %1360 = vmatpush1.xpose.msra.mxu0 0.0
    %1361 = vmatprep.subr.mxu0 0.0
    %1362 = vmatpush1.xpose.msra.mxu0 0.0
    %1363 = vmatprep.subr.mxu0 0.0
    %1364 = vmatpush1.xpose.msra.mxu0 0.0
    %1365 = vmatprep.subr.mxu0 0.0
    %1366 = vmatpush1.xpose.msra.mxu0 0.0
    %1367 = vmatprep.subr.mxu0 0.0
    %1368 = vmatpush1.xpose.msra.mxu0 0.0
    %1369 = vmatprep.subr.mxu0 0.0
    %1370 = vmatpush1.xpose.msra.mxu0 0.0
    %1371 = vmatprep.subr.mxu0 0.0
    %1372 = vmatpush1.xpose.msra.mxu0 0.0
    %1373 = vmatprep.subr.mxu0 0.0
    %1374 = vmatpush1.xpose.msra.mxu0 0.0
    %1375 = vmatprep.subr.mxu0 0.0
    %1376 = vmatpush1.xpose.msra.mxu0 0.0
    %1377 = vmatprep.subr.mxu0 0.0
    %1378 = vmatpush1.xpose.msra.mxu0 0.0
    %1379 = vmatprep.subr.mxu0 0.0
    %1380 = vmatpush1.xpose.msra.mxu0 0.0
    %1381 = vmatprep.subr.mxu0 0.0
    %1382 = vmatpush1.xpose.msra.mxu0 0.0
    %1383 = vmatprep.subr.mxu0 0.0
    %1384 = vmatpush1.xpose.msra.mxu0 0.0
    %1385 = vmatprep.subr.mxu0 0.0
    %1386 = vmatpush1.xpose.msra.mxu0 0.0
    %1387 = vmatprep.subr.mxu0 0.0
    %1388 = vmatpush1.xpose.msra.mxu0 0.0
    %1389 = vmatprep.subr.mxu0 0.0
    %1390 = vmatpush1.xpose.msra.mxu0 0.0
    %1391 = vmatprep.subr.mxu0 0.0
    %1392 = vmatpush1.xpose.msra.mxu0 0.0
    %1393 = vmatprep.subr.mxu0 0.0
    %1394 = vmatpush1.xpose.msra.mxu0 0.0
    %1395 = vmatprep.subr.mxu0 0.0
    %1396 = vmatpush1.xpose.msra.mxu0 0.0
    %1397 = vmatprep.subr.mxu0 0.0
    %1398 = vmatpush1.xpose.msra.mxu0 0.0
    %1399 = vmatprep.mubr.f32.mxu0 0.0
    %1400 = vmatmul.mubr.f32.gmra.mrb[0].mxu0 %v1331
    %v1401 = vpop.f32.mrb[0].mxu0
    %v1402 = vadd.f32 0.0, %v1401
    %v1403 = vpop.f32.mrb[0].mxu0
    %1404 = vdwg.mxu0
    %1405 = vrot.lane.b32.xlu0 %v266, 104
    %v1406 = vpop.permute.xlu0 %1405
    %1407 = vrot.lane.b32.xlu0 %v266, 72
    %v1408 = vpop.permute.xlu0 %1407
    %v1409 = vsel %vm272, %v1406, 0
    %v1411 = vsel %vm272, %v1408, 0
    %1413 = vmatprep.subr.mxu0 0.0
    %1414 = vmatpush1.xpose.msra.mxu0 %v1411
    %1415 = vmatprep.subr.mxu0 0.0
    %1416 = vmatpush1.xpose.msra.mxu0 0.0
    %1417 = vmatprep.subr.mxu0 0.0
    %1418 = vmatpush1.xpose.msra.mxu0 0.0
    %1419 = vmatprep.subr.mxu0 0.0
    %1420 = vmatpush1.xpose.msra.mxu0 0.0
    %1421 = vmatprep.subr.mxu0 0.0
    %1422 = vmatpush1.xpose.msra.mxu0 0.0
    %1423 = vmatprep.subr.mxu0 0.0
    %1424 = vmatpush1.xpose.msra.mxu0 0.0
    %1425 = vmatprep.subr.mxu0 0.0
    %1426 = vmatpush1.xpose.msra.mxu0 0.0
    %1427 = vmatprep.subr.mxu0 0.0
    %1428 = vmatpush1.xpose.msra.mxu0 0.0
    %1429 = vmatprep.subr.mxu0 0.0
    %1430 = vmatpush1.xpose.msra.mxu0 0.0
    %1431 = vmatprep.subr.mxu0 0.0
    %1432 = vmatpush1.xpose.msra.mxu0 0.0
    %1433 = vmatprep.subr.mxu0 0.0
    %1434 = vmatpush1.xpose.msra.mxu0 0.0
    %1435 = vmatprep.subr.mxu0 0.0
    %1436 = vmatpush1.xpose.msra.mxu0 0.0
    %1437 = vmatprep.subr.mxu0 0.0
    %1438 = vmatpush1.xpose.msra.mxu0 0.0
    %1439 = vmatprep.subr.mxu0 0.0
    %1440 = vmatpush1.xpose.msra.mxu0 0.0
    %1441 = vmatprep.subr.mxu0 0.0
    %1442 = vmatpush1.xpose.msra.mxu0 0.0
    %1443 = vmatprep.subr.mxu0 0.0
    %1444 = vmatpush1.xpose.msra.mxu0 0.0
    %1445 = vmatprep.subr.mxu0 0.0
    %1446 = vmatpush1.xpose.msra.mxu0 0.0
    %1447 = vmatprep.subr.mxu0 0.0
    %1448 = vmatpush1.xpose.msra.mxu0 0.0
    %1449 = vmatprep.subr.mxu0 0.0
    %1450 = vmatpush1.xpose.msra.mxu0 0.0
    %1451 = vmatprep.subr.mxu0 0.0
    %1452 = vmatpush1.xpose.msra.mxu0 0.0
    %1453 = vmatprep.subr.mxu0 0.0
    %1454 = vmatpush1.xpose.msra.mxu0 0.0
    %1455 = vmatprep.subr.mxu0 0.0
    %1456 = vmatpush1.xpose.msra.mxu0 0.0
    %1457 = vmatprep.subr.mxu0 0.0
    %1458 = vmatpush1.xpose.msra.mxu0 0.0
    %1459 = vmatprep.subr.mxu0 0.0
    %1460 = vmatpush1.xpose.msra.mxu0 0.0
    %1461 = vmatprep.subr.mxu0 0.0
    %1462 = vmatpush1.xpose.msra.mxu0 0.0
    %1463 = vmatprep.subr.mxu0 0.0
    %1464 = vmatpush1.xpose.msra.mxu0 0.0
    %1465 = vmatprep.subr.mxu0 0.0
    %1466 = vmatpush1.xpose.msra.mxu0 0.0
    %1467 = vmatprep.subr.mxu0 0.0
    %1468 = vmatpush1.xpose.msra.mxu0 0.0
    %1469 = vmatprep.subr.mxu0 0.0
    %1470 = vmatpush1.xpose.msra.mxu0 0.0
    %1471 = vmatprep.subr.mxu0 0.0
    %1472 = vmatpush1.xpose.msra.mxu0 0.0
    %1473 = vmatprep.subr.mxu0 0.0
    %1474 = vmatpush1.xpose.msra.mxu0 0.0
    %1475 = vmatprep.subr.mxu0 0.0
    %1476 = vmatpush1.xpose.msra.mxu0 0.0
    %1477 = vmatprep.mubr.f32.mxu0 0.0
    %1478 = vmatmul.mubr.f32.gmra.mrb[0].mxu0 %v1409
    %v1479 = vpop.f32.mrb[0].mxu0
    %v1480 = vadd.f32 0.0, %v1479
    %v1481 = vpop.f32.mrb[0].mxu0
    %1482 = vdwg.mxu0
    %v1483 = vmul.f32 %v1402, 0.35355338
    %v1484 = vmul.f32 %v1480, 0.35355338
    %v1485 = vadd.f32 %v1483, %v452
    %v1486 = vadd.f32 %v1484, %v456
    %v1487 = vsel %vm272, %v1485, -inf
    %1488 = vmax.xlane.f32.xlu0 %v1487
    %v1489 = vpop.xlane.xlu0 %1488
    %v1490 = vsel %vm272, %v1486, -inf
    %1491 = vmax.xlane.f32.xlu0 %v1490
    %v1492 = vpop.xlane.xlu0 %1491
    %v1493 = vsub.f32 %v1485, %v1489
    %v1494 = vsub.f32 %v1486, %v1492
    %v1495 = vmul.f32 %v1493, 1.442695
    %v1496 = vpow.pop %v1495
    %v1497 = vmul.f32 %v1494, 1.442695
    %v1498 = vpow.pop %v1497
    %v1499 = vsel %vm272, %v1496, 0.0
    %1500 = vadd.xlane.f32.xlu0 %v1499
    %v1501 = vpop.xlane.xlu0 %1500
    %v1502 = vsel %vm272, %v1498, 0.0
    %1503 = vadd.xlane.f32.xlu0 %v1502
    %v1504 = vpop.xlane.xlu0 %1503
    %v1505 = vrcp.pop %v1501
    %v1506 = vmul.f32 %v1496, %v1505
    %v1507 = vrcp.pop %v1504
    %v1508 = vmul.f32 %v1498, %v1507
    %1509 = vrot.lane.b32.xlu0 %v261, 40
    %v1510 = vpop.permute.xlu0 %1509
    %v1513 = vsel %vm272, %v1506, 0
    %1515 = vmatprep.subr.mxu0 0.0
    %1516 = vmatpush1.msra.mxu0 %v1510
    %1517 = vmatprep.subr.mxu0 0.0
    %1518 = vmatpush1.msra.mxu0 0.0
    %1519 = vmatprep.subr.mxu0 0.0
    %1520 = vmatpush1.msra.mxu0 0.0
    %1521 = vmatprep.subr.mxu0 0.0
    %1522 = vmatpush1.msra.mxu0 0.0
    %1523 = vmatprep.subr.mxu0 0.0
    %1524 = vmatpush1.msra.mxu0 0.0
    %1525 = vmatprep.subr.mxu0 0.0
    %1526 = vmatpush1.msra.mxu0 0.0
    %1527 = vmatprep.subr.mxu0 0.0
    %1528 = vmatpush1.msra.mxu0 0.0
    %1529 = vmatprep.subr.mxu0 0.0
    %1530 = vmatpush1.msra.mxu0 0.0
    %1531 = vmatprep.subr.mxu0 0.0
    %1532 = vmatpush1.msra.mxu0 0.0
    %1533 = vmatprep.subr.mxu0 0.0
    %1534 = vmatpush1.msra.mxu0 0.0
    %1535 = vmatprep.subr.mxu0 0.0
    %1536 = vmatpush1.msra.mxu0 0.0
    %1537 = vmatprep.subr.mxu0 0.0
    %1538 = vmatpush1.msra.mxu0 0.0
    %1539 = vmatprep.subr.mxu0 0.0
    %1540 = vmatpush1.msra.mxu0 0.0
    %1541 = vmatprep.subr.mxu0 0.0
    %1542 = vmatpush1.msra.mxu0 0.0
    %1543 = vmatprep.subr.mxu0 0.0
    %1544 = vmatpush1.msra.mxu0 0.0
    %1545 = vmatprep.subr.mxu0 0.0
    %1546 = vmatpush1.msra.mxu0 0.0
    %1547 = vmatprep.subr.mxu0 0.0
    %1548 = vmatpush1.msra.mxu0 0.0
    %1549 = vmatprep.subr.mxu0 0.0
    %1550 = vmatpush1.msra.mxu0 0.0
    %1551 = vmatprep.subr.mxu0 0.0
    %1552 = vmatpush1.msra.mxu0 0.0
    %1553 = vmatprep.subr.mxu0 0.0
    %1554 = vmatpush1.msra.mxu0 0.0
    %1555 = vmatprep.subr.mxu0 0.0
    %1556 = vmatpush1.msra.mxu0 0.0
    %1557 = vmatprep.subr.mxu0 0.0
    %1558 = vmatpush1.msra.mxu0 0.0
    %1559 = vmatprep.subr.mxu0 0.0
    %1560 = vmatpush1.msra.mxu0 0.0
    %1561 = vmatprep.subr.mxu0 0.0
    %1562 = vmatpush1.msra.mxu0 0.0
    %1563 = vmatprep.subr.mxu0 0.0
    %1564 = vmatpush1.msra.mxu0 0.0
    %1565 = vmatprep.subr.mxu0 0.0
    %1566 = vmatpush1.msra.mxu0 0.0
    %1567 = vmatprep.subr.mxu0 0.0
    %1568 = vmatpush1.msra.mxu0 0.0
    %1569 = vmatprep.subr.mxu0 0.0
    %1570 = vmatpush1.msra.mxu0 0.0
    %1571 = vmatprep.subr.mxu0 0.0
    %1572 = vmatpush1.msra.mxu0 0.0
    %1573 = vmatprep.subr.mxu0 0.0
    %1574 = vmatpush1.msra.mxu0 0.0
    %1575 = vmatprep.subr.mxu0 0.0
    %1576 = vmatpush1.msra.mxu0 0.0
    %1577 = vmatprep.subr.mxu0 0.0
    %1578 = vmatpush1.msra.mxu0 0.0
    %1579 = vmatprep.mubr.f32.mxu0 0.0
    %1580 = vmatmul.mubr.f32.gmra.mrb[0].mxu0 %v1513
    %v1581 = vpop.f32.mrb[0].mxu0
    %v1582 = vadd.f32 0.0, %v1581
    %v1583 = vpop.f32.mrb[0].mxu0
    %1584 = vdwg.mxu0
    %1585 = vrot.lane.b32.xlu0 %v266, 40
    %v1586 = vpop.permute.xlu0 %1585
    %v1589 = vsel %vm272, %v1508, 0
    %1591 = vmatprep.subr.mxu0 0.0
    %1592 = vmatpush1.msra.mxu0 %v1586
    %1593 = vmatprep.subr.mxu0 0.0
    %1594 = vmatpush1.msra.mxu0 0.0
    %1595 = vmatprep.subr.mxu0 0.0
    %1596 = vmatpush1.msra.mxu0 0.0
    %1597 = vmatprep.subr.mxu0 0.0
    %1598 = vmatpush1.msra.mxu0 0.0
    %1599 = vmatprep.subr.mxu0 0.0
    %1600 = vmatpush1.msra.mxu0 0.0
    %1601 = vmatprep.subr.mxu0 0.0
    %1602 = vmatpush1.msra.mxu0 0.0
    %1603 = vmatprep.subr.mxu0 0.0
    %1604 = vmatpush1.msra.mxu0 0.0
    %1605 = vmatprep.subr.mxu0 0.0
    %1606 = vmatpush1.msra.mxu0 0.0
    %1607 = vmatprep.subr.mxu0 0.0
    %1608 = vmatpush1.msra.mxu0 0.0
    %1609 = vmatprep.subr.mxu0 0.0
    %1610 = vmatpush1.msra.mxu0 0.0
    %1611 = vmatprep.subr.mxu0 0.0
    %1612 = vmatpush1.msra.mxu0 0.0
    %1613 = vmatprep.subr.mxu0 0.0
    %1614 = vmatpush1.msra.mxu0 0.0
    %1615 = vmatprep.subr.mxu0 0.0
    %1616 = vmatpush1.msra.mxu0 0.0
    %1617 = vmatprep.subr.mxu0 0.0
    %1618 = vmatpush1.msra.mxu0 0.0
    %1619 = vmatprep.subr.mxu0 0.0
    %1620 = vmatpush1.msra.mxu0 0.0
    %1621 = vmatprep.subr.mxu0 0.0
    %1622 = vmatpush1.msra.mxu0 0.0
    %1623 = vmatprep.subr.mxu0 0.0
    %1624 = vmatpush1.msra.mxu0 0.0
    %1625 = vmatprep.subr.mxu0 0.0
    %1626 = vmatpush1.msra.mxu0 0.0
    %1627 = vmatprep.subr.mxu0 0.0
    %1628 = vmatpush1.msra.mxu0 0.0
    %1629 = vmatprep.subr.mxu0 0.0
    %1630 = vmatpush1.msra.mxu0 0.0
    %1631 = vmatprep.subr.mxu0 0.0
    %1632 = vmatpush1.msra.mxu0 0.0
    %1633 = vmatprep.subr.mxu0 0.0
    %1634 = vmatpush1.msra.mxu0 0.0
    %1635 = vmatprep.subr.mxu0 0.0
    %1636 = vmatpush1.msra.mxu0 0.0
    %1637 = vmatprep.subr.mxu0 0.0
    %1638 = vmatpush1.msra.mxu0 0.0
    %1639 = vmatprep.subr.mxu0 0.0
    %1640 = vmatpush1.msra.mxu0 0.0
    %1641 = vmatprep.subr.mxu0 0.0
    %1642 = vmatpush1.msra.mxu0 0.0
    %1643 = vmatprep.subr.mxu0 0.0
    %1644 = vmatpush1.msra.mxu0 0.0
    %1645 = vmatprep.subr.mxu0 0.0
    %1646 = vmatpush1.msra.mxu0 0.0
    %1647 = vmatprep.subr.mxu0 0.0
    %1648 = vmatpush1.msra.mxu0 0.0
    %1649 = vmatprep.subr.mxu0 0.0
    %1650 = vmatpush1.msra.mxu0 0.0
    %1651 = vmatprep.subr.mxu0 0.0
    %1652 = vmatpush1.msra.mxu0 0.0
    %1653 = vmatprep.subr.mxu0 0.0
    %1654 = vmatpush1.msra.mxu0 0.0
    %1655 = vmatprep.mubr.f32.mxu0 0.0
    %1656 = vmatmul.mubr.f32.gmra.mrb[0].mxu0 %v1589
    %v1657 = vpop.f32.mrb[0].mxu0
    %v1658 = vadd.f32 0.0, %v1657
    %v1659 = vpop.f32.mrb[0].mxu0
    %1660 = vdwg.mxu0
    %1663 = vrot.lane.b32.xlu0 %v1582, 24
    %v1664 = vpop.permute.xlu0 %1663
    %1665 = vrot.lane.b32.xlu0 %v1658, 24
    %v1666 = vpop.permute.xlu0 %1665
    %vm1669 = vcmask 261312
    %1670 = vst.msk [vmem:[#allocation2] sm:$0xff] %vm1669, %v1664
    %1671 = vst.msk [vmem:[#allocation2 + $0x8] sm:$0xff] %vm1669, %v1666
    %v1672 = vld [vmem:[#allocation2] sm:$0xff]
    %v1673 = vld [vmem:[#allocation2 + $0x8] sm:$0xff]
    %v1674 = vld [vmem:[%s3 + $0x20] sm:$0xff]
    %v1675 = vld [vmem:[%s3 + $0x28] sm:$0xff]
    %v1676 = vld [vmem:[%s3 + $0x30] sm:$0xff]
    %v1677 = vld [vmem:[%s3 + $0x38] sm:$0xff]
    %v1678 = vld [vmem:[%s3 + $0xa8] sm:$0x1]
    %v1679 = vlaneseq
    %v1680 = vshrl.u32 %v1679, 7
    %v1681 = vsub.s32 0, %v1680
    %v1682 = vrot.slane %v1678, %v1681
    %v1684 = vsel %vm136, %v1672, 0
    %v1687 = vsel %vm136, %v1673, 0
    %1689 = vmatprep.subr.mxu0 0.0
    %1690 = vmatpush1.msra.mxu0 %v1674
    %1691 = vmatprep.subr.mxu0 0.0
    %1692 = vmatpush1.msra.mxu0 %v1675
    %1693 = vmatprep.subr.mxu0 0.0
    %1694 = vmatpush1.msra.mxu0 %v1676
    %1695 = vmatprep.subr.mxu0 0.0
    %1696 = vmatpush1.msra.mxu0 %v1677
    %1697 = vmatprep.subr.mxu0 0.0
    %1698 = vmatpush1.msra.mxu0 0.0
    %1699 = vmatprep.subr.mxu0 0.0
    %1700 = vmatpush1.msra.mxu0 0.0
    %1701 = vmatprep.subr.mxu0 0.0
    %1702 = vmatpush1.msra.mxu0 0.0
    %1703 = vmatprep.subr.mxu0 0.0
    %1704 = vmatpush1.msra.mxu0 0.0
    %1705 = vmatprep.subr.mxu0 0.0
    %1706 = vmatpush1.msra.mxu0 0.0
    %1707 = vmatprep.subr.mxu0 0.0
    %1708 = vmatpush1.msra.mxu0 0.0
    %1709 = vmatprep.subr.mxu0 0.0
    %1710 = vmatpush1.msra.mxu0 0.0
    %1711 = vmatprep.subr.mxu0 0.0
    %1712 = vmatpush1.msra.mxu0 0.0
    %1713 = vmatprep.subr.mxu0 0.0
    %1714 = vmatpush1.msra.mxu0 0.0
    %1715 = vmatprep.subr.mxu0 0.0
    %1716 = vmatpush1.msra.mxu0 0.0
    %1717 = vmatprep.subr.mxu0 0.0
    %1718 = vmatpush1.msra.mxu0 0.0
    %1719 = vmatprep.subr.mxu0 0.0
    %1720 = vmatpush1.msra.mxu0 0.0
    %1721 = vmatprep.subr.mxu0 0.0
    %1722 = vmatpush1.msra.mxu0 0.0
    %1723 = vmatprep.subr.mxu0 0.0
    %1724 = vmatpush1.msra.mxu0 0.0
    %1725 = vmatprep.subr.mxu0 0.0
    %1726 = vmatpush1.msra.mxu0 0.0
    %1727 = vmatprep.subr.mxu0 0.0
    %1728 = vmatpush1.msra.mxu0 0.0
    %1729 = vmatprep.subr.mxu0 0.0
    %1730 = vmatpush1.msra.mxu0 0.0
    %1731 = vmatprep.subr.mxu0 0.0
    %1732 = vmatpush1.msra.mxu0 0.0
    %1733 = vmatprep.subr.mxu0 0.0
    %1734 = vmatpush1.msra.mxu0 0.0
    %1735 = vmatprep.subr.mxu0 0.0
    %1736 = vmatpush1.msra.mxu0 0.0
    %1737 = vmatprep.subr.mxu0 0.0
    %1738 = vmatpush1.msra.mxu0 0.0
    %1739 = vmatprep.subr.mxu0 0.0
    %1740 = vmatpush1.msra.mxu0 0.0
    %1741 = vmatprep.subr.mxu0 0.0
    %1742 = vmatpush1.msra.mxu0 0.0
    %1743 = vmatprep.subr.mxu0 0.0
    %1744 = vmatpush1.msra.mxu0 0.0
    %1745 = vmatprep.subr.mxu0 0.0
    %1746 = vmatpush1.msra.mxu0 0.0
    %1747 = vmatprep.subr.mxu0 0.0
    %1748 = vmatpush1.msra.mxu0 0.0
    %1749 = vmatprep.subr.mxu0 0.0
    %1750 = vmatpush1.msra.mxu0 0.0
    %1751 = vmatprep.subr.mxu0 0.0
    %1752 = vmatpush1.msra.mxu0 0.0
    %1753 = vmatprep.mubr.f32.mxu0 0.0
    %1754 = vmatmul.mubr.f32.gmra.mrb[0].mxu0 %v1684
    %v1755 = vpop.f32.mrb[0].mxu0
    %v1756 = vadd.f32 %v1682, %v1755
    %v1757 = vpop.f32.mrb[0].mxu0
    %1758 = vmatprep.mubr.f32.mxu0 0.0
    %1759 = vmatmul.mubr.f32.gmra.mrb[0].mxu0 %v1687
    %v1760 = vpop.f32.mrb[0].mxu0
    %v1761 = vadd.f32 %v1682, %v1760
    %v1762 = vpop.f32.mrb[0].mxu0
    %1763 = vdwg.mxu0
    %v1764 = vadd.f32 %v1756, %v174
    %v1765 = vadd.f32 %v1761, %v175
    %v1766 = vld [vmem:[%s3 + $0xb0] sm:$0x1]
    %v1767 = vld [vmem:[%s3 + $0xb8] sm:$0x1]
    %v1768 = vsel %vm136, %v1764, 0.0
    %1769 = vadd.xlane.f32.xlu0 %v1768
    %v1770 = vpop.xlane.xlu0 %1769
    %v1771 = vsel %vm136, %v1765, 0.0
    %1772 = vadd.xlane.f32.xlu0 %v1771
    %v1773 = vpop.xlane.xlu0 %1772
    %v1774 = vmul.f32 %v1770, %v143
    %v1775 = vmul.f32 %v1773, %v143
    %v1776 = vsub.f32 %v1764, %v1774
    %v1777 = vsub.f32 %v1765, %v1775
    %v1778 = vmul.f32 %v1776, %v1776
    %v1779 = vmul.f32 %v1777, %v1777
    %v1780 = vsel %vm136, %v1778, 0.0
    %1781 = vadd.xlane.f32.xlu0 %v1780
    %v1782 = vpop.xlane.xlu0 %1781
    %v1783 = vsel %vm136, %v1779, 0.0
    %1784 = vadd.xlane.f32.xlu0 %v1783
    %v1785 = vpop.xlane.xlu0 %1784
    %v1786 = vmul.f32 %v1782, %v143
    %v1787 = vmul.f32 %v1785, %v143
    %v1788 = vadd.f32 %v1786, 1e-12
    %v1789 = vadd.f32 %v1787, 1e-12
    %v1790 = vrsqrt.pop %v1788
    %v1791 = vrsqrt.pop %v1789
    %v1792 = vmul.f32 %v1776, %v1790
    %v1793 = vmul.f32 %v1777, %v1791
    %v1794 = vlaneseq
    %v1795 = vshrl.u32 %v1794, 7
    %v1796 = vsub.s32 0, %v1795
    %v1797 = vrot.slane %v1766, %v1796
    %v1798 = vmul.f32 %v1792, %v1797
    %v1799 = vmul.f32 %v1793, %v1797
    %v1800 = vlaneseq
    %v1801 = vshrl.u32 %v1800, 7
    %v1802 = vsub.s32 0, %v1801
    %v1803 = vrot.slane %v1767, %v1802
    %v1804 = vadd.f32 %v1798, %v1803
    %v1805 = vadd.f32 %v1799, %v1803
    %v1806 = vld [vmem:[%s3 + $0x40] sm:$0xff]
    %v1807 = vld [vmem:[%s3 + $0x48] sm:$0xff]
    %v1808 = vld [vmem:[%s3 + $0x50] sm:$0xff]
    %v1809 = vld [vmem:[%s3 + $0x58] sm:$0xff]
    %v1810 = vld [vmem:[%s3 + $0xc0] sm:$0x1]
    %v1811 = vlaneseq
    %v1812 = vshrl.u32 %v1811, 7
    %v1813 = vsub.s32 0, %v1812
    %v1814 = vrot.slane %v1810, %v1813
    %v1816 = vsel %vm136, %v1804, 0
    %v1819 = vsel %vm136, %v1805, 0
    %1821 = vmatprep.subr.mxu0 0.0
    %1822 = vmatpush1.msra.mxu0 %v1806
    %1823 = vmatprep.subr.mxu0 0.0
    %1824 = vmatpush1.msra.mxu0 %v1807
    %1825 = vmatprep.subr.mxu0 0.0
    %1826 = vmatpush1.msra.mxu0 %v1808
    %1827 = vmatprep.subr.mxu0 0.0
    %1828 = vmatpush1.msra.mxu0 %v1809
    %1829 = vmatprep.subr.mxu0 0.0
    %1830 = vmatpush1.msra.mxu0 0.0
    %1831 = vmatprep.subr.mxu0 0.0
    %1832 = vmatpush1.msra.mxu0 0.0
    %1833 = vmatprep.subr.mxu0 0.0
    %1834 = vmatpush1.msra.mxu0 0.0
    %1835 = vmatprep.subr.mxu0 0.0
    %1836 = vmatpush1.msra.mxu0 0.0
    %1837 = vmatprep.subr.mxu0 0.0
    %1838 = vmatpush1.msra.mxu0 0.0
    %1839 = vmatprep.subr.mxu0 0.0
    %1840 = vmatpush1.msra.mxu0 0.0
    %1841 = vmatprep.subr.mxu0 0.0
    %1842 = vmatpush1.msra.mxu0 0.0
    %1843 = vmatprep.subr.mxu0 0.0
    %1844 = vmatpush1.msra.mxu0 0.0
    %1845 = vmatprep.subr.mxu0 0.0
    %1846 = vmatpush1.msra.mxu0 0.0
    %1847 = vmatprep.subr.mxu0 0.0
    %1848 = vmatpush1.msra.mxu0 0.0
    %1849 = vmatprep.subr.mxu0 0.0
    %1850 = vmatpush1.msra.mxu0 0.0
    %1851 = vmatprep.subr.mxu0 0.0
    %1852 = vmatpush1.msra.mxu0 0.0
    %1853 = vmatprep.subr.mxu0 0.0
    %1854 = vmatpush1.msra.mxu0 0.0
    %1855 = vmatprep.subr.mxu0 0.0
    %1856 = vmatpush1.msra.mxu0 0.0
    %1857 = vmatprep.subr.mxu0 0.0
    %1858 = vmatpush1.msra.mxu0 0.0
    %1859 = vmatprep.subr.mxu0 0.0
    %1860 = vmatpush1.msra.mxu0 0.0
    %1861 = vmatprep.subr.mxu0 0.0
    %1862 = vmatpush1.msra.mxu0 0.0
    %1863 = vmatprep.subr.mxu0 0.0
    %1864 = vmatpush1.msra.mxu0 0.0
    %1865 = vmatprep.subr.mxu0 0.0
    %1866 = vmatpush1.msra.mxu0 0.0
    %1867 = vmatprep.subr.mxu0 0.0
    %1868 = vmatpush1.msra.mxu0 0.0
    %1869 = vmatprep.subr.mxu0 0.0
    %1870 = vmatpush1.msra.mxu0 0.0
    %1871 = vmatprep.subr.mxu0 0.0
    %1872 = vmatpush1.msra.mxu0 0.0
    %1873 = vmatprep.subr.mxu0 0.0
    %1874 = vmatpush1.msra.mxu0 0.0
    %1875 = vmatprep.subr.mxu0 0.0
    %1876 = vmatpush1.msra.mxu0 0.0
    %1877 = vmatprep.subr.mxu0 0.0
    %1878 = vmatpush1.msra.mxu0 0.0
    %1879 = vmatprep.subr.mxu0 0.0
    %1880 = vmatpush1.msra.mxu0 0.0
    %1881 = vmatprep.subr.mxu0 0.0
    %1882 = vmatpush1.msra.mxu0 0.0
    %1883 = vmatprep.subr.mxu0 0.0
    %1884 = vmatpush1.msra.mxu0 0.0
    %1885 = vmatprep.mubr.f32.mxu0 0.0
    %1886 = vmatmul.mubr.f32.gmra.mrb[0].mxu0 %v1816
    %v1887 = vpop.f32.mrb[0].mxu0
    %v1888 = vadd.f32 %v1814, %v1887
    %v1889 = vpop.f32.mrb[0].mxu0
    %1890 = vmatprep.mubr.f32.mxu0 0.0
    %1891 = vmatmul.mubr.f32.gmra.mrb[0].mxu0 %v1819
    %v1892 = vpop.f32.mrb[0].mxu0
    %v1893 = vadd.f32 %v1814, %v1892
    %v1894 = vpop.f32.mrb[0].mxu0
    %1895 = vdwg.mxu0
    %v1896 = vmul.f32 %v1888, 0.5
    %v1897 = vmul.f32 %v1893, 0.5
    %v1898 = vmul.f32 %v1888, 0.70710677
    %v1899 = vmul.f32 %v1893, 0.70710677
    %v1900 = verf.f32.pop %v1898
    %v1901 = verf.f32.pop %v1899
    %v1902 = vadd.f32 %v1900, 1.0
    %v1903 = vadd.f32 %v1901, 1.0
    %v1904 = vmul.f32 %v1896, %v1902
    %v1905 = vmul.f32 %v1897, %v1903
    %v1906 = vld [vmem:[%s3 + $0x60] sm:$0xff]
    %v1907 = vld [vmem:[%s3 + $0x68] sm:$0xff]
    %v1908 = vld [vmem:[%s3 + $0x70] sm:$0xff]
    %v1909 = vld [vmem:[%s3 + $0x78] sm:$0xff]
    %v1910 = vld [vmem:[%s3 + $0x80] sm:$0xff]
    %v1911 = vld [vmem:[%s3 + $0x88] sm:$0xff]
    %v1912 = vld [vmem:[%s3 + $0x90] sm:$0xff]
    %v1913 = vld [vmem:[%s3 + $0x98] sm:$0xff]
    %v1914 = vld [vmem:[%s3 + $0xc8] sm:$0x1]
    %v1915 = vlaneseq
    %v1916 = vshrl.u32 %v1915, 7
    %v1917 = vsub.s32 0, %v1916
    %v1918 = vrot.slane %v1914, %v1917
    %vm1919 = vcmask 523264
    %v1921 = vsel %vm1919, %v1904, 0
    %v1924 = vsel %vm1919, %v1905, 0
    %1926 = vmatprep.subr.mxu0 0.0
    %1927 = vmatpush1.msra.mxu0 %v1906
    %1928 = vmatprep.subr.mxu0 0.0
    %1929 = vmatpush1.msra.mxu0 %v1907
    %1930 = vmatprep.subr.mxu0 0.0
    %1931 = vmatpush1.msra.mxu0 %v1908
    %1932 = vmatprep.subr.mxu0 0.0
    %1933 = vmatpush1.msra.mxu0 %v1909
    %1934 = vmatprep.subr.mxu0 0.0
    %1935 = vmatpush1.msra.mxu0 %v1910
    %1936 = vmatprep.subr.mxu0 0.0
    %1937 = vmatpush1.msra.mxu0 %v1911
    %1938 = vmatprep.subr.mxu0 0.0
    %1939 = vmatpush1.msra.mxu0 %v1912
    %1940 = vmatprep.subr.mxu0 0.0
    %1941 = vmatpush1.msra.mxu0 %v1913
    %1942 = vmatprep.subr.mxu0 0.0
    %1943 = vmatpush1.msra.mxu0 0.0
    %1944 = vmatprep.subr.mxu0 0.0
    %1945 = vmatpush1.msra.mxu0 0.0
    %1946 = vmatprep.subr.mxu0 0.0
    %1947 = vmatpush1.msra.mxu0 0.0
    %1948 = vmatprep.subr.mxu0 0.0
    %1949 = vmatpush1.msra.mxu0 0.0
    %1950 = vmatprep.subr.mxu0 0.0
    %1951 = vmatpush1.msra.mxu0 0.0
    %1952 = vmatprep.subr.mxu0 0.0
    %1953 = vmatpush1.msra.mxu0 0.0
    %1954 = vmatprep.subr.mxu0 0.0
    %1955 = vmatpush1.msra.mxu0 0.0
    %1956 = vmatprep.subr.mxu0 0.0
    %1957 = vmatpush1.msra.mxu0 0.0
    %1958 = vmatprep.subr.mxu0 0.0
    %1959 = vmatpush1.msra.mxu0 0.0
    %1960 = vmatprep.subr.mxu0 0.0
    %1961 = vmatpush1.msra.mxu0 0.0
    %1962 = vmatprep.subr.mxu0 0.0
    %1963 = vmatpush1.msra.mxu0 0.0
    %1964 = vmatprep.subr.mxu0 0.0
    %1965 = vmatpush1.msra.mxu0 0.0
    %1966 = vmatprep.subr.mxu0 0.0
    %1967 = vmatpush1.msra.mxu0 0.0
    %1968 = vmatprep.subr.mxu0 0.0
    %1969 = vmatpush1.msra.mxu0 0.0
    %1970 = vmatprep.subr.mxu0 0.0
    %1971 = vmatpush1.msra.mxu0 0.0
    %1972 = vmatprep.subr.mxu0 0.0
    %1973 = vmatpush1.msra.mxu0 0.0
    %1974 = vmatprep.subr.mxu0 0.0
    %1975 = vmatpush1.msra.mxu0 0.0
    %1976 = vmatprep.subr.mxu0 0.0
    %1977 = vmatpush1.msra.mxu0 0.0
    %1978 = vmatprep.subr.mxu0 0.0
    %1979 = vmatpush1.msra.mxu0 0.0
    %1980 = vmatprep.subr.mxu0 0.0
    %1981 = vmatpush1.msra.mxu0 0.0
    %1982 = vmatprep.subr.mxu0 0.0
    %1983 = vmatpush1.msra.mxu0 0.0
    %1984 = vmatprep.subr.mxu0 0.0
    %1985 = vmatpush1.msra.mxu0 0.0
    %1986 = vmatprep.subr.mxu0 0.0
    %1987 = vmatpush1.msra.mxu0 0.0
    %1988 = vmatprep.subr.mxu0 0.0
    %1989 = vmatpush1.msra.mxu0 0.0
    %1990 = vmatprep.mubr.f32.mxu0 0.0
    %1991 = vmatmul.mubr.f32.gmra.mrb[0].mxu0 %v1921
    %v1992 = vpop.f32.mrb[0].mxu0
    %v1993 = vadd.f32 %v1918, %v1992
    %v1994 = vpop.f32.mrb[0].mxu0
    %1995 = vmatprep.mubr.f32.mxu0 0.0
    %1996 = vmatmul.mubr.f32.gmra.mrb[0].mxu0 %v1924
    %v1997 = vpop.f32.mrb[0].mxu0
    %v1998 = vadd.f32 %v1918, %v1997
    %v1999 = vpop.f32.mrb[0].mxu0
    %2000 = vdwg.mxu0
    %v2001 = vadd.f32 %v1993, %v1804
    %v2002 = vadd.f32 %v1998, %v1805
    %v2003 = vld [vmem:[%s3 + $0xd0] sm:$0x1]
    %v2004 = vld [vmem:[%s3 + $0xd8] sm:$0x1]
    %v2005 = vsel %vm136, %v2001, 0.0
    %2006 = vadd.xlane.f32.xlu0 %v2005
    %v2007 = vpop.xlane.xlu0 %2006
    %v2008 = vsel %vm136, %v2002, 0.0
    %2009 = vadd.xlane.f32.xlu0 %v2008
    %v2010 = vpop.xlane.xlu0 %2009
    %v2011 = vmul.f32 %v2007, %v143
    %v2012 = vmul.f32 %v2010, %v143
    %v2013 = vsub.f32 %v2001, %v2011
    %v2014 = vsub.f32 %v2002, %v2012
    %v2015 = vmul.f32 %v2013, %v2013
    %v2016 = vmul.f32 %v2014, %v2014
    %v2017 = vsel %vm136, %v2015, 0.0
    %2018 = vadd.xlane.f32.xlu0 %v2017
    %v2019 = vpop.xlane.xlu0 %2018
    %v2020 = vsel %vm136, %v2016, 0.0
    %2021 = vadd.xlane.f32.xlu0 %v2020
    %v2022 = vpop.xlane.xlu0 %2021
    %v2023 = vmul.f32 %v2019, %v143
    %v2024 = vmul.f32 %v2022, %v143
    %v2025 = vadd.f32 %v2023, 1e-12
    %v2026 = vadd.f32 %v2024, 1e-12
    %v2027 = vrsqrt.pop %v2025
    %v2028 = vrsqrt.pop %v2026
    %v2029 = vmul.f32 %v2013, %v2027
    %v2030 = vmul.f32 %v2014, %v2028
    %v2031 = vlaneseq
    %v2032 = vshrl.u32 %v2031, 7
    %v2033 = vsub.s32 0, %v2032
    %v2034 = vrot.slane %v2003, %v2033
    %v2035 = vmul.f32 %v2029, %v2034
    %v2036 = vmul.f32 %v2030, %v2034
    %v2037 = vlaneseq
    %v2038 = vshrl.u32 %v2037, 7
    %v2039 = vsub.s32 0, %v2038
    %v2040 = vrot.slane %v2004, %v2039
    %v2041 = vadd.f32 %v2035, %v2040
    %v2042 = vadd.f32 %v2036, %v2040
    %s2043 = scalar_lea.vmem %s3, 224
    %v2044 = vld [vmem:[%s2043] sm:$0xff]
    %v2045 = vld [vmem:[%s2043 + $0x8] sm:$0xff]
    %v2046 = vld [vmem:[%s2043 + $0x10] sm:$0xff]
    %v2047 = vld [vmem:[%s2043 + $0x18] sm:$0xff]
    %v2048 = vld [vmem:[%s2043 + $0xa0] sm:$0x1]
    %v2049 = vlaneseq
    %v2050 = vshrl.u32 %v2049, 7
    %v2051 = vsub.s32 0, %v2050
    %v2052 = vrot.slane %v2048, %v2051
    %v2054 = vsel %vm136, %v2041, 0
    %v2057 = vsel %vm136, %v2042, 0
    %2059 = vmatprep.subr.mxu0 0.0
    %2060 = vmatpush1.msra.mxu0 %v2044
    %2061 = vmatprep.subr.mxu0 0.0
    %2062 = vmatpush1.msra.mxu0 %v2045
    %2063 = vmatprep.subr.mxu0 0.0
    %2064 = vmatpush1.msra.mxu0 %v2046
    %2065 = vmatprep.subr.mxu0 0.0
    %2066 = vmatpush1.msra.mxu0 %v2047
    %2067 = vmatprep.subr.mxu0 0.0
    %2068 = vmatpush1.msra.mxu0 0.0
    %2069 = vmatprep.subr.mxu0 0.0
    %2070 = vmatpush1.msra.mxu0 0.0
    %2071 = vmatprep.subr.mxu0 0.0
    %2072 = vmatpush1.msra.mxu0 0.0
    %2073 = vmatprep.subr.mxu0 0.0
    %2074 = vmatpush1.msra.mxu0 0.0
    %2075 = vmatprep.subr.mxu0 0.0
    %2076 = vmatpush1.msra.mxu0 0.0
    %2077 = vmatprep.subr.mxu0 0.0
    %2078 = vmatpush1.msra.mxu0 0.0
    %2079 = vmatprep.subr.mxu0 0.0
    %2080 = vmatpush1.msra.mxu0 0.0
    %2081 = vmatprep.subr.mxu0 0.0
    %2082 = vmatpush1.msra.mxu0 0.0
    %2083 = vmatprep.subr.mxu0 0.0
    %2084 = vmatpush1.msra.mxu0 0.0
    %2085 = vmatprep.subr.mxu0 0.0
    %2086 = vmatpush1.msra.mxu0 0.0
    %2087 = vmatprep.subr.mxu0 0.0
    %2088 = vmatpush1.msra.mxu0 0.0
    %2089 = vmatprep.subr.mxu0 0.0
    %2090 = vmatpush1.msra.mxu0 0.0
    %2091 = vmatprep.subr.mxu0 0.0
    %2092 = vmatpush1.msra.mxu0 0.0
    %2093 = vmatprep.subr.mxu0 0.0
    %2094 = vmatpush1.msra.mxu0 0.0
    %2095 = vmatprep.subr.mxu0 0.0
    %2096 = vmatpush1.msra.mxu0 0.0
    %2097 = vmatprep.subr.mxu0 0.0
    %2098 = vmatpush1.msra.mxu0 0.0
    %2099 = vmatprep.subr.mxu0 0.0
    %2100 = vmatpush1.msra.mxu0 0.0
    %2101 = vmatprep.subr.mxu0 0.0
    %2102 = vmatpush1.msra.mxu0 0.0
    %2103 = vmatprep.subr.mxu0 0.0
    %2104 = vmatpush1.msra.mxu0 0.0
    %2105 = vmatprep.subr.mxu0 0.0
    %2106 = vmatpush1.msra.mxu0 0.0
    %2107 = vmatprep.subr.mxu0 0.0
    %2108 = vmatpush1.msra.mxu0 0.0
    %2109 = vmatprep.subr.mxu0 0.0
    %2110 = vmatpush1.msra.mxu0 0.0
    %2111 = vmatprep.subr.mxu0 0.0
    %2112 = vmatpush1.msra.mxu0 0.0
    %2113 = vmatprep.subr.mxu0 0.0
    %2114 = vmatpush1.msra.mxu0 0.0
    %2115 = vmatprep.subr.mxu0 0.0
    %2116 = vmatpush1.msra.mxu0 0.0
    %2117 = vmatprep.subr.mxu0 0.0
    %2118 = vmatpush1.msra.mxu0 0.0
    %2119 = vmatprep.subr.mxu0 0.0
    %2120 = vmatpush1.msra.mxu0 0.0
    %2121 = vmatprep.subr.mxu0 0.0
    %2122 = vmatpush1.msra.mxu0 0.0
    %2123 = vmatprep.mubr.f32.mxu0 0.0
    %2124 = vmatmul.mubr.f32.gmra.mrb[0].mxu0 %v2054
    %v2125 = vpop.f32.mrb[0].mxu0
    %v2126 = vadd.f32 %v2052, %v2125
    %v2127 = vpop.f32.mrb[0].mxu0
    %2128 = vmatprep.mubr.f32.mxu0 0.0
    %2129 = vmatmul.mubr.f32.gmra.mrb[0].mxu0 %v2057
    %v2130 = vpop.f32.mrb[0].mxu0
    %v2131 = vadd.f32 %v2052, %v2130
    %v2132 = vpop.f32.mrb[0].mxu0
    %2133 = vdwg.mxu0
    %2135 = vrot.lane.b32.xlu0 %v2126, 96
    %v2136 = vpop.permute.xlu0 %2135
    %v2137 = vsel %vm272, %v2126, 0
    %v2139 = vsel %vm272, %v2136, 0
    %2141 = vmatprep.subr.mxu0 0.0
    %2142 = vmatpush1.xpose.msra.mxu0 %v2139
    %2143 = vmatprep.subr.mxu0 0.0
    %2144 = vmatpush1.xpose.msra.mxu0 0.0
    %2145 = vmatprep.subr.mxu0 0.0
    %2146 = vmatpush1.xpose.msra.mxu0 0.0
    %2147 = vmatprep.subr.mxu0 0.0
    %2148 = vmatpush1.xpose.msra.mxu0 0.0
    %2149 = vmatprep.subr.mxu0 0.0
    %2150 = vmatpush1.xpose.msra.mxu0 0.0
    %2151 = vmatprep.subr.mxu0 0.0
    %2152 = vmatpush1.xpose.msra.mxu0 0.0
    %2153 = vmatprep.subr.mxu0 0.0
    %2154 = vmatpush1.xpose.msra.mxu0 0.0
    %2155 = vmatprep.subr.mxu0 0.0
    %2156 = vmatpush1.xpose.msra.mxu0 0.0
    %2157 = vmatprep.subr.mxu0 0.0
    %2158 = vmatpush1.xpose.msra.mxu0 0.0
    %2159 = vmatprep.subr.mxu0 0.0
    %2160 = vmatpush1.xpose.msra.mxu0 0.0
    %2161 = vmatprep.subr.mxu0 0.0
    %2162 = vmatpush1.xpose.msra.mxu0 0.0
    %2163 = vmatprep.subr.mxu0 0.0
    %2164 = vmatpush1.xpose.msra.mxu0 0.0
    %2165 = vmatprep.subr.mxu0 0.0
    %2166 = vmatpush1.xpose.msra.mxu0 0.0
    %2167 = vmatprep.subr.mxu0 0.0
    %2168 = vmatpush1.xpose.msra.mxu0 0.0
    %2169 = vmatprep.subr.mxu0 0.0
    %2170 = vmatpush1.xpose.msra.mxu0 0.0
    %2171 = vmatprep.subr.mxu0 0.0
    %2172 = vmatpush1.xpose.msra.mxu0 0.0
    %2173 = vmatprep.subr.mxu0 0.0
    %2174 = vmatpush1.xpose.msra.mxu0 0.0
    %2175 = vmatprep.subr.mxu0 0.0
    %2176 = vmatpush1.xpose.msra.mxu0 0.0
    %2177 = vmatprep.subr.mxu0 0.0
    %2178 = vmatpush1.xpose.msra.mxu0 0.0
    %2179 = vmatprep.subr.mxu0 0.0
    %2180 = vmatpush1.xpose.msra.mxu0 0.0
    %2181 = vmatprep.subr.mxu0 0.0
    %2182 = vmatpush1.xpose.msra.mxu0 0.0
    %2183 = vmatprep.subr.mxu0 0.0
    %2184 = vmatpush1.xpose.msra.mxu0 0.0
    %2185 = vmatprep.subr.mxu0 0.0
    %2186 = vmatpush1.xpose.msra.mxu0 0.0
    %2187 = vmatprep.subr.mxu0 0.0
    %2188 = vmatpush1.xpose.msra.mxu0 0.0
    %2189 = vmatprep.subr.mxu0 0.0
    %2190 = vmatpush1.xpose.msra.mxu0 0.0
    %2191 = vmatprep.subr.mxu0 0.0
    %2192 = vmatpush1.xpose.msra.mxu0 0.0
    %2193 = vmatprep.subr.mxu0 0.0
    %2194 = vmatpush1.xpose.msra.mxu0 0.0
    %2195 = vmatprep.subr.mxu0 0.0
    %2196 = vmatpush1.xpose.msra.mxu0 0.0
    %2197 = vmatprep.subr.mxu0 0.0
    %2198 = vmatpush1.xpose.msra.mxu0 0.0
    %2199 = vmatprep.subr.mxu0 0.0
    %2200 = vmatpush1.xpose.msra.mxu0 0.0
    %2201 = vmatprep.subr.mxu0 0.0
    %2202 = vmatpush1.xpose.msra.mxu0 0.0
    %2203 = vmatprep.subr.mxu0 0.0
    %2204 = vmatpush1.xpose.msra.mxu0 0.0
    %2205 = vmatprep.mubr.f32.mxu0 0.0
    %2206 = vmatmul.mubr.f32.gmra.mrb[0].mxu0 %v2137
    %v2207 = vpop.f32.mrb[0].mxu0
    %v2208 = vadd.f32 0.0, %v2207
    %v2209 = vpop.f32.mrb[0].mxu0
    %2210 = vdwg.mxu0
    %2212 = vrot.lane.b32.xlu0 %v2131, 96
    %v2213 = vpop.permute.xlu0 %2212
    %v2214 = vsel %vm272, %v2131, 0
    %v2216 = vsel %vm272, %v2213, 0
    %2218 = vmatprep.subr.mxu0 0.0
    %2219 = vmatpush1.xpose.msra.mxu0 %v2216
    %2220 = vmatprep.subr.mxu0 0.0
    %2221 = vmatpush1.xpose.msra.mxu0 0.0
    %2222 = vmatprep.subr.mxu0 0.0
    %2223 = vmatpush1.xpose.msra.mxu0 0.0
    %2224 = vmatprep.subr.mxu0 0.0
    %2225 = vmatpush1.xpose.msra.mxu0 0.0
    %2226 = vmatprep.subr.mxu0 0.0
    %2227 = vmatpush1.xpose.msra.mxu0 0.0
    %2228 = vmatprep.subr.mxu0 0.0
    %2229 = vmatpush1.xpose.msra.mxu0 0.0
    %2230 = vmatprep.subr.mxu0 0.0
    %2231 = vmatpush1.xpose.msra.mxu0 0.0
    %2232 = vmatprep.subr.mxu0 0.0
    %2233 = vmatpush1.xpose.msra.mxu0 0.0
    %2234 = vmatprep.subr.mxu0 0.0
    %2235 = vmatpush1.xpose.msra.mxu0 0.0
    %2236 = vmatprep.subr.mxu0 0.0
    %2237 = vmatpush1.xpose.msra.mxu0 0.0
    %2238 = vmatprep.subr.mxu0 0.0
    %2239 = vmatpush1.xpose.msra.mxu0 0.0
    %2240 = vmatprep.subr.mxu0 0.0
    %2241 = vmatpush1.xpose.msra.mxu0 0.0
    %2242 = vmatprep.subr.mxu0 0.0
    %2243 = vmatpush1.xpose.msra.mxu0 0.0
    %2244 = vmatprep.subr.mxu0 0.0
    %2245 = vmatpush1.xpose.msra.mxu0 0.0
    %2246 = vmatprep.subr.mxu0 0.0
    %2247 = vmatpush1.xpose.msra.mxu0 0.0
    %2248 = vmatprep.subr.mxu0 0.0
    %2249 = vmatpush1.xpose.msra.mxu0 0.0
    %2250 = vmatprep.subr.mxu0 0.0
    %2251 = vmatpush1.xpose.msra.mxu0 0.0
    %2252 = vmatprep.subr.mxu0 0.0
    %2253 = vmatpush1.xpose.msra.mxu0 0.0
    %2254 = vmatprep.subr.mxu0 0.0
    %2255 = vmatpush1.xpose.msra.mxu0 0.0
    %2256 = vmatprep.subr.mxu0 0.0
    %2257 = vmatpush1.xpose.msra.mxu0 0.0
    %2258 = vmatprep.subr.mxu0 0.0
    %2259 = vmatpush1.xpose.msra.mxu0 0.0
    %2260 = vmatprep.subr.mxu0 0.0
    %2261 = vmatpush1.xpose.msra.mxu0 0.0
    %2262 = vmatprep.subr.mxu0 0.0
    %2263 = vmatpush1.xpose.msra.mxu0 0.0
    %2264 = vmatprep.subr.mxu0 0.0
    %2265 = vmatpush1.xpose.msra.mxu0 0.0
    %2266 = vmatprep.subr.mxu0 0.0
    %2267 = vmatpush1.xpose.msra.mxu0 0.0
    %2268 = vmatprep.subr.mxu0 0.0
    %2269 = vmatpush1.xpose.msra.mxu0 0.0
    %2270 = vmatprep.subr.mxu0 0.0
    %2271 = vmatpush1.xpose.msra.mxu0 0.0
    %2272 = vmatprep.subr.mxu0 0.0
    %2273 = vmatpush1.xpose.msra.mxu0 0.0
    %2274 = vmatprep.subr.mxu0 0.0
    %2275 = vmatpush1.xpose.msra.mxu0 0.0
    %2276 = vmatprep.subr.mxu0 0.0
    %2277 = vmatpush1.xpose.msra.mxu0 0.0
    %2278 = vmatprep.subr.mxu0 0.0
    %2279 = vmatpush1.xpose.msra.mxu0 0.0
    %2280 = vmatprep.subr.mxu0 0.0
    %2281 = vmatpush1.xpose.msra.mxu0 0.0
    %2282 = vmatprep.mubr.f32.mxu0 0.0
    %2283 = vmatmul.mubr.f32.gmra.mrb[0].mxu0 %v2214
    %v2284 = vpop.f32.mrb[0].mxu0
    %v2285 = vadd.f32 0.0, %v2284
    %v2286 = vpop.f32.mrb[0].mxu0
    %2287 = vdwg.mxu0
    %v2288 = vmul.f32 %v2208, 0.35355338
    %v2289 = vmul.f32 %v2285, 0.35355338
    %v2290 = vadd.f32 %v2288, %v452
    %v2291 = vadd.f32 %v2289, %v456
    %v2292 = vsel %vm272, %v2290, -inf
    %2293 = vmax.xlane.f32.xlu0 %v2292
    %v2294 = vpop.xlane.xlu0 %2293
    %v2295 = vsel %vm272, %v2291, -inf
    %2296 = vmax.xlane.f32.xlu0 %v2295
    %v2297 = vpop.xlane.xlu0 %2296
    %v2298 = vsub.f32 %v2290, %v2294
    %v2299 = vsub.f32 %v2291, %v2297
    %v2300 = vmul.f32 %v2298, 1.442695
    %v2301 = vpow.pop %v2300
    %v2302 = vmul.f32 %v2299, 1.442695
    %v2303 = vpow.pop %v2302
    %v2304 = vsel %vm272, %v2301, 0.0
    %2305 = vadd.xlane.f32.xlu0 %v2304
    %v2306 = vpop.xlane.xlu0 %2305
    %v2307 = vsel %vm272, %v2303, 0.0
    %2308 = vadd.xlane.f32.xlu0 %v2307
    %v2309 = vpop.xlane.xlu0 %2308
    %v2310 = vrcp.pop %v2306
    %v2311 = vmul.f32 %v2301, %v2310
    %v2312 = vrcp.pop %v2309
    %v2313 = vmul.f32 %v2303, %v2312
    %2314 = vrot.lane.b32.xlu0 %v2126, 64
    %v2315 = vpop.permute.xlu0 %2314
    %v2318 = vsel %vm272, %v2311, 0
    %2320 = vmatprep.subr.mxu0 0.0
    %2321 = vmatpush1.msra.mxu0 %v2315
    %2322 = vmatprep.subr.mxu0 0.0
    %2323 = vmatpush1.msra.mxu0 0.0
    %2324 = vmatprep.subr.mxu0 0.0
    %2325 = vmatpush1.msra.mxu0 0.0
    %2326 = vmatprep.subr.mxu0 0.0
    %2327 = vmatpush1.msra.mxu0 0.0
    %2328 = vmatprep.subr.mxu0 0.0
    %2329 = vmatpush1.msra.mxu0 0.0
    %2330 = vmatprep.subr.mxu0 0.0
    %2331 = vmatpush1.msra.mxu0 0.0
    %2332 = vmatprep.subr.mxu0 0.0
    %2333 = vmatpush1.msra.mxu0 0.0
    %2334 = vmatprep.subr.mxu0 0.0
    %2335 = vmatpush1.msra.mxu0 0.0
    %2336 = vmatprep.subr.mxu0 0.0
    %2337 = vmatpush1.msra.mxu0 0.0
    %2338 = vmatprep.subr.mxu0 0.0
    %2339 = vmatpush1.msra.mxu0 0.0
    %2340 = vmatprep.subr.mxu0 0.0
    %2341 = vmatpush1.msra.mxu0 0.0
    %2342 = vmatprep.subr.mxu0 0.0
    %2343 = vmatpush1.msra.mxu0 0.0
    %2344 = vmatprep.subr.mxu0 0.0
    %2345 = vmatpush1.msra.mxu0 0.0
    %2346 = vmatprep.subr.mxu0 0.0
    %2347 = vmatpush1.msra.mxu0 0.0
    %2348 = vmatprep.subr.mxu0 0.0
    %2349 = vmatpush1.msra.mxu0 0.0
    %2350 = vmatprep.subr.mxu0 0.0
    %2351 = vmatpush1.msra.mxu0 0.0
    %2352 = vmatprep.subr.mxu0 0.0
    %2353 = vmatpush1.msra.mxu0 0.0
    %2354 = vmatprep.subr.mxu0 0.0
    %2355 = vmatpush1.msra.mxu0 0.0
    %2356 = vmatprep.subr.mxu0 0.0
    %2357 = vmatpush1.msra.mxu0 0.0
    %2358 = vmatprep.subr.mxu0 0.0
    %2359 = vmatpush1.msra.mxu0 0.0
    %2360 = vmatprep.subr.mxu0 0.0
    %2361 = vmatpush1.msra.mxu0 0.0
    %2362 = vmatprep.subr.mxu0 0.0
    %2363 = vmatpush1.msra.mxu0 0.0
    %2364 = vmatprep.subr.mxu0 0.0
    %2365 = vmatpush1.msra.mxu0 0.0
    %2366 = vmatprep.subr.mxu0 0.0
    %2367 = vmatpush1.msra.mxu0 0.0
    %2368 = vmatprep.subr.mxu0 0.0
    %2369 = vmatpush1.msra.mxu0 0.0
    %2370 = vmatprep.subr.mxu0 0.0
    %2371 = vmatpush1.msra.mxu0 0.0
    %2372 = vmatprep.subr.mxu0 0.0
    %2373 = vmatpush1.msra.mxu0 0.0
    %2374 = vmatprep.subr.mxu0 0.0
    %2375 = vmatpush1.msra.mxu0 0.0
    %2376 = vmatprep.subr.mxu0 0.0
    %2377 = vmatpush1.msra.mxu0 0.0
    %2378 = vmatprep.subr.mxu0 0.0
    %2379 = vmatpush1.msra.mxu0 0.0
    %2380 = vmatprep.subr.mxu0 0.0
    %2381 = vmatpush1.msra.mxu0 0.0
    %2382 = vmatprep.subr.mxu0 0.0
    %2383 = vmatpush1.msra.mxu0 0.0
    %2384 = vmatprep.mubr.f32.mxu0 0.0
    %2385 = vmatmul.mubr.f32.gmra.mrb[0].mxu0 %v2318
    %v2386 = vpop.f32.mrb[0].mxu0
    %v2387 = vadd.f32 0.0, %v2386
    %v2388 = vpop.f32.mrb[0].mxu0
    %2389 = vdwg.mxu0
    %2390 = vrot.lane.b32.xlu0 %v2131, 64
    %v2391 = vpop.permute.xlu0 %2390
    %v2394 = vsel %vm272, %v2313, 0
    %2396 = vmatprep.subr.mxu0 0.0
    %2397 = vmatpush1.msra.mxu0 %v2391
    %2398 = vmatprep.subr.mxu0 0.0
    %2399 = vmatpush1.msra.mxu0 0.0
    %2400 = vmatprep.subr.mxu0 0.0
    %2401 = vmatpush1.msra.mxu0 0.0
    %2402 = vmatprep.subr.mxu0 0.0
    %2403 = vmatpush1.msra.mxu0 0.0
    %2404 = vmatprep.subr.mxu0 0.0
    %2405 = vmatpush1.msra.mxu0 0.0
    %2406 = vmatprep.subr.mxu0 0.0
    %2407 = vmatpush1.msra.mxu0 0.0
    %2408 = vmatprep.subr.mxu0 0.0
    %2409 = vmatpush1.msra.mxu0 0.0
    %2410 = vmatprep.subr.mxu0 0.0
    %2411 = vmatpush1.msra.mxu0 0.0
    %2412 = vmatprep.subr.mxu0 0.0
    %2413 = vmatpush1.msra.mxu0 0.0
    %2414 = vmatprep.subr.mxu0 0.0
    %2415 = vmatpush1.msra.mxu0 0.0
    %2416 = vmatprep.subr.mxu0 0.0
    %2417 = vmatpush1.msra.mxu0 0.0
    %2418 = vmatprep.subr.mxu0 0.0
    %2419 = vmatpush1.msra.mxu0 0.0
    %2420 = vmatprep.subr.mxu0 0.0
    %2421 = vmatpush1.msra.mxu0 0.0
    %2422 = vmatprep.subr.mxu0 0.0
    %2423 = vmatpush1.msra.mxu0 0.0
    %2424 = vmatprep.subr.mxu0 0.0
    %2425 = vmatpush1.msra.mxu0 0.0
    %2426 = vmatprep.subr.mxu0 0.0
    %2427 = vmatpush1.msra.mxu0 0.0
    %2428 = vmatprep.subr.mxu0 0.0
    %2429 = vmatpush1.msra.mxu0 0.0
    %2430 = vmatprep.subr.mxu0 0.0
    %2431 = vmatpush1.msra.mxu0 0.0
    %2432 = vmatprep.subr.mxu0 0.0
    %2433 = vmatpush1.msra.mxu0 0.0
    %2434 = vmatprep.subr.mxu0 0.0
    %2435 = vmatpush1.msra.mxu0 0.0
    %2436 = vmatprep.subr.mxu0 0.0
    %2437 = vmatpush1.msra.mxu0 0.0
    %2438 = vmatprep.subr.mxu0 0.0
    %2439 = vmatpush1.msra.mxu0 0.0
    %2440 = vmatprep.subr.mxu0 0.0
    %2441 = vmatpush1.msra.mxu0 0.0
    %2442 = vmatprep.subr.mxu0 0.0
    %2443 = vmatpush1.msra.mxu0 0.0
    %2444 = vmatprep.subr.mxu0 0.0
    %2445 = vmatpush1.msra.mxu0 0.0
    %2446 = vmatprep.subr.mxu0 0.0
    %2447 = vmatpush1.msra.mxu0 0.0
    %2448 = vmatprep.subr.mxu0 0.0
    %2449 = vmatpush1.msra.mxu0 0.0
    %2450 = vmatprep.subr.mxu0 0.0
    %2451 = vmatpush1.msra.mxu0 0.0
    %2452 = vmatprep.subr.mxu0 0.0
    %2453 = vmatpush1.msra.mxu0 0.0
    %2454 = vmatprep.subr.mxu0 0.0
    %2455 = vmatpush1.msra.mxu0 0.0
    %2456 = vmatprep.subr.mxu0 0.0
    %2457 = vmatpush1.msra.mxu0 0.0
    %2458 = vmatprep.subr.mxu0 0.0
    %2459 = vmatpush1.msra.mxu0 0.0
    %2460 = vmatprep.mubr.f32.mxu0 0.0
    %2461 = vmatmul.mubr.f32.gmra.mrb[0].mxu0 %v2394
    %v2462 = vpop.f32.mrb[0].mxu0
    %v2463 = vadd.f32 0.0, %v2462
    %v2464 = vpop.f32.mrb[0].mxu0
    %2465 = vdwg.mxu0
    %2466 = vst.msk [vmem:[#allocation2] sm:$0xff] %vm272, %v2387
    %2467 = vst.msk [vmem:[#allocation2 + $0x8] sm:$0xff] %vm272, %v2463
    %2468 = vrot.lane.b32.xlu0 %v2126, 120
    %v2469 = vpop.permute.xlu0 %2468
    %2470 = vrot.lane.b32.xlu0 %v2126, 88
    %v2471 = vpop.permute.xlu0 %2470
    %v2472 = vsel %vm272, %v2469, 0
    %v2474 = vsel %vm272, %v2471, 0
    %2476 = vmatprep.subr.mxu0 0.0
    %2477 = vmatpush1.xpose.msra.mxu0 %v2474
    %2478 = vmatprep.subr.mxu0 0.0
    %2479 = vmatpush1.xpose.msra.mxu0 0.0
    %2480 = vmatprep.subr.mxu0 0.0
    %2481 = vmatpush1.xpose.msra.mxu0 0.0
    %2482 = vmatprep.subr.mxu0 0.0
    %2483 = vmatpush1.xpose.msra.mxu0 0.0
    %2484 = vmatprep.subr.mxu0 0.0
    %2485 = vmatpush1.xpose.msra.mxu0 0.0
    %2486 = vmatprep.subr.mxu0 0.0
    %2487 = vmatpush1.xpose.msra.mxu0 0.0
    %2488 = vmatprep.subr.mxu0 0.0
    %2489 = vmatpush1.xpose.msra.mxu0 0.0
    %2490 = vmatprep.subr.mxu0 0.0
    %2491 = vmatpush1.xpose.msra.mxu0 0.0
    %2492 = vmatprep.subr.mxu0 0.0
    %2493 = vmatpush1.xpose.msra.mxu0 0.0
    %2494 = vmatprep.subr.mxu0 0.0
    %2495 = vmatpush1.xpose.msra.mxu0 0.0
    %2496 = vmatprep.subr.mxu0 0.0
    %2497 = vmatpush1.xpose.msra.mxu0 0.0
    %2498 = vmatprep.subr.mxu0 0.0
    %2499 = vmatpush1.xpose.msra.mxu0 0.0
    %2500 = vmatprep.subr.mxu0 0.0
    %2501 = vmatpush1.xpose.msra.mxu0 0.0
    %2502 = vmatprep.subr.mxu0 0.0
    %2503 = vmatpush1.xpose.msra.mxu0 0.0
    %2504 = vmatprep.subr.mxu0 0.0
    %2505 = vmatpush1.xpose.msra.mxu0 0.0
    %2506 = vmatprep.subr.mxu0 0.0
    %2507 = vmatpush1.xpose.msra.mxu0 0.0
    %2508 = vmatprep.subr.mxu0 0.0
    %2509 = vmatpush1.xpose.msra.mxu0 0.0
    %2510 = vmatprep.subr.mxu0 0.0
    %2511 = vmatpush1.xpose.msra.mxu0 0.0
    %2512 = vmatprep.subr.mxu0 0.0
    %2513 = vmatpush1.xpose.msra.mxu0 0.0
    %2514 = vmatprep.subr.mxu0 0.0
    %2515 = vmatpush1.xpose.msra.mxu0 0.0
    %2516 = vmatprep.subr.mxu0 0.0
    %2517 = vmatpush1.xpose.msra.mxu0 0.0
    %2518 = vmatprep.subr.mxu0 0.0
    %2519 = vmatpush1.xpose.msra.mxu0 0.0
    %2520 = vmatprep.subr.mxu0 0.0
    %2521 = vmatpush1.xpose.msra.mxu0 0.0
    %2522 = vmatprep.subr.mxu0 0.0
    %2523 = vmatpush1.xpose.msra.mxu0 0.0
    %2524 = vmatprep.subr.mxu0 0.0
    %2525 = vmatpush1.xpose.msra.mxu0 0.0
    %2526 = vmatprep.subr.mxu0 0.0
    %2527 = vmatpush1.xpose.msra.mxu0 0.0
    %2528 = vmatprep.subr.mxu0 0.0
    %2529 = vmatpush1.xpose.msra.mxu0 0.0
    %2530 = vmatprep.subr.mxu0 0.0
    %2531 = vmatpush1.xpose.msra.mxu0 0.0
    %2532 = vmatprep.subr.mxu0 0.0
    %2533 = vmatpush1.xpose.msra.mxu0 0.0
    %2534 = vmatprep.subr.mxu0 0.0
    %2535 = vmatpush1.xpose.msra.mxu0 0.0
    %2536 = vmatprep.subr.mxu0 0.0
    %2537 = vmatpush1.xpose.msra.mxu0 0.0
    %2538 = vmatprep.subr.mxu0 0.0
    %2539 = vmatpush1.xpose.msra.mxu0 0.0
    %2540 = vmatprep.mubr.f32.mxu0 0.0
    %2541 = vmatmul.mubr.f32.gmra.mrb[0].mxu0 %v2472
    %v2542 = vpop.f32.mrb[0].mxu0
    %v2543 = vadd.f32 0.0, %v2542
    %v2544 = vpop.f32.mrb[0].mxu0
    %2545 = vdwg.mxu0
    %2546 = vrot.lane.b32.xlu0 %v2131, 120
    %v2547 = vpop.permute.xlu0 %2546
    %2548 = vrot.lane.b32.xlu0 %v2131, 88
    %v2549 = vpop.permute.xlu0 %2548
    %v2550 = vsel %vm272, %v2547, 0
    %v2552 = vsel %vm272, %v2549, 0
    %2554 = vmatprep.subr.mxu0 0.0
    %2555 = vmatpush1.xpose.msra.mxu0 %v2552
    %2556 = vmatprep.subr.mxu0 0.0
    %2557 = vmatpush1.xpose.msra.mxu0 0.0
    %2558 = vmatprep.subr.mxu0 0.0
    %2559 = vmatpush1.xpose.msra.mxu0 0.0
    %2560 = vmatprep.subr.mxu0 0.0
    %2561 = vmatpush1.xpose.msra.mxu0 0.0
    %2562 = vmatprep.subr.mxu0 0.0
    %2563 = vmatpush1.xpose.msra.mxu0 0.0
    %2564 = vmatprep.subr.mxu0 0.0
    %2565 = vmatpush1.xpose.msra.mxu0 0.0
    %2566 = vmatprep.subr.mxu0 0.0
    %2567 = vmatpush1.xpose.msra.mxu0 0.0
    %2568 = vmatprep.subr.mxu0 0.0
    %2569 = vmatpush1.xpose.msra.mxu0 0.0
    %2570 = vmatprep.subr.mxu0 0.0
    %2571 = vmatpush1.xpose.msra.mxu0 0.0
    %2572 = vmatprep.subr.mxu0 0.0
    %2573 = vmatpush1.xpose.msra.mxu0 0.0
    %2574 = vmatprep.subr.mxu0 0.0
    %2575 = vmatpush1.xpose.msra.mxu0 0.0
    %2576 = vmatprep.subr.mxu0 0.0
    %2577 = vmatpush1.xpose.msra.mxu0 0.0
    %2578 = vmatprep.subr.mxu0 0.0
    %2579 = vmatpush1.xpose.msra.mxu0 0.0
    %2580 = vmatprep.subr.mxu0 0.0
    %2581 = vmatpush1.xpose.msra.mxu0 0.0
    %2582 = vmatprep.subr.mxu0 0.0
    %2583 = vmatpush1.xpose.msra.mxu0 0.0
    %2584 = vmatprep.subr.mxu0 0.0
    %2585 = vmatpush1.xpose.msra.mxu0 0.0
    %2586 = vmatprep.subr.mxu0 0.0
    %2587 = vmatpush1.xpose.msra.mxu0 0.0
    %2588 = vmatprep.subr.mxu0 0.0
    %2589 = vmatpush1.xpose.msra.mxu0 0.0
    %2590 = vmatprep.subr.mxu0 0.0
    %2591 = vmatpush1.xpose.msra.mxu0 0.0
    %2592 = vmatprep.subr.mxu0 0.0
    %2593 = vmatpush1.xpose.msra.mxu0 0.0
    %2594 = vmatprep.subr.mxu0 0.0
    %2595 = vmatpush1.xpose.msra.mxu0 0.0
    %2596 = vmatprep.subr.mxu0 0.0
    %2597 = vmatpush1.xpose.msra.mxu0 0.0
    %2598 = vmatprep.subr.mxu0 0.0
    %2599 = vmatpush1.xpose.msra.mxu0 0.0
    %2600 = vmatprep.subr.mxu0 0.0
    %2601 = vmatpush1.xpose.msra.mxu0 0.0
    %2602 = vmatprep.subr.mxu0 0.0
    %2603 = vmatpush1.xpose.msra.mxu0 0.0
    %2604 = vmatprep.subr.mxu0 0.0
    %2605 = vmatpush1.xpose.msra.mxu0 0.0
    %2606 = vmatprep.subr.mxu0 0.0
    %2607 = vmatpush1.xpose.msra.mxu0 0.0
    %2608 = vmatprep.subr.mxu0 0.0
    %2609 = vmatpush1.xpose.msra.mxu0 0.0
    %2610 = vmatprep.subr.mxu0 0.0
    %2611 = vmatpush1.xpose.msra.mxu0 0.0
    %2612 = vmatprep.subr.mxu0 0.0
    %2613 = vmatpush1.xpose.msra.mxu0 0.0
    %2614 = vmatprep.subr.mxu0 0.0
    %2615 = vmatpush1.xpose.msra.mxu0 0.0
    %2616 = vmatprep.subr.mxu0 0.0
    %2617 = vmatpush1.xpose.msra.mxu0 0.0
    %2618 = vmatprep.mubr.f32.mxu0 0.0
    %2619 = vmatmul.mubr.f32.gmra.mrb[0].mxu0 %v2550
    %v2620 = vpop.f32.mrb[0].mxu0
    %v2621 = vadd.f32 0.0, %v2620
    %v2622 = vpop.f32.mrb[0].mxu0
    %2623 = vdwg.mxu0
    %v2624 = vmul.f32 %v2543, 0.35355338
    %v2625 = vmul.f32 %v2621, 0.35355338
    %v2626 = vadd.f32 %v2624, %v452
    %v2627 = vadd.f32 %v2625, %v456
    %v2628 = vsel %vm272, %v2626, -inf
    %2629 = vmax.xlane.f32.xlu0 %v2628
    %v2630 = vpop.xlane.xlu0 %2629
    %v2631 = vsel %vm272, %v2627, -inf
    %2632 = vmax.xlane.f32.xlu0 %v2631
    %v2633 = vpop.xlane.xlu0 %2632
    %v2634 = vsub.f32 %v2626, %v2630
    %v2635 = vsub.f32 %v2627, %v2633
    %v2636 = vmul.f32 %v2634, 1.442695
    %v2637 = vpow.pop %v2636
    %v2638 = vmul.f32 %v2635, 1.442695
    %v2639 = vpow.pop %v2638
    %v2640 = vsel %vm272, %v2637, 0.0
    %2641 = vadd.xlane.f32.xlu0 %v2640
    %v2642 = vpop.xlane.xlu0 %2641
    %v2643 = vsel %vm272, %v2639, 0.0
    %2644 = vadd.xlane.f32.xlu0 %v2643
    %v2645 = vpop.xlane.xlu0 %2644
    %v2646 = vrcp.pop %v2642
    %v2647 = vmul.f32 %v2637, %v2646
    %v2648 = vrcp.pop %v2645
    %v2649 = vmul.f32 %v2639, %v2648
    %2650 = vrot.lane.b32.xlu0 %v2126, 56
    %v2651 = vpop.permute.xlu0 %2650
    %v2654 = vsel %vm272, %v2647, 0
    %2656 = vmatprep.subr.mxu0 0.0
    %2657 = vmatpush1.msra.mxu0 %v2651
    %2658 = vmatprep.subr.mxu0 0.0
    %2659 = vmatpush1.msra.mxu0 0.0
    %2660 = vmatprep.subr.mxu0 0.0
    %2661 = vmatpush1.msra.mxu0 0.0
    %2662 = vmatprep.subr.mxu0 0.0
    %2663 = vmatpush1.msra.mxu0 0.0
    %2664 = vmatprep.subr.mxu0 0.0
    %2665 = vmatpush1.msra.mxu0 0.0
    %2666 = vmatprep.subr.mxu0 0.0
    %2667 = vmatpush1.msra.mxu0 0.0
    %2668 = vmatprep.subr.mxu0 0.0
    %2669 = vmatpush1.msra.mxu0 0.0
    %2670 = vmatprep.subr.mxu0 0.0
    %2671 = vmatpush1.msra.mxu0 0.0
    %2672 = vmatprep.subr.mxu0 0.0
    %2673 = vmatpush1.msra.mxu0 0.0
    %2674 = vmatprep.subr.mxu0 0.0
    %2675 = vmatpush1.msra.mxu0 0.0
    %2676 = vmatprep.subr.mxu0 0.0
    %2677 = vmatpush1.msra.mxu0 0.0
    %2678 = vmatprep.subr.mxu0 0.0
    %2679 = vmatpush1.msra.mxu0 0.0
    %2680 = vmatprep.subr.mxu0 0.0
    %2681 = vmatpush1.msra.mxu0 0.0
    %2682 = vmatprep.subr.mxu0 0.0
    %2683 = vmatpush1.msra.mxu0 0.0
    %2684 = vmatprep.subr.mxu0 0.0
    %2685 = vmatpush1.msra.mxu0 0.0
    %2686 = vmatprep.subr.mxu0 0.0
    %2687 = vmatpush1.msra.mxu0 0.0
    %2688 = vmatprep.subr.mxu0 0.0
    %2689 = vmatpush1.msra.mxu0 0.0
    %2690 = vmatprep.subr.mxu0 0.0
    %2691 = vmatpush1.msra.mxu0 0.0
    %2692 = vmatprep.subr.mxu0 0.0
    %2693 = vmatpush1.msra.mxu0 0.0
    %2694 = vmatprep.subr.mxu0 0.0
    %2695 = vmatpush1.msra.mxu0 0.0
    %2696 = vmatprep.subr.mxu0 0.0
    %2697 = vmatpush1.msra.mxu0 0.0
    %2698 = vmatprep.subr.mxu0 0.0
    %2699 = vmatpush1.msra.mxu0 0.0
    %2700 = vmatprep.subr.mxu0 0.0
    %2701 = vmatpush1.msra.mxu0 0.0
    %2702 = vmatprep.subr.mxu0 0.0
    %2703 = vmatpush1.msra.mxu0 0.0
    %2704 = vmatprep.subr.mxu0 0.0
    %2705 = vmatpush1.msra.mxu0 0.0
    %2706 = vmatprep.subr.mxu0 0.0
    %2707 = vmatpush1.msra.mxu0 0.0
    %2708 = vmatprep.subr.mxu0 0.0
    %2709 = vmatpush1.msra.mxu0 0.0
    %2710 = vmatprep.subr.mxu0 0.0
    %2711 = vmatpush1.msra.mxu0 0.0
    %2712 = vmatprep.subr.mxu0 0.0
    %2713 = vmatpush1.msra.mxu0 0.0
    %2714 = vmatprep.subr.mxu0 0.0
    %2715 = vmatpush1.msra.mxu0 0.0
    %2716 = vmatprep.subr.mxu0 0.0
    %2717 = vmatpush1.msra.mxu0 0.0
    %2718 = vmatprep.subr.mxu0 0.0
    %2719 = vmatpush1.msra.mxu0 0.0
    %2720 = vmatprep.mubr.f32.mxu0 0.0
    %2721 = vmatmul.mubr.f32.gmra.mrb[0].mxu0 %v2654
    %v2722 = vpop.f32.mrb[0].mxu0
    %v2723 = vadd.f32 0.0, %v2722
    %v2724 = vpop.f32.mrb[0].mxu0
    %2725 = vdwg.mxu0
    %2726 = vrot.lane.b32.xlu0 %v2131, 56
    %v2727 = vpop.permute.xlu0 %2726
    %v2730 = vsel %vm272, %v2649, 0
    %2732 = vmatprep.subr.mxu0 0.0
    %2733 = vmatpush1.msra.mxu0 %v2727
    %2734 = vmatprep.subr.mxu0 0.0
    %2735 = vmatpush1.msra.mxu0 0.0
    %2736 = vmatprep.subr.mxu0 0.0
    %2737 = vmatpush1.msra.mxu0 0.0
    %2738 = vmatprep.subr.mxu0 0.0
    %2739 = vmatpush1.msra.mxu0 0.0
    %2740 = vmatprep.subr.mxu0 0.0
    %2741 = vmatpush1.msra.mxu0 0.0
    %2742 = vmatprep.subr.mxu0 0.0
    %2743 = vmatpush1.msra.mxu0 0.0
    %2744 = vmatprep.subr.mxu0 0.0
    %2745 = vmatpush1.msra.mxu0 0.0
    %2746 = vmatprep.subr.mxu0 0.0
    %2747 = vmatpush1.msra.mxu0 0.0
    %2748 = vmatprep.subr.mxu0 0.0
    %2749 = vmatpush1.msra.mxu0 0.0
    %2750 = vmatprep.subr.mxu0 0.0
    %2751 = vmatpush1.msra.mxu0 0.0
    %2752 = vmatprep.subr.mxu0 0.0
    %2753 = vmatpush1.msra.mxu0 0.0
    %2754 = vmatprep.subr.mxu0 0.0
    %2755 = vmatpush1.msra.mxu0 0.0
    %2756 = vmatprep.subr.mxu0 0.0
    %2757 = vmatpush1.msra.mxu0 0.0
    %2758 = vmatprep.subr.mxu0 0.0
    %2759 = vmatpush1.msra.mxu0 0.0
    %2760 = vmatprep.subr.mxu0 0.0
    %2761 = vmatpush1.msra.mxu0 0.0
    %2762 = vmatprep.subr.mxu0 0.0
    %2763 = vmatpush1.msra.mxu0 0.0
    %2764 = vmatprep.subr.mxu0 0.0
    %2765 = vmatpush1.msra.mxu0 0.0
    %2766 = vmatprep.subr.mxu0 0.0
    %2767 = vmatpush1.msra.mxu0 0.0
    %2768 = vmatprep.subr.mxu0 0.0
    %2769 = vmatpush1.msra.mxu0 0.0
    %2770 = vmatprep.subr.mxu0 0.0
    %2771 = vmatpush1.msra.mxu0 0.0
    %2772 = vmatprep.subr.mxu0 0.0
    %2773 = vmatpush1.msra.mxu0 0.0
    %2774 = vmatprep.subr.mxu0 0.0
    %2775 = vmatpush1.msra.mxu0 0.0
    %2776 = vmatprep.subr.mxu0 0.0
    %2777 = vmatpush1.msra.mxu0 0.0
    %2778 = vmatprep.subr.mxu0 0.0
    %2779 = vmatpush1.msra.mxu0 0.0
    %2780 = vmatprep.subr.mxu0 0.0
    %2781 = vmatpush1.msra.mxu0 0.0
    %2782 = vmatprep.subr.mxu0 0.0
    %2783 = vmatpush1.msra.mxu0 0.0
    %2784 = vmatprep.subr.mxu0 0.0
    %2785 = vmatpush1.msra.mxu0 0.0
    %2786 = vmatprep.subr.mxu0 0.0
    %2787 = vmatpush1.msra.mxu0 0.0
    %2788 = vmatprep.subr.mxu0 0.0
    %2789 = vmatpush1.msra.mxu0 0.0
    %2790 = vmatprep.subr.mxu0 0.0
    %2791 = vmatpush1.msra.mxu0 0.0
    %2792 = vmatprep.subr.mxu0 0.0
    %2793 = vmatpush1.msra.mxu0 0.0
    %2794 = vmatprep.subr.mxu0 0.0
    %2795 = vmatpush1.msra.mxu0 0.0
    %2796 = vmatprep.mubr.f32.mxu0 0.0
    %2797 = vmatmul.mubr.f32.gmra.mrb[0].mxu0 %v2730
    %v2798 = vpop.f32.mrb[0].mxu0
    %v2799 = vadd.f32 0.0, %v2798
    %v2800 = vpop.f32.mrb[0].mxu0
    %2801 = vdwg.mxu0
    %2804 = vrot.lane.b32.xlu0 %v2723, 8
    %v2805 = vpop.permute.xlu0 %2804
    %2806 = vrot.lane.b32.xlu0 %v2799, 8
    %v2807 = vpop.permute.xlu0 %2806
    %2810 = vst.msk [vmem:[#allocation2] sm:$0xff] %vm979, %v2805
    %2811 = vst.msk [vmem:[#allocation2 + $0x8] sm:$0xff] %vm979, %v2807
    %2812 = vrot.lane.b32.xlu0 %v2126, 112
    %v2813 = vpop.permute.xlu0 %2812
    %2814 = vrot.lane.b32.xlu0 %v2126, 80
    %v2815 = vpop.permute.xlu0 %2814
    %v2816 = vsel %vm272, %v2813, 0
    %v2818 = vsel %vm272, %v2815, 0
    %2820 = vmatprep.subr.mxu0 0.0
    %2821 = vmatpush1.xpose.msra.mxu0 %v2818
    %2822 = vmatprep.subr.mxu0 0.0
    %2823 = vmatpush1.xpose.msra.mxu0 0.0
    %2824 = vmatprep.subr.mxu0 0.0
    %2825 = vmatpush1.xpose.msra.mxu0 0.0
    %2826 = vmatprep.subr.mxu0 0.0
    %2827 = vmatpush1.xpose.msra.mxu0 0.0
    %2828 = vmatprep.subr.mxu0 0.0
    %2829 = vmatpush1.xpose.msra.mxu0 0.0
    %2830 = vmatprep.subr.mxu0 0.0
    %2831 = vmatpush1.xpose.msra.mxu0 0.0
    %2832 = vmatprep.subr.mxu0 0.0
    %2833 = vmatpush1.xpose.msra.mxu0 0.0
    %2834 = vmatprep.subr.mxu0 0.0
    %2835 = vmatpush1.xpose.msra.mxu0 0.0
    %2836 = vmatprep.subr.mxu0 0.0
    %2837 = vmatpush1.xpose.msra.mxu0 0.0
    %2838 = vmatprep.subr.mxu0 0.0
    %2839 = vmatpush1.xpose.msra.mxu0 0.0
    %2840 = vmatprep.subr.mxu0 0.0
    %2841 = vmatpush1.xpose.msra.mxu0 0.0
    %2842 = vmatprep.subr.mxu0 0.0
    %2843 = vmatpush1.xpose.msra.mxu0 0.0
    %2844 = vmatprep.subr.mxu0 0.0
    %2845 = vmatpush1.xpose.msra.mxu0 0.0
    %2846 = vmatprep.subr.mxu0 0.0
    %2847 = vmatpush1.xpose.msra.mxu0 0.0
    %2848 = vmatprep.subr.mxu0 0.0
    %2849 = vmatpush1.xpose.msra.mxu0 0.0
    %2850 = vmatprep.subr.mxu0 0.0
    %2851 = vmatpush1.xpose.msra.mxu0 0.0
    %2852 = vmatprep.subr.mxu0 0.0
    %2853 = vmatpush1.xpose.msra.mxu0 0.0
    %2854 = vmatprep.subr.mxu0 0.0
    %2855 = vmatpush1.xpose.msra.mxu0 0.0
    %2856 = vmatprep.subr.mxu0 0.0
    %2857 = vmatpush1.xpose.msra.mxu0 0.0
    %2858 = vmatprep.subr.mxu0 0.0
    %2859 = vmatpush1.xpose.msra.mxu0 0.0
    %2860 = vmatprep.subr.mxu0 0.0
    %2861 = vmatpush1.xpose.msra.mxu0 0.0
    %2862 = vmatprep.subr.mxu0 0.0
    %2863 = vmatpush1.xpose.msra.mxu0 0.0
    %2864 = vmatprep.subr.mxu0 0.0
    %2865 = vmatpush1.xpose.msra.mxu0 0.0
    %2866 = vmatprep.subr.mxu0 0.0
    %2867 = vmatpush1.xpose.msra.mxu0 0.0
    %2868 = vmatprep.subr.mxu0 0.0
    %2869 = vmatpush1.xpose.msra.mxu0 0.0
    %2870 = vmatprep.subr.mxu0 0.0
    %2871 = vmatpush1.xpose.msra.mxu0 0.0
    %2872 = vmatprep.subr.mxu0 0.0
    %2873 = vmatpush1.xpose.msra.mxu0 0.0
    %2874 = vmatprep.subr.mxu0 0.0
    %2875 = vmatpush1.xpose.msra.mxu0 0.0
    %2876 = vmatprep.subr.mxu0 0.0
    %2877 = vmatpush1.xpose.msra.mxu0 0.0
    %2878 = vmatprep.subr.mxu0 0.0
    %2879 = vmatpush1.xpose.msra.mxu0 0.0
    %2880 = vmatprep.subr.mxu0 0.0
    %2881 = vmatpush1.xpose.msra.mxu0 0.0
    %2882 = vmatprep.subr.mxu0 0.0
    %2883 = vmatpush1.xpose.msra.mxu0 0.0
    %2884 = vmatprep.mubr.f32.mxu0 0.0
    %2885 = vmatmul.mubr.f32.gmra.mrb[0].mxu0 %v2816
    %v2886 = vpop.f32.mrb[0].mxu0
    %v2887 = vadd.f32 0.0, %v2886
    %v2888 = vpop.f32.mrb[0].mxu0
    %2889 = vdwg.mxu0
    %2890 = vrot.lane.b32.xlu0 %v2131, 112
    %v2891 = vpop.permute.xlu0 %2890
    %2892 = vrot.lane.b32.xlu0 %v2131, 80
    %v2893 = vpop.permute.xlu0 %2892
    %v2894 = vsel %vm272, %v2891, 0
    %v2896 = vsel %vm272, %v2893, 0
    %2898 = vmatprep.subr.mxu0 0.0
    %2899 = vmatpush1.xpose.msra.mxu0 %v2896
    %2900 = vmatprep.subr.mxu0 0.0
    %2901 = vmatpush1.xpose.msra.mxu0 0.0
    %2902 = vmatprep.subr.mxu0 0.0
    %2903 = vmatpush1.xpose.msra.mxu0 0.0
    %2904 = vmatprep.subr.mxu0 0.0
    %2905 = vmatpush1.xpose.msra.mxu0 0.0
    %2906 = vmatprep.subr.mxu0 0.0
    %2907 = vmatpush1.xpose.msra.mxu0 0.0
    %2908 = vmatprep.subr.mxu0 0.0
    %2909 = vmatpush1.xpose.msra.mxu0 0.0
    %2910 = vmatprep.subr.mxu0 0.0
    %2911 = vmatpush1.xpose.msra.mxu0 0.0
    %2912 = vmatprep.subr.mxu0 0.0
    %2913 = vmatpush1.xpose.msra.mxu0 0.0
    %2914 = vmatprep.subr.mxu0 0.0
    %2915 = vmatpush1.xpose.msra.mxu0 0.0
    %2916 = vmatprep.subr.mxu0 0.0
    %2917 = vmatpush1.xpose.msra.mxu0 0.0
    %2918 = vmatprep.subr.mxu0 0.0
    %2919 = vmatpush1.xpose.msra.mxu0 0.0
    %2920 = vmatprep.subr.mxu0 0.0
    %2921 = vmatpush1.xpose.msra.mxu0 0.0
    %2922 = vmatprep.subr.mxu0 0.0
    %2923 = vmatpush1.xpose.msra.mxu0 0.0
    %2924 = vmatprep.subr.mxu0 0.0
    %2925 = vmatpush1.xpose.msra.mxu0 0.0
    %2926 = vmatprep.subr.mxu0 0.0
    %2927 = vmatpush1.xpose.msra.mxu0 0.0
    %2928 = vmatprep.subr.mxu0 0.0
    %2929 = vmatpush1.xpose.msra.mxu0 0.0
    %2930 = vmatprep.subr.mxu0 0.0
    %2931 = vmatpush1.xpose.msra.mxu0 0.0
    %2932 = vmatprep.subr.mxu0 0.0
    %2933 = vmatpush1.xpose.msra.mxu0 0.0
    %2934 = vmatprep.subr.mxu0 0.0
    %2935 = vmatpush1.xpose.msra.mxu0 0.0
    %2936 = vmatprep.subr.mxu0 0.0
    %2937 = vmatpush1.xpose.msra.mxu0 0.0
    %2938 = vmatprep.subr.mxu0 0.0
    %2939 = vmatpush1.xpose.msra.mxu0 0.0
    %2940 = vmatprep.subr.mxu0 0.0
    %2941 = vmatpush1.xpose.msra.mxu0 0.0
    %2942 = vmatprep.subr.mxu0 0.0
    %2943 = vmatpush1.xpose.msra.mxu0 0.0
    %2944 = vmatprep.subr.mxu0 0.0
    %2945 = vmatpush1.xpose.msra.mxu0 0.0
    %2946 = vmatprep.subr.mxu0 0.0
    %2947 = vmatpush1.xpose.msra.mxu0 0.0
    %2948 = vmatprep.subr.mxu0 0.0
    %2949 = vmatpush1.xpose.msra.mxu0 0.0
    %2950 = vmatprep.subr.mxu0 0.0
    %2951 = vmatpush1.xpose.msra.mxu0 0.0
    %2952 = vmatprep.subr.mxu0 0.0
    %2953 = vmatpush1.xpose.msra.mxu0 0.0
    %2954 = vmatprep.subr.mxu0 0.0
    %2955 = vmatpush1.xpose.msra.mxu0 0.0
    %2956 = vmatprep.subr.mxu0 0.0
    %2957 = vmatpush1.xpose.msra.mxu0 0.0
    %2958 = vmatprep.subr.mxu0 0.0
    %2959 = vmatpush1.xpose.msra.mxu0 0.0
    %2960 = vmatprep.subr.mxu0 0.0
    %2961 = vmatpush1.xpose.msra.mxu0 0.0
    %2962 = vmatprep.mubr.f32.mxu0 0.0
    %2963 = vmatmul.mubr.f32.gmra.mrb[0].mxu0 %v2894
    %v2964 = vpop.f32.mrb[0].mxu0
    %v2965 = vadd.f32 0.0, %v2964
    %v2966 = vpop.f32.mrb[0].mxu0
    %2967 = vdwg.mxu0
    %v2968 = vmul.f32 %v2887, 0.35355338
    %v2969 = vmul.f32 %v2965, 0.35355338
    %v2970 = vadd.f32 %v2968, %v452
    %v2971 = vadd.f32 %v2969, %v456
    %v2972 = vsel %vm272, %v2970, -inf
    %2973 = vmax.xlane.f32.xlu0 %v2972
    %v2974 = vpop.xlane.xlu0 %2973
    %v2975 = vsel %vm272, %v2971, -inf
    %2976 = vmax.xlane.f32.xlu0 %v2975
    %v2977 = vpop.xlane.xlu0 %2976
    %v2978 = vsub.f32 %v2970, %v2974
    %v2979 = vsub.f32 %v2971, %v2977
    %v2980 = vmul.f32 %v2978, 1.442695
    %v2981 = vpow.pop %v2980
    %v2982 = vmul.f32 %v2979, 1.442695
    %v2983 = vpow.pop %v2982
    %v2984 = vsel %vm272, %v2981, 0.0
    %2985 = vadd.xlane.f32.xlu0 %v2984
    %v2986 = vpop.xlane.xlu0 %2985
    %v2987 = vsel %vm272, %v2983, 0.0
    %2988 = vadd.xlane.f32.xlu0 %v2987
    %v2989 = vpop.xlane.xlu0 %2988
    %v2990 = vrcp.pop %v2986
    %v2991 = vmul.f32 %v2981, %v2990
    %v2992 = vrcp.pop %v2989
    %v2993 = vmul.f32 %v2983, %v2992
    %2994 = vrot.lane.b32.xlu0 %v2126, 48
    %v2995 = vpop.permute.xlu0 %2994
    %v2998 = vsel %vm272, %v2991, 0
    %3000 = vmatprep.subr.mxu0 0.0
    %3001 = vmatpush1.msra.mxu0 %v2995
    %3002 = vmatprep.subr.mxu0 0.0
    %3003 = vmatpush1.msra.mxu0 0.0
    %3004 = vmatprep.subr.mxu0 0.0
    %3005 = vmatpush1.msra.mxu0 0.0
    %3006 = vmatprep.subr.mxu0 0.0
    %3007 = vmatpush1.msra.mxu0 0.0
    %3008 = vmatprep.subr.mxu0 0.0
    %3009 = vmatpush1.msra.mxu0 0.0
    %3010 = vmatprep.subr.mxu0 0.0
    %3011 = vmatpush1.msra.mxu0 0.0
    %3012 = vmatprep.subr.mxu0 0.0
    %3013 = vmatpush1.msra.mxu0 0.0
    %3014 = vmatprep.subr.mxu0 0.0
    %3015 = vmatpush1.msra.mxu0 0.0
    %3016 = vmatprep.subr.mxu0 0.0
    %3017 = vmatpush1.msra.mxu0 0.0
    %3018 = vmatprep.subr.mxu0 0.0
    %3019 = vmatpush1.msra.mxu0 0.0
    %3020 = vmatprep.subr.mxu0 0.0
    %3021 = vmatpush1.msra.mxu0 0.0
    %3022 = vmatprep.subr.mxu0 0.0
    %3023 = vmatpush1.msra.mxu0 0.0
    %3024 = vmatprep.subr.mxu0 0.0
    %3025 = vmatpush1.msra.mxu0 0.0
    %3026 = vmatprep.subr.mxu0 0.0
    %3027 = vmatpush1.msra.mxu0 0.0
    %3028 = vmatprep.subr.mxu0 0.0
    %3029 = vmatpush1.msra.mxu0 0.0
    %3030 = vmatprep.subr.mxu0 0.0
    %3031 = vmatpush1.msra.mxu0 0.0
    %3032 = vmatprep.subr.mxu0 0.0
    %3033 = vmatpush1.msra.mxu0 0.0
    %3034 = vmatprep.subr.mxu0 0.0
    %3035 = vmatpush1.msra.mxu0 0.0
    %3036 = vmatprep.subr.mxu0 0.0
    %3037 = vmatpush1.msra.mxu0 0.0
    %3038 = vmatprep.subr.mxu0 0.0
    %3039 = vmatpush1.msra.mxu0 0.0
    %3040 = vmatprep.subr.mxu0 0.0
    %3041 = vmatpush1.msra.mxu0 0.0
    %3042 = vmatprep.subr.mxu0 0.0
    %3043 = vmatpush1.msra.mxu0 0.0
    %3044 = vmatprep.subr.mxu0 0.0
    %3045 = vmatpush1.msra.mxu0 0.0
    %3046 = vmatprep.subr.mxu0 0.0
    %3047 = vmatpush1.msra.mxu0 0.0
    %3048 = vmatprep.subr.mxu0 0.0
    %3049 = vmatpush1.msra.mxu0 0.0
    %3050 = vmatprep.subr.mxu0 0.0
    %3051 = vmatpush1.msra.mxu0 0.0
    %3052 = vmatprep.subr.mxu0 0.0
    %3053 = vmatpush1.msra.mxu0 0.0
    %3054 = vmatprep.subr.mxu0 0.0
    %3055 = vmatpush1.msra.mxu0 0.0
    %3056 = vmatprep.subr.mxu0 0.0
    %3057 = vmatpush1.msra.mxu0 0.0
    %3058 = vmatprep.subr.mxu0 0.0
    %3059 = vmatpush1.msra.mxu0 0.0
    %3060 = vmatprep.subr.mxu0 0.0
    %3061 = vmatpush1.msra.mxu0 0.0
    %3062 = vmatprep.subr.mxu0 0.0
    %3063 = vmatpush1.msra.mxu0 0.0
    %3064 = vmatprep.mubr.f32.mxu0 0.0
    %3065 = vmatmul.mubr.f32.gmra.mrb[0].mxu0 %v2998
    %v3066 = vpop.f32.mrb[0].mxu0
    %v3067 = vadd.f32 0.0, %v3066
    %v3068 = vpop.f32.mrb[0].mxu0
    %3069 = vdwg.mxu0
    %3070 = vrot.lane.b32.xlu0 %v2131, 48
    %v3071 = vpop.permute.xlu0 %3070
    %v3074 = vsel %vm272, %v2993, 0
    %3076 = vmatprep.subr.mxu0 0.0
    %3077 = vmatpush1.msra.mxu0 %v3071
    %3078 = vmatprep.subr.mxu0 0.0
    %3079 = vmatpush1.msra.mxu0 0.0
    %3080 = vmatprep.subr.mxu0 0.0
    %3081 = vmatpush1.msra.mxu0 0.0
    %3082 = vmatprep.subr.mxu0 0.0
    %3083 = vmatpush1.msra.mxu0 0.0
    %3084 = vmatprep.subr.mxu0 0.0
    %3085 = vmatpush1.msra.mxu0 0.0
    %3086 = vmatprep.subr.mxu0 0.0
    %3087 = vmatpush1.msra.mxu0 0.0
    %3088 = vmatprep.subr.mxu0 0.0
    %3089 = vmatpush1.msra.mxu0 0.0
    %3090 = vmatprep.subr.mxu0 0.0
    %3091 = vmatpush1.msra.mxu0 0.0
    %3092 = vmatprep.subr.mxu0 0.0
    %3093 = vmatpush1.msra.mxu0 0.0
    %3094 = vmatprep.subr.mxu0 0.0
    %3095 = vmatpush1.msra.mxu0 0.0
    %3096 = vmatprep.subr.mxu0 0.0
    %3097 = vmatpush1.msra.mxu0 0.0
    %3098 = vmatprep.subr.mxu0 0.0
    %3099 = vmatpush1.msra.mxu0 0.0
    %3100 = vmatprep.subr.mxu0 0.0
    %3101 = vmatpush1.msra.mxu0 0.0
    %3102 = vmatprep.subr.mxu0 0.0
    %3103 = vmatpush1.msra.mxu0 0.0
    %3104 = vmatprep.subr.mxu0 0.0
    %3105 = vmatpush1.msra.mxu0 0.0
    %3106 = vmatprep.subr.mxu0 0.0
    %3107 = vmatpush1.msra.mxu0 0.0
    %3108 = vmatprep.subr.mxu0 0.0
    %3109 = vmatpush1.msra.mxu0 0.0
    %3110 = vmatprep.subr.mxu0 0.0
    %3111 = vmatpush1.msra.mxu0 0.0
    %3112 = vmatprep.subr.mxu0 0.0
    %3113 = vmatpush1.msra.mxu0 0.0
    %3114 = vmatprep.subr.mxu0 0.0
    %3115 = vmatpush1.msra.mxu0 0.0
    %3116 = vmatprep.subr.mxu0 0.0
    %3117 = vmatpush1.msra.mxu0 0.0
    %3118 = vmatprep.subr.mxu0 0.0
    %3119 = vmatpush1.msra.mxu0 0.0
    %3120 = vmatprep.subr.mxu0 0.0
    %3121 = vmatpush1.msra.mxu0 0.0
    %3122 = vmatprep.subr.mxu0 0.0
    %3123 = vmatpush1.msra.mxu0 0.0
    %3124 = vmatprep.subr.mxu0 0.0
    %3125 = vmatpush1.msra.mxu0 0.0
    %3126 = vmatprep.subr.mxu0 0.0
    %3127 = vmatpush1.msra.mxu0 0.0
    %3128 = vmatprep.subr.mxu0 0.0
    %3129 = vmatpush1.msra.mxu0 0.0
    %3130 = vmatprep.subr.mxu0 0.0
    %3131 = vmatpush1.msra.mxu0 0.0
    %3132 = vmatprep.subr.mxu0 0.0
    %3133 = vmatpush1.msra.mxu0 0.0
    %3134 = vmatprep.subr.mxu0 0.0
    %3135 = vmatpush1.msra.mxu0 0.0
    %3136 = vmatprep.subr.mxu0 0.0
    %3137 = vmatpush1.msra.mxu0 0.0
    %3138 = vmatprep.subr.mxu0 0.0
    %3139 = vmatpush1.msra.mxu0 0.0
    %3140 = vmatprep.mubr.f32.mxu0 0.0
    %3141 = vmatmul.mubr.f32.gmra.mrb[0].mxu0 %v3074
    %v3142 = vpop.f32.mrb[0].mxu0
    %v3143 = vadd.f32 0.0, %v3142
    %v3144 = vpop.f32.mrb[0].mxu0
    %3145 = vdwg.mxu0
    %3148 = vrot.lane.b32.xlu0 %v3067, 16
    %v3149 = vpop.permute.xlu0 %3148
    %3150 = vrot.lane.b32.xlu0 %v3143, 16
    %v3151 = vpop.permute.xlu0 %3150
    %3154 = vst.msk [vmem:[#allocation2] sm:$0xff] %vm1324, %v3149
    %3155 = vst.msk [vmem:[#allocation2 + $0x8] sm:$0xff] %vm1324, %v3151
    %3156 = vrot.lane.b32.xlu0 %v2126, 104
    %v3157 = vpop.permute.xlu0 %3156
    %3158 = vrot.lane.b32.xlu0 %v2126, 72
    %v3159 = vpop.permute.xlu0 %3158
    %v3160 = vsel %vm272, %v3157, 0
    %v3162 = vsel %vm272, %v3159, 0
    %3164 = vmatprep.subr.mxu0 0.0
    %3165 = vmatpush1.xpose.msra.mxu0 %v3162
    %3166 = vmatprep.subr.mxu0 0.0
    %3167 = vmatpush1.xpose.msra.mxu0 0.0
    %3168 = vmatprep.subr.mxu0 0.0
    %3169 = vmatpush1.xpose.msra.mxu0 0.0
    %3170 = vmatprep.subr.mxu0 0.0
    %3171 = vmatpush1.xpose.msra.mxu0 0.0
    %3172 = vmatprep.subr.mxu0 0.0
    %3173 = vmatpush1.xpose.msra.mxu0 0.0
    %3174 = vmatprep.subr.mxu0 0.0
    %3175 = vmatpush1.xpose.msra.mxu0 0.0
    %3176 = vmatprep.subr.mxu0 0.0
    %3177 = vmatpush1.xpose.msra.mxu0 0.0
    %3178 = vmatprep.subr.mxu0 0.0
    %3179 = vmatpush1.xpose.msra.mxu0 0.0
    %3180 = vmatprep.subr.mxu0 0.0
    %3181 = vmatpush1.xpose.msra.mxu0 0.0
    %3182 = vmatprep.subr.mxu0 0.0
    %3183 = vmatpush1.xpose.msra.mxu0 0.0
    %3184 = vmatprep.subr.mxu0 0.0
    %3185 = vmatpush1.xpose.msra.mxu0 0.0
    %3186 = vmatprep.subr.mxu0 0.0
    %3187 = vmatpush1.xpose.msra.mxu0 0.0
    %3188 = vmatprep.subr.mxu0 0.0
    %3189 = vmatpush1.xpose.msra.mxu0 0.0
    %3190 = vmatprep.subr.mxu0 0.0
    %3191 = vmatpush1.xpose.msra.mxu0 0.0
    %3192 = vmatprep.subr.mxu0 0.0
    %3193 = vmatpush1.xpose.msra.mxu0 0.0
    %3194 = vmatprep.subr.mxu0 0.0
    %3195 = vmatpush1.xpose.msra.mxu0 0.0
    %3196 = vmatprep.subr.mxu0 0.0
    %3197 = vmatpush1.xpose.msra.mxu0 0.0
    %3198 = vmatprep.subr.mxu0 0.0
    %3199 = vmatpush1.xpose.msra.mxu0 0.0
    %3200 = vmatprep.subr.mxu0 0.0
    %3201 = vmatpush1.xpose.msra.mxu0 0.0
    %3202 = vmatprep.subr.mxu0 0.0
    %3203 = vmatpush1.xpose.msra.mxu0 0.0
    %3204 = vmatprep.subr.mxu0 0.0
    %3205 = vmatpush1.xpose.msra.mxu0 0.0
    %3206 = vmatprep.subr.mxu0 0.0
    %3207 = vmatpush1.xpose.msra.mxu0 0.0
    %3208 = vmatprep.subr.mxu0 0.0
    %3209 = vmatpush1.xpose.msra.mxu0 0.0
    %3210 = vmatprep.subr.mxu0 0.0
    %3211 = vmatpush1.xpose.msra.mxu0 0.0
    %3212 = vmatprep.subr.mxu0 0.0
    %3213 = vmatpush1.xpose.msra.mxu0 0.0
    %3214 = vmatprep.subr.mxu0 0.0
    %3215 = vmatpush1.xpose.msra.mxu0 0.0
    %3216 = vmatprep.subr.mxu0 0.0
    %3217 = vmatpush1.xpose.msra.mxu0 0.0
    %3218 = vmatprep.subr.mxu0 0.0
    %3219 = vmatpush1.xpose.msra.mxu0 0.0
    %3220 = vmatprep.subr.mxu0 0.0
    %3221 = vmatpush1.xpose.msra.mxu0 0.0
    %3222 = vmatprep.subr.mxu0 0.0
    %3223 = vmatpush1.xpose.msra.mxu0 0.0
    %3224 = vmatprep.subr.mxu0 0.0
    %3225 = vmatpush1.xpose.msra.mxu0 0.0
    %3226 = vmatprep.subr.mxu0 0.0
    %3227 = vmatpush1.xpose.msra.mxu0 0.0
    %3228 = vmatprep.mubr.f32.mxu0 0.0
    %3229 = vmatmul.mubr.f32.gmra.mrb[0].mxu0 %v3160
    %v3230 = vpop.f32.mrb[0].mxu0
    %v3231 = vadd.f32 0.0, %v3230
    %v3232 = vpop.f32.mrb[0].mxu0
    %3233 = vdwg.mxu0
    %3234 = vrot.lane.b32.xlu0 %v2131, 104
    %v3235 = vpop.permute.xlu0 %3234
    %3236 = vrot.lane.b32.xlu0 %v2131, 72
    %v3237 = vpop.permute.xlu0 %3236
    %v3238 = vsel %vm272, %v3235, 0
    %v3240 = vsel %vm272, %v3237, 0
    %3242 = vmatprep.subr.mxu0 0.0
    %3243 = vmatpush1.xpose.msra.mxu0 %v3240
    %3244 = vmatprep.subr.mxu0 0.0
    %3245 = vmatpush1.xpose.msra.mxu0 0.0
    %3246 = vmatprep.subr.mxu0 0.0
    %3247 = vmatpush1.xpose.msra.mxu0 0.0
    %3248 = vmatprep.subr.mxu0 0.0
    %3249 = vmatpush1.xpose.msra.mxu0 0.0
    %3250 = vmatprep.subr.mxu0 0.0
    %3251 = vmatpush1.xpose.msra.mxu0 0.0
    %3252 = vmatprep.subr.mxu0 0.0
    %3253 = vmatpush1.xpose.msra.mxu0 0.0
    %3254 = vmatprep.subr.mxu0 0.0
    %3255 = vmatpush1.xpose.msra.mxu0 0.0
    %3256 = vmatprep.subr.mxu0 0.0
    %3257 = vmatpush1.xpose.msra.mxu0 0.0
    %3258 = vmatprep.subr.mxu0 0.0
    %3259 = vmatpush1.xpose.msra.mxu0 0.0
    %3260 = vmatprep.subr.mxu0 0.0
    %3261 = vmatpush1.xpose.msra.mxu0 0.0
    %3262 = vmatprep.subr.mxu0 0.0
    %3263 = vmatpush1.xpose.msra.mxu0 0.0
    %3264 = vmatprep.subr.mxu0 0.0
    %3265 = vmatpush1.xpose.msra.mxu0 0.0
    %3266 = vmatprep.subr.mxu0 0.0
    %3267 = vmatpush1.xpose.msra.mxu0 0.0
    %3268 = vmatprep.subr.mxu0 0.0
    %3269 = vmatpush1.xpose.msra.mxu0 0.0
    %3270 = vmatprep.subr.mxu0 0.0
    %3271 = vmatpush1.xpose.msra.mxu0 0.0
    %3272 = vmatprep.subr.mxu0 0.0
    %3273 = vmatpush1.xpose.msra.mxu0 0.0
    %3274 = vmatprep.subr.mxu0 0.0
    %3275 = vmatpush1.xpose.msra.mxu0 0.0
    %3276 = vmatprep.subr.mxu0 0.0
    %3277 = vmatpush1.xpose.msra.mxu0 0.0
    %3278 = vmatprep.subr.mxu0 0.0
    %3279 = vmatpush1.xpose.msra.mxu0 0.0
    %3280 = vmatprep.subr.mxu0 0.0
    %3281 = vmatpush1.xpose.msra.mxu0 0.0
    %3282 = vmatprep.subr.mxu0 0.0
    %3283 = vmatpush1.xpose.msra.mxu0 0.0
    %3284 = vmatprep.subr.mxu0 0.0
    %3285 = vmatpush1.xpose.msra.mxu0 0.0
    %3286 = vmatprep.subr.mxu0 0.0
    %3287 = vmatpush1.xpose.msra.mxu0 0.0
    %3288 = vmatprep.subr.mxu0 0.0
    %3289 = vmatpush1.xpose.msra.mxu0 0.0
    %3290 = vmatprep.subr.mxu0 0.0
    %3291 = vmatpush1.xpose.msra.mxu0 0.0
    %3292 = vmatprep.subr.mxu0 0.0
    %3293 = vmatpush1.xpose.msra.mxu0 0.0
    %3294 = vmatprep.subr.mxu0 0.0
    %3295 = vmatpush1.xpose.msra.mxu0 0.0
    %3296 = vmatprep.subr.mxu0 0.0
    %3297 = vmatpush1.xpose.msra.mxu0 0.0
    %3298 = vmatprep.subr.mxu0 0.0
    %3299 = vmatpush1.xpose.msra.mxu0 0.0
    %3300 = vmatprep.subr.mxu0 0.0
    %3301 = vmatpush1.xpose.msra.mxu0 0.0
    %3302 = vmatprep.subr.mxu0 0.0
    %3303 = vmatpush1.xpose.msra.mxu0 0.0
    %3304 = vmatprep.subr.mxu0 0.0
    %3305 = vmatpush1.xpose.msra.mxu0 0.0
    %3306 = vmatprep.mubr.f32.mxu0 0.0
    %3307 = vmatmul.mubr.f32.gmra.mrb[0].mxu0 %v3238
    %v3308 = vpop.f32.mrb[0].mxu0
    %v3309 = vadd.f32 0.0, %v3308
    %v3310 = vpop.f32.mrb[0].mxu0
    %3311 = vdwg.mxu0
    %v3312 = vmul.f32 %v3231, 0.35355338
    %v3313 = vmul.f32 %v3309, 0.35355338
    %v3314 = vadd.f32 %v3312, %v452
    %v3315 = vadd.f32 %v3313, %v456
    %v3316 = vsel %vm272, %v3314, -inf
    %3317 = vmax.xlane.f32.xlu0 %v3316
    %v3318 = vpop.xlane.xlu0 %3317
    %v3319 = vsel %vm272, %v3315, -inf
    %3320 = vmax.xlane.f32.xlu0 %v3319
    %v3321 = vpop.xlane.xlu0 %3320
    %v3322 = vsub.f32 %v3314, %v3318
    %v3323 = vsub.f32 %v3315, %v3321
    %v3324 = vmul.f32 %v3322, 1.442695
    %v3325 = vpow.pop %v3324
    %v3326 = vmul.f32 %v3323, 1.442695
    %v3327 = vpow.pop %v3326
    %v3328 = vsel %vm272, %v3325, 0.0
    %3329 = vadd.xlane.f32.xlu0 %v3328
    %v3330 = vpop.xlane.xlu0 %3329
    %v3331 = vsel %vm272, %v3327, 0.0
    %3332 = vadd.xlane.f32.xlu0 %v3331
    %v3333 = vpop.xlane.xlu0 %3332
    %v3334 = vrcp.pop %v3330
    %v3335 = vmul.f32 %v3325, %v3334
    %v3336 = vrcp.pop %v3333
    %v3337 = vmul.f32 %v3327, %v3336
    %3338 = vrot.lane.b32.xlu0 %v2126, 40
    %v3339 = vpop.permute.xlu0 %3338
    %v3342 = vsel %vm272, %v3335, 0
    %3344 = vmatprep.subr.mxu0 0.0
    %3345 = vmatpush1.msra.mxu0 %v3339
    %3346 = vmatprep.subr.mxu0 0.0
    %3347 = vmatpush1.msra.mxu0 0.0
    %3348 = vmatprep.subr.mxu0 0.0
    %3349 = vmatpush1.msra.mxu0 0.0
    %3350 = vmatprep.subr.mxu0 0.0
    %3351 = vmatpush1.msra.mxu0 0.0
    %3352 = vmatprep.subr.mxu0 0.0
    %3353 = vmatpush1.msra.mxu0 0.0
    %3354 = vmatprep.subr.mxu0 0.0
    %3355 = vmatpush1.msra.mxu0 0.0
    %3356 = vmatprep.subr.mxu0 0.0
    %3357 = vmatpush1.msra.mxu0 0.0
    %3358 = vmatprep.subr.mxu0 0.0
    %3359 = vmatpush1.msra.mxu0 0.0
    %3360 = vmatprep.subr.mxu0 0.0
    %3361 = vmatpush1.msra.mxu0 0.0
    %3362 = vmatprep.subr.mxu0 0.0
    %3363 = vmatpush1.msra.mxu0 0.0
    %3364 = vmatprep.subr.mxu0 0.0
    %3365 = vmatpush1.msra.mxu0 0.0
    %3366 = vmatprep.subr.mxu0 0.0
    %3367 = vmatpush1.msra.mxu0 0.0
    %3368 = vmatprep.subr.mxu0 0.0
    %3369 = vmatpush1.msra.mxu0 0.0
    %3370 = vmatprep.subr.mxu0 0.0
    %3371 = vmatpush1.msra.mxu0 0.0
    %3372 = vmatprep.subr.mxu0 0.0
    %3373 = vmatpush1.msra.mxu0 0.0
    %3374 = vmatprep.subr.mxu0 0.0
    %3375 = vmatpush1.msra.mxu0 0.0
    %3376 = vmatprep.subr.mxu0 0.0
    %3377 = vmatpush1.msra.mxu0 0.0
    %3378 = vmatprep.subr.mxu0 0.0
    %3379 = vmatpush1.msra.mxu0 0.0
    %3380 = vmatprep.subr.mxu0 0.0
    %3381 = vmatpush1.msra.mxu0 0.0
    %3382 = vmatprep.subr.mxu0 0.0
    %3383 = vmatpush1.msra.mxu0 0.0
    %3384 = vmatprep.subr.mxu0 0.0
    %3385 = vmatpush1.msra.mxu0 0.0
    %3386 = vmatprep.subr.mxu0 0.0
    %3387 = vmatpush1.msra.mxu0 0.0
    %3388 = vmatprep.subr.mxu0 0.0
    %3389 = vmatpush1.msra.mxu0 0.0
    %3390 = vmatprep.subr.mxu0 0.0
    %3391 = vmatpush1.msra.mxu0 0.0
    %3392 = vmatprep.subr.mxu0 0.0
    %3393 = vmatpush1.msra.mxu0 0.0
    %3394 = vmatprep.subr.mxu0 0.0
    %3395 = vmatpush1.msra.mxu0 0.0
    %3396 = vmatprep.subr.mxu0 0.0
    %3397 = vmatpush1.msra.mxu0 0.0
    %3398 = vmatprep.subr.mxu0 0.0
    %3399 = vmatpush1.msra.mxu0 0.0
    %3400 = vmatprep.subr.mxu0 0.0
    %3401 = vmatpush1.msra.mxu0 0.0
    %3402 = vmatprep.subr.mxu0 0.0
    %3403 = vmatpush1.msra.mxu0 0.0
    %3404 = vmatprep.subr.mxu0 0.0
    %3405 = vmatpush1.msra.mxu0 0.0
    %3406 = vmatprep.subr.mxu0 0.0
    %3407 = vmatpush1.msra.mxu0 0.0
    %3408 = vmatprep.mubr.f32.mxu0 0.0
    %3409 = vmatmul.mubr.f32.gmra.mrb[0].mxu0 %v3342
    %v3410 = vpop.f32.mrb[0].mxu0
    %v3411 = vadd.f32 0.0, %v3410
    %v3412 = vpop.f32.mrb[0].mxu0
    %3413 = vdwg.mxu0
    %3414 = vrot.lane.b32.xlu0 %v2131, 40
    %v3415 = vpop.permute.xlu0 %3414
    %v3418 = vsel %vm272, %v3337, 0
    %3420 = vmatprep.subr.mxu0 0.0
    %3421 = vmatpush1.msra.mxu0 %v3415
    %3422 = vmatprep.subr.mxu0 0.0
    %3423 = vmatpush1.msra.mxu0 0.0
    %3424 = vmatprep.subr.mxu0 0.0
    %3425 = vmatpush1.msra.mxu0 0.0
    %3426 = vmatprep.subr.mxu0 0.0
    %3427 = vmatpush1.msra.mxu0 0.0
    %3428 = vmatprep.subr.mxu0 0.0
    %3429 = vmatpush1.msra.mxu0 0.0
    %3430 = vmatprep.subr.mxu0 0.0
    %3431 = vmatpush1.msra.mxu0 0.0
    %3432 = vmatprep.subr.mxu0 0.0
    %3433 = vmatpush1.msra.mxu0 0.0
    %3434 = vmatprep.subr.mxu0 0.0
    %3435 = vmatpush1.msra.mxu0 0.0
    %3436 = vmatprep.subr.mxu0 0.0
    %3437 = vmatpush1.msra.mxu0 0.0
    %3438 = vmatprep.subr.mxu0 0.0
    %3439 = vmatpush1.msra.mxu0 0.0
    %3440 = vmatprep.subr.mxu0 0.0
    %3441 = vmatpush1.msra.mxu0 0.0
    %3442 = vmatprep.subr.mxu0 0.0
    %3443 = vmatpush1.msra.mxu0 0.0
    %3444 = vmatprep.subr.mxu0 0.0
    %3445 = vmatpush1.msra.mxu0 0.0
    %3446 = vmatprep.subr.mxu0 0.0
    %3447 = vmatpush1.msra.mxu0 0.0
    %3448 = vmatprep.subr.mxu0 0.0
    %3449 = vmatpush1.msra.mxu0 0.0
    %3450 = vmatprep.subr.mxu0 0.0
    %3451 = vmatpush1.msra.mxu0 0.0
    %3452 = vmatprep.subr.mxu0 0.0
    %3453 = vmatpush1.msra.mxu0 0.0
    %3454 = vmatprep.subr.mxu0 0.0
    %3455 = vmatpush1.msra.mxu0 0.0
    %3456 = vmatprep.subr.mxu0 0.0
    %3457 = vmatpush1.msra.mxu0 0.0
    %3458 = vmatprep.subr.mxu0 0.0
    %3459 = vmatpush1.msra.mxu0 0.0
    %3460 = vmatprep.subr.mxu0 0.0
    %3461 = vmatpush1.msra.mxu0 0.0
    %3462 = vmatprep.subr.mxu0 0.0
    %3463 = vmatpush1.msra.mxu0 0.0
    %3464 = vmatprep.subr.mxu0 0.0
    %3465 = vmatpush1.msra.mxu0 0.0
    %3466 = vmatprep.subr.mxu0 0.0
    %3467 = vmatpush1.msra.mxu0 0.0
    %3468 = vmatprep.subr.mxu0 0.0
    %3469 = vmatpush1.msra.mxu0 0.0
    %3470 = vmatprep.subr.mxu0 0.0
    %3471 = vmatpush1.msra.mxu0 0.0
    %3472 = vmatprep.subr.mxu0 0.0
    %3473 = vmatpush1.msra.mxu0 0.0
    %3474 = vmatprep.subr.mxu0 0.0
    %3475 = vmatpush1.msra.mxu0 0.0
    %3476 = vmatprep.subr.mxu0 0.0
    %3477 = vmatpush1.msra.mxu0 0.0
    %3478 = vmatprep.subr.mxu0 0.0
    %3479 = vmatpush1.msra.mxu0 0.0
    %3480 = vmatprep.subr.mxu0 0.0
    %3481 = vmatpush1.msra.mxu0 0.0
    %3482 = vmatprep.subr.mxu0 0.0
    %3483 = vmatpush1.msra.mxu0 0.0
    %3484 = vmatprep.mubr.f32.mxu0 0.0
    %3485 = vmatmul.mubr.f32.gmra.mrb[0].mxu0 %v3418
    %v3486 = vpop.f32.mrb[0].mxu0
    %v3487 = vadd.f32 0.0, %v3486
    %v3488 = vpop.f32.mrb[0].mxu0
    %3489 = vdwg.mxu0
    %3492 = vrot.lane.b32.xlu0 %v3411, 24
    %v3493 = vpop.permute.xlu0 %3492
    %3494 = vrot.lane.b32.xlu0 %v3487, 24
    %v3495 = vpop.permute.xlu0 %3494
    %3498 = vst.msk [vmem:[#allocation2] sm:$0xff] %vm1669, %v3493
    %3499 = vst.msk [vmem:[#allocation2 + $0x8] sm:$0xff] %vm1669, %v3495
    %v3500 = vld [vmem:[#allocation2] sm:$0xff]
    %v3501 = vld [vmem:[#allocation2 + $0x8] sm:$0xff]
    %v3502 = vld [vmem:[%s2043 + $0x20] sm:$0xff]
    %v3503 = vld [vmem:[%s2043 + $0x28] sm:$0xff]
    %v3504 = vld [vmem:[%s2043 + $0x30] sm:$0xff]
    %v3505 = vld [vmem:[%s2043 + $0x38] sm:$0xff]
    %v3506 = vld [vmem:[%s2043 + $0xa8] sm:$0x1]
    %v3507 = vlaneseq
    %v3508 = vshrl.u32 %v3507, 7
    %v3509 = vsub.s32 0, %v3508
    %v3510 = vrot.slane %v3506, %v3509
    %v3512 = vsel %vm136, %v3500, 0
    %v3515 = vsel %vm136, %v3501, 0
    %3517 = vmatprep.subr.mxu0 0.0
    %3518 = vmatpush1.msra.mxu0 %v3502
    %3519 = vmatprep.subr.mxu0 0.0
    %3520 = vmatpush1.msra.mxu0 %v3503
    %3521 = vmatprep.subr.mxu0 0.0
    %3522 = vmatpush1.msra.mxu0 %v3504
    %3523 = vmatprep.subr.mxu0 0.0
    %3524 = vmatpush1.msra.mxu0 %v3505
    %3525 = vmatprep.subr.mxu0 0.0
    %3526 = vmatpush1.msra.mxu0 0.0
    %3527 = vmatprep.subr.mxu0 0.0
    %3528 = vmatpush1.msra.mxu0 0.0
    %3529 = vmatprep.subr.mxu0 0.0
    %3530 = vmatpush1.msra.mxu0 0.0
    %3531 = vmatprep.subr.mxu0 0.0
    %3532 = vmatpush1.msra.mxu0 0.0
    %3533 = vmatprep.subr.mxu0 0.0
    %3534 = vmatpush1.msra.mxu0 0.0
    %3535 = vmatprep.subr.mxu0 0.0
    %3536 = vmatpush1.msra.mxu0 0.0
    %3537 = vmatprep.subr.mxu0 0.0
    %3538 = vmatpush1.msra.mxu0 0.0
    %3539 = vmatprep.subr.mxu0 0.0
    %3540 = vmatpush1.msra.mxu0 0.0
    %3541 = vmatprep.subr.mxu0 0.0
    %3542 = vmatpush1.msra.mxu0 0.0
    %3543 = vmatprep.subr.mxu0 0.0
    %3544 = vmatpush1.msra.mxu0 0.0
    %3545 = vmatprep.subr.mxu0 0.0
    %3546 = vmatpush1.msra.mxu0 0.0
    %3547 = vmatprep.subr.mxu0 0.0
    %3548 = vmatpush1.msra.mxu0 0.0
    %3549 = vmatprep.subr.mxu0 0.0
    %3550 = vmatpush1.msra.mxu0 0.0
    %3551 = vmatprep.subr.mxu0 0.0
    %3552 = vmatpush1.msra.mxu0 0.0
    %3553 = vmatprep.subr.mxu0 0.0
    %3554 = vmatpush1.msra.mxu0 0.0
    %3555 = vmatprep.subr.mxu0 0.0
    %3556 = vmatpush1.msra.mxu0 0.0
    %3557 = vmatprep.subr.mxu0 0.0
    %3558 = vmatpush1.msra.mxu0 0.0
    %3559 = vmatprep.subr.mxu0 0.0
    %3560 = vmatpush1.msra.mxu0 0.0
    %3561 = vmatprep.subr.mxu0 0.0
    %3562 = vmatpush1.msra.mxu0 0.0
    %3563 = vmatprep.subr.mxu0 0.0
    %3564 = vmatpush1.msra.mxu0 0.0
    %3565 = vmatprep.subr.mxu0 0.0
    %3566 = vmatpush1.msra.mxu0 0.0
    %3567 = vmatprep.subr.mxu0 0.0
    %3568 = vmatpush1.msra.mxu0 0.0
    %3569 = vmatprep.subr.mxu0 0.0
    %3570 = vmatpush1.msra.mxu0 0.0
    %3571 = vmatprep.subr.mxu0 0.0
    %3572 = vmatpush1.msra.mxu0 0.0
    %3573 = vmatprep.subr.mxu0 0.0
    %3574 = vmatpush1.msra.mxu0 0.0
    %3575 = vmatprep.subr.mxu0 0.0
    %3576 = vmatpush1.msra.mxu0 0.0
    %3577 = vmatprep.subr.mxu0 0.0
    %3578 = vmatpush1.msra.mxu0 0.0
    %3579 = vmatprep.subr.mxu0 0.0
    %3580 = vmatpush1.msra.mxu0 0.0
    %3581 = vmatprep.mubr.f32.mxu0 0.0
    %3582 = vmatmul.mubr.f32.gmra.mrb[0].mxu0 %v3512
    %v3583 = vpop.f32.mrb[0].mxu0
    %v3584 = vadd.f32 %v3510, %v3583
    %v3585 = vpop.f32.mrb[0].mxu0
    %3586 = vmatprep.mubr.f32.mxu0 0.0
    %3587 = vmatmul.mubr.f32.gmra.mrb[0].mxu0 %v3515
    %v3588 = vpop.f32.mrb[0].mxu0
    %v3589 = vadd.f32 %v3510, %v3588
    %v3590 = vpop.f32.mrb[0].mxu0
    %3591 = vdwg.mxu0
    %v3592 = vadd.f32 %v3584, %v2041
    %v3593 = vadd.f32 %v3589, %v2042
    %v3594 = vld [vmem:[%s2043 + $0xb0] sm:$0x1]
    %v3595 = vld [vmem:[%s2043 + $0xb8] sm:$0x1]
    %v3596 = vsel %vm136, %v3592, 0.0
    %3597 = vadd.xlane.f32.xlu0 %v3596
    %v3598 = vpop.xlane.xlu0 %3597
    %v3599 = vsel %vm136, %v3593, 0.0
    %3600 = vadd.xlane.f32.xlu0 %v3599
    %v3601 = vpop.xlane.xlu0 %3600
    %v3602 = vmul.f32 %v3598, %v143
    %v3603 = vmul.f32 %v3601, %v143
    %v3604 = vsub.f32 %v3592, %v3602
    %v3605 = vsub.f32 %v3593, %v3603
    %v3606 = vmul.f32 %v3604, %v3604
    %v3607 = vmul.f32 %v3605, %v3605
    %v3608 = vsel %vm136, %v3606, 0.0
    %3609 = vadd.xlane.f32.xlu0 %v3608
    %v3610 = vpop.xlane.xlu0 %3609
    %v3611 = vsel %vm136, %v3607, 0.0
    %3612 = vadd.xlane.f32.xlu0 %v3611
    %v3613 = vpop.xlane.xlu0 %3612
    %v3614 = vmul.f32 %v3610, %v143
    %v3615 = vmul.f32 %v3613, %v143
    %v3616 = vadd.f32 %v3614, 1e-12
    %v3617 = vadd.f32 %v3615, 1e-12
    %v3618 = vrsqrt.pop %v3616
    %v3619 = vrsqrt.pop %v3617
    %v3620 = vmul.f32 %v3604, %v3618
    %v3621 = vmul.f32 %v3605, %v3619
    %v3622 = vlaneseq
    %v3623 = vshrl.u32 %v3622, 7
    %v3624 = vsub.s32 0, %v3623
    %v3625 = vrot.slane %v3594, %v3624
    %v3626 = vmul.f32 %v3620, %v3625
    %v3627 = vmul.f32 %v3621, %v3625
    %v3628 = vlaneseq
    %v3629 = vshrl.u32 %v3628, 7
    %v3630 = vsub.s32 0, %v3629
    %v3631 = vrot.slane %v3595, %v3630
    %v3632 = vadd.f32 %v3626, %v3631
    %v3633 = vadd.f32 %v3627, %v3631
    %v3634 = vld [vmem:[%s2043 + $0x40] sm:$0xff]
    %v3635 = vld [vmem:[%s2043 + $0x48] sm:$0xff]
    %v3636 = vld [vmem:[%s2043 + $0x50] sm:$0xff]
    %v3637 = vld [vmem:[%s2043 + $0x58] sm:$0xff]
    %v3638 = vld [vmem:[%s2043 + $0xc0] sm:$0x1]
    %v3639 = vlaneseq
    %v3640 = vshrl.u32 %v3639, 7
    %v3641 = vsub.s32 0, %v3640
    %v3642 = vrot.slane %v3638, %v3641
    %v3644 = vsel %vm136, %v3632, 0
    %v3647 = vsel %vm136, %v3633, 0
    %3649 = vmatprep.subr.mxu0 0.0
    %3650 = vmatpush1.msra.mxu0 %v3634
    %3651 = vmatprep.subr.mxu0 0.0
    %3652 = vmatpush1.msra.mxu0 %v3635
    %3653 = vmatprep.subr.mxu0 0.0
    %3654 = vmatpush1.msra.mxu0 %v3636
    %3655 = vmatprep.subr.mxu0 0.0
    %3656 = vmatpush1.msra.mxu0 %v3637
    %3657 = vmatprep.subr.mxu0 0.0
    %3658 = vmatpush1.msra.mxu0 0.0
    %3659 = vmatprep.subr.mxu0 0.0
    %3660 = vmatpush1.msra.mxu0 0.0
    %3661 = vmatprep.subr.mxu0 0.0
    %3662 = vmatpush1.msra.mxu0 0.0
    %3663 = vmatprep.subr.mxu0 0.0
    %3664 = vmatpush1.msra.mxu0 0.0
    %3665 = vmatprep.subr.mxu0 0.0
    %3666 = vmatpush1.msra.mxu0 0.0
    %3667 = vmatprep.subr.mxu0 0.0
    %3668 = vmatpush1.msra.mxu0 0.0
    %3669 = vmatprep.subr.mxu0 0.0
    %3670 = vmatpush1.msra.mxu0 0.0
    %3671 = vmatprep.subr.mxu0 0.0
    %3672 = vmatpush1.msra.mxu0 0.0
    %3673 = vmatprep.subr.mxu0 0.0
    %3674 = vmatpush1.msra.mxu0 0.0
    %3675 = vmatprep.subr.mxu0 0.0
    %3676 = vmatpush1.msra.mxu0 0.0
    %3677 = vmatprep.subr.mxu0 0.0
    %3678 = vmatpush1.msra.mxu0 0.0
    %3679 = vmatprep.subr.mxu0 0.0
    %3680 = vmatpush1.msra.mxu0 0.0
    %3681 = vmatprep.subr.mxu0 0.0
    %3682 = vmatpush1.msra.mxu0 0.0
    %3683 = vmatprep.subr.mxu0 0.0
    %3684 = vmatpush1.msra.mxu0 0.0
    %3685 = vmatprep.subr.mxu0 0.0
    %3686 = vmatpush1.msra.mxu0 0.0
    %3687 = vmatprep.subr.mxu0 0.0
    %3688 = vmatpush1.msra.mxu0 0.0
    %3689 = vmatprep.subr.mxu0 0.0
    %3690 = vmatpush1.msra.mxu0 0.0
    %3691 = vmatprep.subr.mxu0 0.0
    %3692 = vmatpush1.msra.mxu0 0.0
    %3693 = vmatprep.subr.mxu0 0.0
    %3694 = vmatpush1.msra.mxu0 0.0
    %3695 = vmatprep.subr.mxu0 0.0
    %3696 = vmatpush1.msra.mxu0 0.0
    %3697 = vmatprep.subr.mxu0 0.0
    %3698 = vmatpush1.msra.mxu0 0.0
    %3699 = vmatprep.subr.mxu0 0.0
    %3700 = vmatpush1.msra.mxu0 0.0
    %3701 = vmatprep.subr.mxu0 0.0
    %3702 = vmatpush1.msra.mxu0 0.0
    %3703 = vmatprep.subr.mxu0 0.0
    %3704 = vmatpush1.msra.mxu0 0.0
    %3705 = vmatprep.subr.mxu0 0.0
    %3706 = vmatpush1.msra.mxu0 0.0
    %3707 = vmatprep.subr.mxu0 0.0
    %3708 = vmatpush1.msra.mxu0 0.0
    %3709 = vmatprep.subr.mxu0 0.0
    %3710 = vmatpush1.msra.mxu0 0.0
    %3711 = vmatprep.subr.mxu0 0.0
    %3712 = vmatpush1.msra.mxu0 0.0
    %3713 = vmatprep.mubr.f32.mxu0 0.0
    %3714 = vmatmul.mubr.f32.gmra.mrb[0].mxu0 %v3644
    %v3715 = vpop.f32.mrb[0].mxu0
    %v3716 = vadd.f32 %v3642, %v3715
    %v3717 = vpop.f32.mrb[0].mxu0
    %3718 = vmatprep.mubr.f32.mxu0 0.0
    %3719 = vmatmul.mubr.f32.gmra.mrb[0].mxu0 %v3647
    %v3720 = vpop.f32.mrb[0].mxu0
    %v3721 = vadd.f32 %v3642, %v3720
    %v3722 = vpop.f32.mrb[0].mxu0
    %3723 = vdwg.mxu0
    %v3724 = vmul.f32 %v3716, 0.5
    %v3725 = vmul.f32 %v3721, 0.5
    %v3726 = vmul.f32 %v3716, 0.70710677
    %v3727 = vmul.f32 %v3721, 0.70710677
    %v3728 = verf.f32.pop %v3726
    %v3729 = verf.f32.pop %v3727
    %v3730 = vadd.f32 %v3728, 1.0
    %v3731 = vadd.f32 %v3729, 1.0
    %v3732 = vmul.f32 %v3724, %v3730
    %v3733 = vmul.f32 %v3725, %v3731
    %v3734 = vld [vmem:[%s2043 + $0x60] sm:$0xff]
    %v3735 = vld [vmem:[%s2043 + $0x68] sm:$0xff]
    %v3736 = vld [vmem:[%s2043 + $0x70] sm:$0xff]
    %v3737 = vld [vmem:[%s2043 + $0x78] sm:$0xff]
    %v3738 = vld [vmem:[%s2043 + $0x80] sm:$0xff]
    %v3739 = vld [vmem:[%s2043 + $0x88] sm:$0xff]
    %v3740 = vld [vmem:[%s2043 + $0x90] sm:$0xff]
    %v3741 = vld [vmem:[%s2043 + $0x98] sm:$0xff]
    %v3742 = vld [vmem:[%s2043 + $0xc8] sm:$0x1]
    %v3743 = vlaneseq
    %v3744 = vshrl.u32 %v3743, 7
    %v3745 = vsub.s32 0, %v3744
    %v3746 = vrot.slane %v3742, %v3745
    %v3748 = vsel %vm1919, %v3732, 0
    %v3751 = vsel %vm1919, %v3733, 0
    %3753 = vmatprep.subr.mxu0 0.0
    %3754 = vmatpush1.msra.mxu0 %v3734
    %3755 = vmatprep.subr.mxu0 0.0
    %3756 = vmatpush1.msra.mxu0 %v3735
    %3757 = vmatprep.subr.mxu0 0.0
    %3758 = vmatpush1.msra.mxu0 %v3736
    %3759 = vmatprep.subr.mxu0 0.0
    %3760 = vmatpush1.msra.mxu0 %v3737
    %3761 = vmatprep.subr.mxu0 0.0
    %3762 = vmatpush1.msra.mxu0 %v3738
    %3763 = vmatprep.subr.mxu0 0.0
    %3764 = vmatpush1.msra.mxu0 %v3739
    %3765 = vmatprep.subr.mxu0 0.0
    %3766 = vmatpush1.msra.mxu0 %v3740
    %3767 = vmatprep.subr.mxu0 0.0
    %3768 = vmatpush1.msra.mxu0 %v3741
    %3769 = vmatprep.subr.mxu0 0.0
    %3770 = vmatpush1.msra.mxu0 0.0
    %3771 = vmatprep.subr.mxu0 0.0
    %3772 = vmatpush1.msra.mxu0 0.0
    %3773 = vmatprep.subr.mxu0 0.0
    %3774 = vmatpush1.msra.mxu0 0.0
    %3775 = vmatprep.subr.mxu0 0.0
    %3776 = vmatpush1.msra.mxu0 0.0
    %3777 = vmatprep.subr.mxu0 0.0
    %3778 = vmatpush1.msra.mxu0 0.0
    %3779 = vmatprep.subr.mxu0 0.0
    %3780 = vmatpush1.msra.mxu0 0.0
    %3781 = vmatprep.subr.mxu0 0.0
    %3782 = vmatpush1.msra.mxu0 0.0
    %3783 = vmatprep.subr.mxu0 0.0
    %3784 = vmatpush1.msra.mxu0 0.0
    %3785 = vmatprep.subr.mxu0 0.0
    %3786 = vmatpush1.msra.mxu0 0.0
    %3787 = vmatprep.subr.mxu0 0.0
    %3788 = vmatpush1.msra.mxu0 0.0
    %3789 = vmatprep.subr.mxu0 0.0
    %3790 = vmatpush1.msra.mxu0 0.0
    %3791 = vmatprep.subr.mxu0 0.0
    %3792 = vmatpush1.msra.mxu0 0.0
    %3793 = vmatprep.subr.mxu0 0.0
    %3794 = vmatpush1.msra.mxu0 0.0
    %3795 = vmatprep.subr.mxu0 0.0
    %3796 = vmatpush1.msra.mxu0 0.0
    %3797 = vmatprep.subr.mxu0 0.0
    %3798 = vmatpush1.msra.mxu0 0.0
    %3799 = vmatprep.subr.mxu0 0.0
    %3800 = vmatpush1.msra.mxu0 0.0
    %3801 = vmatprep.subr.mxu0 0.0
    %3802 = vmatpush1.msra.mxu0 0.0
    %3803 = vmatprep.subr.mxu0 0.0
    %3804 = vmatpush1.msra.mxu0 0.0
    %3805 = vmatprep.subr.mxu0 0.0
    %3806 = vmatpush1.msra.mxu0 0.0
    %3807 = vmatprep.subr.mxu0 0.0
    %3808 = vmatpush1.msra.mxu0 0.0
    %3809 = vmatprep.subr.mxu0 0.0
    %3810 = vmatpush1.msra.mxu0 0.0
    %3811 = vmatprep.subr.mxu0 0.0
    %3812 = vmatpush1.msra.mxu0 0.0
    %3813 = vmatprep.subr.mxu0 0.0
    %3814 = vmatpush1.msra.mxu0 0.0
    %3815 = vmatprep.subr.mxu0 0.0
    %3816 = vmatpush1.msra.mxu0 0.0
    %3817 = vmatprep.mubr.f32.mxu0 0.0
    %3818 = vmatmul.mubr.f32.gmra.mrb[0].mxu0 %v3748
    %v3819 = vpop.f32.mrb[0].mxu0
    %v3820 = vadd.f32 %v3746, %v3819
    %v3821 = vpop.f32.mrb[0].mxu0
    %3822 = vmatprep.mubr.f32.mxu0 0.0
    %3823 = vmatmul.mubr.f32.gmra.mrb[0].mxu0 %v3751
    %v3824 = vpop.f32.mrb[0].mxu0
    %v3825 = vadd.f32 %v3746, %v3824
    %v3826 = vpop.f32.mrb[0].mxu0
    %3827 = vdwg.mxu0
    %v3828 = vadd.f32 %v3820, %v3632
    %v3829 = vadd.f32 %v3825, %v3633
    %v3830 = vld [vmem:[%s2043 + $0xd0] sm:$0x1]
    %v3831 = vld [vmem:[%s2043 + $0xd8] sm:$0x1]
    %v3832 = vsel %vm136, %v3828, 0.0
    %3833 = vadd.xlane.f32.xlu0 %v3832
    %v3834 = vpop.xlane.xlu0 %3833
    %v3835 = vsel %vm136, %v3829, 0.0
    %3836 = vadd.xlane.f32.xlu0 %v3835
    %v3837 = vpop.xlane.xlu0 %3836
    %v3838 = vmul.f32 %v3834, %v143
    %v3839 = vmul.f32 %v3837, %v143
    %v3840 = vsub.f32 %v3828, %v3838
    %v3841 = vsub.f32 %v3829, %v3839
    %v3842 = vmul.f32 %v3840, %v3840
    %v3843 = vmul.f32 %v3841, %v3841
    %v3844 = vsel %vm136, %v3842, 0.0
    %3845 = vadd.xlane.f32.xlu0 %v3844
    %v3846 = vpop.xlane.xlu0 %3845
    %v3847 = vsel %vm136, %v3843, 0.0
    %3848 = vadd.xlane.f32.xlu0 %v3847
    %v3849 = vpop.xlane.xlu0 %3848
    %v3850 = vmul.f32 %v3846, %v143
    %v3851 = vmul.f32 %v3849, %v143
    %v3852 = vadd.f32 %v3850, 1e-12
    %v3853 = vadd.f32 %v3851, 1e-12
    %v3854 = vrsqrt.pop %v3852
    %v3855 = vrsqrt.pop %v3853
    %v3856 = vmul.f32 %v3840, %v3854
    %v3857 = vmul.f32 %v3841, %v3855
    %v3858 = vlaneseq
    %v3859 = vshrl.u32 %v3858, 7
    %v3860 = vsub.s32 0, %v3859
    %v3861 = vrot.slane %v3830, %v3860
    %v3862 = vmul.f32 %v3856, %v3861
    %v3863 = vmul.f32 %v3857, %v3861
    %v3864 = vlaneseq
    %v3865 = vshrl.u32 %v3864, 7
    %v3866 = vsub.s32 0, %v3865
    %v3867 = vrot.slane %v3831, %v3866
    %v3868 = vadd.f32 %v3862, %v3867
    %v3869 = vadd.f32 %v3863, %v3867
    %v3870 = vlaneseq
    %v3871 = vshrl.u32 %v3870, 7
    %v3872 = vmul.u32 %v3871, 8
    %vm3873 = vcmp.eq.s32.totalorder %v21, %v3872
    %v3874 = vsel %vm3873, 1, 0
    %v3875 = vcvt.s32.f32 %v3874
    %vm3876 = vcmask 130048
    %v3878 = vsel %vm3876, %v3875, 0
    %3880 = vmatprep.subr.mxu0 0.0
    %3881 = vmatpush1.msra.mxu0 %v3868
    %3882 = vmatprep.subr.mxu0 0.0
    %3883 = vmatpush1.msra.mxu0 %v3869
    %3884 = vmatprep.subr.mxu0 0.0
    %3885 = vmatpush1.msra.mxu0 0.0
    %3886 = vmatprep.subr.mxu0 0.0
    %3887 = vmatpush1.msra.mxu0 0.0
    %3888 = vmatprep.subr.mxu0 0.0
    %3889 = vmatpush1.msra.mxu0 0.0
    %3890 = vmatprep.subr.mxu0 0.0
    %3891 = vmatpush1.msra.mxu0 0.0
    %3892 = vmatprep.subr.mxu0 0.0
    %3893 = vmatpush1.msra.mxu0 0.0
    %3894 = vmatprep.subr.mxu0 0.0
    %3895 = vmatpush1.msra.mxu0 0.0
    %3896 = vmatprep.subr.mxu0 0.0
    %3897 = vmatpush1.msra.mxu0 0.0
    %3898 = vmatprep.subr.mxu0 0.0
    %3899 = vmatpush1.msra.mxu0 0.0
    %3900 = vmatprep.subr.mxu0 0.0
    %3901 = vmatpush1.msra.mxu0 0.0
    %3902 = vmatprep.subr.mxu0 0.0
    %3903 = vmatpush1.msra.mxu0 0.0
    %3904 = vmatprep.subr.mxu0 0.0
    %3905 = vmatpush1.msra.mxu0 0.0
    %3906 = vmatprep.subr.mxu0 0.0
    %3907 = vmatpush1.msra.mxu0 0.0
    %3908 = vmatprep.subr.mxu0 0.0
    %3909 = vmatpush1.msra.mxu0 0.0
    %3910 = vmatprep.subr.mxu0 0.0
    %3911 = vmatpush1.msra.mxu0 0.0
    %3912 = vmatprep.subr.mxu0 0.0
    %3913 = vmatpush1.msra.mxu0 0.0
    %3914 = vmatprep.subr.mxu0 0.0
    %3915 = vmatpush1.msra.mxu0 0.0
    %3916 = vmatprep.subr.mxu0 0.0
    %3917 = vmatpush1.msra.mxu0 0.0
    %3918 = vmatprep.subr.mxu0 0.0
    %3919 = vmatpush1.msra.mxu0 0.0
    %3920 = vmatprep.subr.mxu0 0.0
    %3921 = vmatpush1.msra.mxu0 0.0
    %3922 = vmatprep.subr.mxu0 0.0
    %3923 = vmatpush1.msra.mxu0 0.0
    %3924 = vmatprep.subr.mxu0 0.0
    %3925 = vmatpush1.msra.mxu0 0.0
    %3926 = vmatprep.subr.mxu0 0.0
    %3927 = vmatpush1.msra.mxu0 0.0
    %3928 = vmatprep.subr.mxu0 0.0
    %3929 = vmatpush1.msra.mxu0 0.0
    %3930 = vmatprep.subr.mxu0 0.0
    %3931 = vmatpush1.msra.mxu0 0.0
    %3932 = vmatprep.subr.mxu0 0.0
    %3933 = vmatpush1.msra.mxu0 0.0
    %3934 = vmatprep.subr.mxu0 0.0
    %3935 = vmatpush1.msra.mxu0 0.0
    %3936 = vmatprep.subr.mxu0 0.0
    %3937 = vmatpush1.msra.mxu0 0.0
    %3938 = vmatprep.subr.mxu0 0.0
    %3939 = vmatpush1.msra.mxu0 0.0
    %3940 = vmatprep.subr.mxu0 0.0
    %3941 = vmatpush1.msra.mxu0 0.0
    %3942 = vmatprep.subr.mxu0 0.0
    %3943 = vmatpush1.msra.mxu0 0.0
    %3944 = vmatprep.mubr.f32.mxu0 0.0
    %3945 = vmatmul.mubr.f32.gmra.mrb[0].mxu0 %v3878
    %v3946 = vpop.f32.mrb[0].mxu0
    %v3947 = vadd.f32 0.0, %v3946
    %v3948 = vpop.f32.mrb[0].mxu0
    %3949 = vdwg.mxu0
    %v3950 = vld [vmem:[%s2 + $0x48] sm:$0xff]
    %v3951 = vld [vmem:[%s2 + $0x50] sm:$0xff]
    %v3952 = vld [vmem:[%s2 + $0x58] sm:$0xff]
    %v3953 = vld [vmem:[%s2 + $0x60] sm:$0xff]
    %v3954 = vld [vmem:[%s2 + $0x68] sm:$0x1]
    %v3955 = vlaneseq
    %v3956 = vshrl.u32 %v3955, 7
    %v3957 = vsub.s32 0, %v3956
    %v3958 = vrot.slane %v3954, %v3957
    %v3960 = vsel %vm136, %v3947, 0
    %3962 = vmatprep.subr.mxu0 0.0
    %3963 = vmatpush1.msra.mxu0 %v3950
    %3964 = vmatprep.subr.mxu0 0.0
    %3965 = vmatpush1.msra.mxu0 %v3951
    %3966 = vmatprep.subr.mxu0 0.0
    %3967 = vmatpush1.msra.mxu0 %v3952
    %3968 = vmatprep.subr.mxu0 0.0
    %3969 = vmatpush1.msra.mxu0 %v3953
    %3970 = vmatprep.subr.mxu0 0.0
    %3971 = vmatpush1.msra.mxu0 0.0
    %3972 = vmatprep.subr.mxu0 0.0
    %3973 = vmatpush1.msra.mxu0 0.0
    %3974 = vmatprep.subr.mxu0 0.0
    %3975 = vmatpush1.msra.mxu0 0.0
    %3976 = vmatprep.subr.mxu0 0.0
    %3977 = vmatpush1.msra.mxu0 0.0
    %3978 = vmatprep.subr.mxu0 0.0
    %3979 = vmatpush1.msra.mxu0 0.0
    %3980 = vmatprep.subr.mxu0 0.0
    %3981 = vmatpush1.msra.mxu0 0.0
    %3982 = vmatprep.subr.mxu0 0.0
    %3983 = vmatpush1.msra.mxu0 0.0
    %3984 = vmatprep.subr.mxu0 0.0
    %3985 = vmatpush1.msra.mxu0 0.0
    %3986 = vmatprep.subr.mxu0 0.0
    %3987 = vmatpush1.msra.mxu0 0.0
    %3988 = vmatprep.subr.mxu0 0.0
    %3989 = vmatpush1.msra.mxu0 0.0
    %3990 = vmatprep.subr.mxu0 0.0
    %3991 = vmatpush1.msra.mxu0 0.0
    %3992 = vmatprep.subr.mxu0 0.0
    %3993 = vmatpush1.msra.mxu0 0.0
    %3994 = vmatprep.subr.mxu0 0.0
    %3995 = vmatpush1.msra.mxu0 0.0
    %3996 = vmatprep.subr.mxu0 0.0
    %3997 = vmatpush1.msra.mxu0 0.0
    %3998 = vmatprep.subr.mxu0 0.0
    %3999 = vmatpush1.msra.mxu0 0.0
    %4000 = vmatprep.subr.mxu0 0.0
    %4001 = vmatpush1.msra.mxu0 0.0
    %4002 = vmatprep.subr.mxu0 0.0
    %4003 = vmatpush1.msra.mxu0 0.0
    %4004 = vmatprep.subr.mxu0 0.0
    %4005 = vmatpush1.msra.mxu0 0.0
    %4006 = vmatprep.subr.mxu0 0.0
    %4007 = vmatpush1.msra.mxu0 0.0
    %4008 = vmatprep.subr.mxu0 0.0
    %4009 = vmatpush1.msra.mxu0 0.0
    %4010 = vmatprep.subr.mxu0 0.0
    %4011 = vmatpush1.msra.mxu0 0.0
    %4012 = vmatprep.subr.mxu0 0.0
    %4013 = vmatpush1.msra.mxu0 0.0
    %4014 = vmatprep.subr.mxu0 0.0
    %4015 = vmatpush1.msra.mxu0 0.0
    %4016 = vmatprep.subr.mxu0 0.0
    %4017 = vmatpush1.msra.mxu0 0.0
    %4018 = vmatprep.subr.mxu0 0.0
    %4019 = vmatpush1.msra.mxu0 0.0
    %4020 = vmatprep.subr.mxu0 0.0
    %4021 = vmatpush1.msra.mxu0 0.0
    %4022 = vmatprep.subr.mxu0 0.0
    %4023 = vmatpush1.msra.mxu0 0.0
    %4024 = vmatprep.subr.mxu0 0.0
    %4025 = vmatpush1.msra.mxu0 0.0
    %4026 = vmatprep.mubr.f32.mxu0 0.0
    %4027 = vmatmul.mubr.f32.gmra.mrb[0].mxu0 %v3960
    %v4028 = vpop.f32.mrb[0].mxu0
    %v4029 = vadd.f32 %v3958, %v4028
    %v4030 = vpop.f32.mrb[0].mxu0
    %4031 = vdwg.mxu0
    %v4032 = vtanh.pop %v4029
    %v4033 = vld [vmem:[%s2 + $0x70] sm:$0xff]
    %v4034 = vld [vmem:[%s2 + $0x78] sm:$0xff]
    %v4035 = vld [vmem:[%s2 + $0x80] sm:$0xff]
    %v4036 = vld [vmem:[%s2 + $0x88] sm:$0xff]
    %v4037 = vld [vmem:[%s2 + $0x90] sm:$0x1]
    %v4038 = vlaneseq
    %v4039 = vshrl.u32 %v4038, 7
    %v4040 = vsub.s32 0, %v4039
    %v4041 = vrot.slane %v4037, %v4040
    %v4043 = vsel %vm136, %v4032, 0
    %4045 = vmatprep.subr.mxu0 0.0
    %4046 = vmatpush1.msra.mxu0 %v4033
    %4047 = vmatprep.subr.mxu0 0.0
    %4048 = vmatpush1.msra.mxu0 %v4034
    %4049 = vmatprep.subr.mxu0 0.0
    %4050 = vmatpush1.msra.mxu0 %v4035
    %4051 = vmatprep.subr.mxu0 0.0
    %4052 = vmatpush1.msra.mxu0 %v4036
    %4053 = vmatprep.subr.mxu0 0.0
    %4054 = vmatpush1.msra.mxu0 0.0
    %4055 = vmatprep.subr.mxu0 0.0
    %4056 = vmatpush1.msra.mxu0 0.0
    %4057 = vmatprep.subr.mxu0 0.0
    %4058 = vmatpush1.msra.mxu0 0.0
    %4059 = vmatprep.subr.mxu0 0.0
    %4060 = vmatpush1.msra.mxu0 0.0
    %4061 = vmatprep.subr.mxu0 0.0
    %4062 = vmatpush1.msra.mxu0 0.0
    %4063 = vmatprep.subr.mxu0 0.0
    %4064 = vmatpush1.msra.mxu0 0.0
    %4065 = vmatprep.subr.mxu0 0.0
    %4066 = vmatpush1.msra.mxu0 0.0
    %4067 = vmatprep.subr.mxu0 0.0
    %4068 = vmatpush1.msra.mxu0 0.0
    %4069 = vmatprep.subr.mxu0 0.0
    %4070 = vmatpush1.msra.mxu0 0.0
    %4071 = vmatprep.subr.mxu0 0.0
    %4072 = vmatpush1.msra.mxu0 0.0
    %4073 = vmatprep.subr.mxu0 0.0
    %4074 = vmatpush1.msra.mxu0 0.0
    %4075 = vmatprep.subr.mxu0 0.0
    %4076 = vmatpush1.msra.mxu0 0.0
    %4077 = vmatprep.subr.mxu0 0.0
    %4078 = vmatpush1.msra.mxu0 0.0
    %4079 = vmatprep.subr.mxu0 0.0
    %4080 = vmatpush1.msra.mxu0 0.0
    %4081 = vmatprep.subr.mxu0 0.0
    %4082 = vmatpush1.msra.mxu0 0.0
    %4083 = vmatprep.subr.mxu0 0.0
    %4084 = vmatpush1.msra.mxu0 0.0
    %4085 = vmatprep.subr.mxu0 0.0
    %4086 = vmatpush1.msra.mxu0 0.0
    %4087 = vmatprep.subr.mxu0 0.0
    %4088 = vmatpush1.msra.mxu0 0.0
    %4089 = vmatprep.subr.mxu0 0.0
    %4090 = vmatpush1.msra.mxu0 0.0
    %4091 = vmatprep.subr.mxu0 0.0
    %4092 = vmatpush1.msra.mxu0 0.0
    %4093 = vmatprep.subr.mxu0 0.0
    %4094 = vmatpush1.msra.mxu0 0.0
    %4095 = vmatprep.subr.mxu0 0.0
    %4096 = vmatpush1.msra.mxu0 0.0
    %4097 = vmatprep.subr.mxu0 0.0
    %4098 = vmatpush1.msra.mxu0 0.0
    %4099 = vmatprep.subr.mxu0 0.0
    %4100 = vmatpush1.msra.mxu0 0.0
    %4101 = vmatprep.subr.mxu0 0.0
    %4102 = vmatpush1.msra.mxu0 0.0
    %4103 = vmatprep.subr.mxu0 0.0
    %4104 = vmatpush1.msra.mxu0 0.0
    %4105 = vmatprep.subr.mxu0 0.0
    %4106 = vmatpush1.msra.mxu0 0.0
    %4107 = vmatprep.subr.mxu0 0.0
    %4108 = vmatpush1.msra.mxu0 0.0
    %4109 = vmatprep.mubr.f32.mxu0 0.0
    %4110 = vmatmul.mubr.f32.gmra.mrb[0].mxu0 %v4043
    %v4111 = vpop.f32.mrb[0].mxu0
    %v4112 = vadd.f32 %v4041, %v4111
    %v4113 = vpop.f32.mrb[0].mxu0
    %4114 = vdwg.mxu0
    %vm4115 = vcmask 9216
    %4116 = vst.msk [vmem:[#allocation3] sm:$0x3] %vm4115, %v4112
    // Predicated region
    $region18: #{custom_bert_forward.1} parent=1 // pred_check
      _
    $region19: #{custom_bert_forward.1} parent=1 // pred_check_branch
      %4118 = sbr.rel (0) target = $region21
    $region20: #{custom_bert_forward.1} parent=1 // pred_region
      %s4120 = ssub.s32 32, 32
      %4121 = vsyncadd [#allocation4], %s4120
      %s4123 = sshll.u32 [#allocation3], 4
      %s4124 = int_to_ptr.vmem [resolvable:$true] %s4123
      %4126 = dma.vmem_to_hbm [thread:$0]  %s4124, 32, %s4, [#allocation4]
    $region21: #{custom_bert_forward.1} parent=1 // pred_fallthru
      _
    // Predicated region
    $region22: #{custom_bert_forward.1} parent=1 // pred_check
      _
    $region23: #{custom_bert_forward.1} parent=1 // pred_check_branch
      %4128 = sbr.rel (0) target = $region25
    $region24: #{custom_bert_forward.1} parent=1 // pred_region
      %4129 = dma.done [#allocation4], 32
    $region25: #{custom_bert_forward.1} parent=1 // pred_fallthru
      _
    %4130 = vsyncpa [#allocation4], 1

</llo_original>
